<compile_context>
chip_gen: v7x
topology: tpu7x:2x2x1
jax: 0.10.0
libtpu: 0.0.40
codegen_flags: <defaults>
</compile_context>

<pallas_src>
import jax
import jax.numpy as jnp
import numpy as np
from jax.experimental import pallas as pl
from jax.experimental.pallas import tpu as pltpu


def _apply_attention_kernel(
    v2_ref, q2_ref, att_ref,
    wv_ref, bv_ref, wq_ref, bq_ref, wa_ref, ba_ref,
    ah_ref,
):
    # One grid step == tb batch elements.
    tb, n_obj, q_len = att_ref.shape
    m = wv_ref.shape[1]

    # lin_v / lin_q (Linear + ReLU): one stacked bf16 MXU matmul each for the whole
    # block, f32 accumulation; bias-add / ReLU in f32 on the VPU.
    vp = jnp.maximum(
        jnp.dot(v2_ref[...], wv_ref[...], preferred_element_type=jnp.float32)
        + bv_ref[...], 0.0)                                  # (tb*N, M) f32
    qp = jnp.maximum(
        jnp.dot(q2_ref[...], wq_ref[...], preferred_element_type=jnp.float32)
        + bq_ref[...], 0.0)                                  # (tb*L, M) f32

    vp3 = vp.reshape(tb, n_obj, m)                           # (tb, N, M) f32
    qp3 = qp.reshape(tb, q_len, m)                           # (tb, L, M) f32
    att = att_ref[...]                                       # (tb, N, L) f32

    # Trilinear contraction entirely in f32 on the VPU (L is tiny -> unrolled FMAs):
    #   h[b,m] = sum_i sum_j vp[b,i,m] * att[b,i,j] * qp[b,j,m]
    # s[b,i,m] = sum_j att[b,i,j] * qp[b,j,m], accumulated over the unrolled j loop.
    s = att[:, :, 0:1] * qp3[:, 0:1, :]
    for j in range(1, q_len):                                # static unroll, q_len == 8
        s = s + att[:, :, j:j + 1] * qp3[:, j:j + 1, :]
    h = jnp.sum(vp3 * s, axis=1)                             # (tb, M) f32

    # lin_atten: single (tb, M) @ (M, M) f32 matmul, no activation.
    ah_ref[...] = (
        jnp.dot(h, wa_ref[...], preferred_element_type=jnp.float32) + ba_ref[...])


def _vmem_limit_bytes(tb, n_obj, q_len, dv, dq, m):
    """Rough per-step VMEM footprint with 2x headroom, clamped to sane bounds."""
    bf16, f32 = 2, 4
    acts = 2 * (tb * n_obj * dv * bf16          # double-buffered activation inputs
                + tb * q_len * dq * bf16
                + tb * n_obj * q_len * f32)
    weights = (dv + dq) * m * bf16 + m * m * f32 + 4 * m * f32   # single-buffered
    outs = 2 * tb * m * f32                                      # double-buffered output
    inter = (2 * tb * n_obj * m + tb * q_len * m + tb * m) * f32  # vp/qp/s/h
    est = acts + weights + outs + inter
    return int(min(max(2 * est, 16 * 1024 * 1024), 64 * 1024 * 1024))


def apply_single_attention(params, v, q, b, v_mask, q_mask, atten, logits,
                           count_layer, *, tb=32):
    """Pallas implementation of ApplySingleAttention.forward."""
    del v_mask, q_mask  # intentionally unused, matching the PyTorch forward
    B, N, Dv = v.shape
    _, L, Dq = q.shape
    M = params["wv"].shape[1]

    # --- lin_count path stays in plain JAX, fused by XLA with count_layer: it shares
    #     no data with the trilinear path, so there is zero fusion benefit in-kernel. ---
    # TODO(synk): the real Counter module ("Learning to Count Objects") is an external
    # module passed into forward(); a deterministic synthetic stand-in is used below.
    attn_max = jnp.max(logits, axis=2)                               # (B, N)
    ce = count_layer(jnp.swapaxes(b, 1, 2), attn_max)                # (B, N+1)
    count_h = jax.nn.relu(ce @ params["wc"] + params["bc"])[:, None, :]  # (B, 1, M)

    # --- Batch blocking: tb batches per grid step, grid=(Bp//tb,).
    #     Keep >= 2 steps (ideally an even count) so v7x's two TensorCores both get
    #     work; on single-TC v5e/v6e raise tb toward B for fewer, fatter steps. ---
    tb = max(1, min(tb, B))
    Bp = ((B + tb - 1) // tb) * tb

    def pad_batch(x):
        return jnp.pad(x, [(0, Bp - B)] + [(0, 0)] * (x.ndim - 1))

    # Pre-flatten activations so the kernel does pure 2-D stacked matmuls. Only the
    # lin_v/lin_q MXU operands are cast to bf16 (halves their DMA); atten stays f32 so
    # the VPU trilinear contraction has no bf16 rounding of the softmax probabilities.
    v2 = pad_batch(v).reshape(Bp * N, Dv).astype(jnp.bfloat16)       # (Bp*N, Dv)
    q2 = pad_batch(q).reshape(Bp * L, Dq).astype(jnp.bfloat16)       # (Bp*L, Dq)
    att_b = pad_batch(atten).astype(jnp.float32)                     # (Bp, N, L)

    wv = params["wv"].astype(jnp.bfloat16)                           # (Dv, M)
    wq = params["wq"].astype(jnp.bfloat16)                           # (Dq, M)
    wa = params["wa"].astype(jnp.float32)                            # (M, M) tiny -> f32
    bv = params["bv"].astype(jnp.float32)                            # (1, M)
    bq = params["bq"].astype(jnp.float32)
    ba = params["ba"].astype(jnp.float32)

    # Constant-index weights/biases: never re-fetched, and single-buffered to save VMEM.
    single = dict(pipeline_mode=pl.Buffered(1))

    grid_spec = pltpu.PrefetchScalarGridSpec(
        num_scalar_prefetch=0,
        grid=(Bp // tb,),
        in_specs=[
            pl.BlockSpec((tb * N, Dv), lambda i: (i, 0)),            # v rows (stacked)
            pl.BlockSpec((tb * L, Dq), lambda i: (i, 0)),            # q rows (stacked)
            pl.BlockSpec((tb, N, L), lambda i: (i, 0, 0)),           # atten (f32)
            pl.BlockSpec((Dv, M), lambda i: (0, 0), **single),       # wv
            pl.BlockSpec((1, M), lambda i: (0, 0), **single),        # bv
            pl.BlockSpec((Dq, M), lambda i: (0, 0), **single),       # wq
            pl.BlockSpec((1, M), lambda i: (0, 0), **single),        # bq
            pl.BlockSpec((M, M), lambda i: (0, 0), **single),        # wa
            pl.BlockSpec((1, M), lambda i: (0, 0), **single),        # ba
        ],
        out_specs=pl.BlockSpec((tb, M), lambda i: (i, 0)),           # atten_h
    )

    atten_h = pl.pallas_call(
        _apply_attention_kernel,
        out_shape=jax.ShapeDtypeStruct((Bp, M), jnp.float32),
        grid_spec=grid_spec,
        compiler_params=pltpu.CompilerParams(
            dimension_semantics=("parallel",),
            vmem_limit_bytes=_vmem_limit_bytes(tb, N, L, Dv, Dq, M)),
    )(v2, q2, att_b, wv, bv, wq, bq, wa, ba)

    # Strip batch padding and restore the (B, 1, M) PyTorch output shape.
    atten_h = atten_h[:B][:, None, :]
    return atten_h, count_h


def reference(params, v, q, b, v_mask, q_mask, atten, logits, count_layer):
    """Pure-JAX f32 reference mirroring the PyTorch forward."""
    lin = lambda x, w, bb: x @ w + bb
    vp = jax.nn.relu(lin(v, params["wv"], params["bv"]))
    qp = jax.nn.relu(lin(q, params["wq"], params["bq"]))
    h = jnp.einsum("bim,bij,bjm->bm", vp, atten, qp,
                   precision=jax.lax.Precision.HIGHEST)
    atten_h = lin(h[:, None, :], params["wa"], params["ba"])
    attn_max = jnp.max(logits, axis=2)
    ce = count_layer(jnp.swapaxes(b, 1, 2), attn_max)
    count_h = jax.nn.relu(lin(ce[:, None, :], params["wc"], params["bc"]))
    return atten_h, count_h


def make_count_layer(key, num_obj):
    w_box = jax.random.normal(key, (4, num_obj + 1), jnp.float32) * 0.1

    def count_layer(boxes_t, attn_max):
        # boxes_t: (B, 4, num_obj), attn_max: (B, num_obj) -> (B, num_obj + 1)
        feat = jnp.einsum("bcn,bn->bc", boxes_t, attn_max)
        return jax.nn.sigmoid(feat @ w_box)

    return count_layer


if __name__ == "__main__":
    B, N, L = 64, 8, 8         # batch, num_obj, que_len  (B/TB = 2 grid steps)
    Dv, Dq, M = 32, 32, 32     # v_features, q_features, mid_features
    TB = 32                    # TB*N = 256 stacked rows per lin_v/lin_q matmul

    key = jax.random.PRNGKey(0)
    ks = jax.random.split(key, 16)
    init = lambda k, shape: jax.random.normal(k, shape, jnp.float32) * 0.1

    params = dict(
        wv=init(ks[0], (Dv, M)),     bv=init(ks[1], (1, M)),
        wq=init(ks[2], (Dq, M)),     bq=init(ks[3], (1, M)),
        wa=init(ks[4], (M, M)),      ba=init(ks[5], (1, M)),
        wc=init(ks[6], (N + 1, M)),  bc=init(ks[7], (1, M)),
    )

    v = jax.random.normal(ks[8], (B, N, Dv), jnp.float32)
    q = jax.random.normal(ks[9], (B, L, Dq), jnp.float32)
    b = jax.random.uniform(ks[10], (B, N, 4), jnp.float32)
    atten = jax.nn.softmax(
        jax.random.normal(ks[11], (B, N, L), jnp.float32).reshape(B, -1), axis=-1
    ).reshape(B, N, L)
    logits = jax.random.normal(ks[12], (B, N, L), jnp.float32)
    v_mask = jnp.ones((B, N), jnp.float32)
    q_mask = jnp.ones((B, L), jnp.float32)
    count_layer = make_count_layer(ks[13], N)

    atten_h, count_h = apply_single_attention(
        params, v, q, b, v_mask, q_mask, atten, logits, count_layer, tb=TB)
    jax.block_until_ready((atten_h, count_h))

    ref_ah, ref_ch = reference(
        params, v, q, b, v_mask, q_mask, atten, logits, count_layer)

    assert atten_h.shape == (B, 1, M) and count_h.shape == (B, 1, M)
    np.testing.assert_allclose(np.asarray(atten_h), np.asarray(ref_ah),
                               atol=2e-2, rtol=2e-2)
    np.testing.assert_allclose(np.asarray(count_h), np.asarray(ref_ch),
                               atol=2e-2, rtol=2e-2)
    print("KERNEL_OK")
</pallas_src>

<mosaic_0001>
module attributes {stable_mosaic.version = 11 : i64} {
  func.func @_apply_attention_kernel(%arg0: i32, %arg1: memref<256x32xbf16, #tpu.memory_space<vmem>>, %arg2: memref<256x32xbf16, #tpu.memory_space<vmem>>, %arg3: memref<32x8x8xf32, #tpu.memory_space<vmem>>, %arg4: memref<32x32xbf16, #tpu.memory_space<vmem>>, %arg5: memref<1x32xf32, #tpu.memory_space<vmem>>, %arg6: memref<32x32xbf16, #tpu.memory_space<vmem>>, %arg7: memref<1x32xf32, #tpu.memory_space<vmem>>, %arg8: memref<32x32xf32, #tpu.memory_space<vmem>>, %arg9: memref<1x32xf32, #tpu.memory_space<vmem>>, %arg10: memref<32x32xf32, #tpu.memory_space<vmem>>) attributes {dimension_semantics = [#tpu.dimension_semantics<parallel>], iteration_bounds = array<i64: 2>, scalar_prefetch = 0 : i64, scratch_operands = 0 : i64, tpu.core_type = #tpu.core_type<tc>, window_params = [{transform_indices = @transform_0, window_bounds = array<i64: 256, 32>}, {transform_indices = @transform_1, window_bounds = array<i64: 256, 32>}, {transform_indices = @transform_2, window_bounds = array<i64: 32, 8, 8>}, {pipeline_mode = #tpu.pipeline_mode<synchronous>, transform_indices = @transform_3, window_bounds = array<i64: 32, 32>}, {pipeline_mode = #tpu.pipeline_mode<synchronous>, transform_indices = @transform_4, window_bounds = array<i64: 1, 32>}, {pipeline_mode = #tpu.pipeline_mode<synchronous>, transform_indices = @transform_5, window_bounds = array<i64: 32, 32>}, {pipeline_mode = #tpu.pipeline_mode<synchronous>, transform_indices = @transform_6, window_bounds = array<i64: 1, 32>}, {pipeline_mode = #tpu.pipeline_mode<synchronous>, transform_indices = @transform_7, window_bounds = array<i64: 32, 32>}, {pipeline_mode = #tpu.pipeline_mode<synchronous>, transform_indices = @transform_8, window_bounds = array<i64: 1, 32>}, {transform_indices = @transform_9, window_bounds = array<i64: 32, 32>}]} {
    %c0 = arith.constant 0 : index
    %c0_0 = arith.constant 0 : index
    %0 = vector.load %arg1[%c0, %c0_0] : memref<256x32xbf16, #tpu.memory_space<vmem>>, vector<256x32xbf16>
    %c0_1 = arith.constant 0 : index
    %c0_2 = arith.constant 0 : index
    %1 = vector.load %arg4[%c0_1, %c0_2] : memref<32x32xbf16, #tpu.memory_space<vmem>>, vector<32x32xbf16>
    %cst = arith.constant dense<0.000000e+00> : vector<256x32xf32>
    %2 = tpu.matmul %0, %1, %cst {dimension_numbers = #tpu.dot_dimension_numbers<[1], [0], [0], [1], [0, 0, 1, 1], [], []>} : vector<256x32xbf16>, vector<32x32xbf16>, vector<256x32xf32> -> vector<256x32xf32>
    %c0_3 = arith.constant 0 : index
    %c0_4 = arith.constant 0 : index
    %3 = vector.load %arg5[%c0_3, %c0_4] : memref<1x32xf32, #tpu.memory_space<vmem>>, vector<1x32xf32>
    %4 = vector.broadcast %3 : vector<1x32xf32> to vector<256x32xf32>
    %5 = arith.addf %2, %4 : vector<256x32xf32>
    %cst_5 = arith.constant 0.000000e+00 : f32
    %6 = vector.broadcast %cst_5 : f32 to vector<256x32xf32>
    %7 = arith.maximumf %5, %6 : vector<256x32xf32>
    %c0_6 = arith.constant 0 : index
    %c0_7 = arith.constant 0 : index
    %8 = vector.load %arg2[%c0_6, %c0_7] : memref<256x32xbf16, #tpu.memory_space<vmem>>, vector<256x32xbf16>
    %c0_8 = arith.constant 0 : index
    %c0_9 = arith.constant 0 : index
    %9 = vector.load %arg6[%c0_8, %c0_9] : memref<32x32xbf16, #tpu.memory_space<vmem>>, vector<32x32xbf16>
    %cst_10 = arith.constant dense<0.000000e+00> : vector<256x32xf32>
    %10 = tpu.matmul %8, %9, %cst_10 {dimension_numbers = #tpu.dot_dimension_numbers<[1], [0], [0], [1], [0, 0, 1, 1], [], []>} : vector<256x32xbf16>, vector<32x32xbf16>, vector<256x32xf32> -> vector<256x32xf32>
    %c0_11 = arith.constant 0 : index
    %c0_12 = arith.constant 0 : index
    %11 = vector.load %arg7[%c0_11, %c0_12] : memref<1x32xf32, #tpu.memory_space<vmem>>, vector<1x32xf32>
    %12 = vector.broadcast %11 : vector<1x32xf32> to vector<256x32xf32>
    %13 = arith.addf %10, %12 : vector<256x32xf32>
    %cst_13 = arith.constant 0.000000e+00 : f32
    %14 = vector.broadcast %cst_13 : f32 to vector<256x32xf32>
    %15 = arith.maximumf %13, %14 : vector<256x32xf32>
    %16 = vector.shape_cast %7 : vector<256x32xf32> to vector<32x8x32xf32>
    %17 = vector.shape_cast %15 : vector<256x32xf32> to vector<32x8x32xf32>
    %c0_14 = arith.constant 0 : index
    %c0_15 = arith.constant 0 : index
    %c0_16 = arith.constant 0 : index
    %18 = vector.load %arg3[%c0_14, %c0_15, %c0_16] : memref<32x8x8xf32, #tpu.memory_space<vmem>>, vector<32x8x8xf32>
    %19 = vector.extract_strided_slice %18 {offsets = [0, 0, 0], sizes = [32, 8, 1], strides = [1, 1, 1]} : vector<32x8x8xf32> to vector<32x8x1xf32>
    %20 = vector.extract_strided_slice %17 {offsets = [0, 0, 0], sizes = [32, 1, 32], strides = [1, 1, 1]} : vector<32x8x32xf32> to vector<32x1x32xf32>
    %21 = vector.broadcast %19 : vector<32x8x1xf32> to vector<32x8x32xf32>
    %22 = vector.broadcast %20 : vector<32x1x32xf32> to vector<32x8x32xf32>
    %23 = arith.mulf %21, %22 : vector<32x8x32xf32>
    %24 = vector.extract_strided_slice %18 {offsets = [0, 0, 1], sizes = [32, 8, 1], strides = [1, 1, 1]} : vector<32x8x8xf32> to vector<32x8x1xf32>
    %25 = vector.extract_strided_slice %17 {offsets = [0, 1, 0], sizes = [32, 1, 32], strides = [1, 1, 1]} : vector<32x8x32xf32> to vector<32x1x32xf32>
    %26 = vector.broadcast %24 : vector<32x8x1xf32> to vector<32x8x32xf32>
    %27 = vector.broadcast %25 : vector<32x1x32xf32> to vector<32x8x32xf32>
    %28 = arith.mulf %26, %27 : vector<32x8x32xf32>
    %29 = arith.addf %23, %28 : vector<32x8x32xf32>
    %30 = vector.extract_strided_slice %18 {offsets = [0, 0, 2], sizes = [32, 8, 1], strides = [1, 1, 1]} : vector<32x8x8xf32> to vector<32x8x1xf32>
    %31 = vector.extract_strided_slice %17 {offsets = [0, 2, 0], sizes = [32, 1, 32], strides = [1, 1, 1]} : vector<32x8x32xf32> to vector<32x1x32xf32>
    %32 = vector.broadcast %30 : vector<32x8x1xf32> to vector<32x8x32xf32>
    %33 = vector.broadcast %31 : vector<32x1x32xf32> to vector<32x8x32xf32>
    %34 = arith.mulf %32, %33 : vector<32x8x32xf32>
    %35 = arith.addf %29, %34 : vector<32x8x32xf32>
    %36 = vector.extract_strided_slice %18 {offsets = [0, 0, 3], sizes = [32, 8, 1], strides = [1, 1, 1]} : vector<32x8x8xf32> to vector<32x8x1xf32>
    %37 = vector.extract_strided_slice %17 {offsets = [0, 3, 0], sizes = [32, 1, 32], strides = [1, 1, 1]} : vector<32x8x32xf32> to vector<32x1x32xf32>
    %38 = vector.broadcast %36 : vector<32x8x1xf32> to vector<32x8x32xf32>
    %39 = vector.broadcast %37 : vector<32x1x32xf32> to vector<32x8x32xf32>
    %40 = arith.mulf %38, %39 : vector<32x8x32xf32>
    %41 = arith.addf %35, %40 : vector<32x8x32xf32>
    %42 = vector.extract_strided_slice %18 {offsets = [0, 0, 4], sizes = [32, 8, 1], strides = [1, 1, 1]} : vector<32x8x8xf32> to vector<32x8x1xf32>
    %43 = vector.extract_strided_slice %17 {offsets = [0, 4, 0], sizes = [32, 1, 32], strides = [1, 1, 1]} : vector<32x8x32xf32> to vector<32x1x32xf32>
    %44 = vector.broadcast %42 : vector<32x8x1xf32> to vector<32x8x32xf32>
    %45 = vector.broadcast %43 : vector<32x1x32xf32> to vector<32x8x32xf32>
    %46 = arith.mulf %44, %45 : vector<32x8x32xf32>
    %47 = arith.addf %41, %46 : vector<32x8x32xf32>
    %48 = vector.extract_strided_slice %18 {offsets = [0, 0, 5], sizes = [32, 8, 1], strides = [1, 1, 1]} : vector<32x8x8xf32> to vector<32x8x1xf32>
    %49 = vector.extract_strided_slice %17 {offsets = [0, 5, 0], sizes = [32, 1, 32], strides = [1, 1, 1]} : vector<32x8x32xf32> to vector<32x1x32xf32>
    %50 = vector.broadcast %48 : vector<32x8x1xf32> to vector<32x8x32xf32>
    %51 = vector.broadcast %49 : vector<32x1x32xf32> to vector<32x8x32xf32>
    %52 = arith.mulf %50, %51 : vector<32x8x32xf32>
    %53 = arith.addf %47, %52 : vector<32x8x32xf32>
    %54 = vector.extract_strided_slice %18 {offsets = [0, 0, 6], sizes = [32, 8, 1], strides = [1, 1, 1]} : vector<32x8x8xf32> to vector<32x8x1xf32>
    %55 = vector.extract_strided_slice %17 {offsets = [0, 6, 0], sizes = [32, 1, 32], strides = [1, 1, 1]} : vector<32x8x32xf32> to vector<32x1x32xf32>
    %56 = vector.broadcast %54 : vector<32x8x1xf32> to vector<32x8x32xf32>
    %57 = vector.broadcast %55 : vector<32x1x32xf32> to vector<32x8x32xf32>
    %58 = arith.mulf %56, %57 : vector<32x8x32xf32>
    %59 = arith.addf %53, %58 : vector<32x8x32xf32>
    %60 = vector.extract_strided_slice %18 {offsets = [0, 0, 7], sizes = [32, 8, 1], strides = [1, 1, 1]} : vector<32x8x8xf32> to vector<32x8x1xf32>
    %61 = vector.extract_strided_slice %17 {offsets = [0, 7, 0], sizes = [32, 1, 32], strides = [1, 1, 1]} : vector<32x8x32xf32> to vector<32x1x32xf32>
    %62 = vector.broadcast %60 : vector<32x8x1xf32> to vector<32x8x32xf32>
    %63 = vector.broadcast %61 : vector<32x1x32xf32> to vector<32x8x32xf32>
    %64 = arith.mulf %62, %63 : vector<32x8x32xf32>
    %65 = arith.addf %59, %64 : vector<32x8x32xf32>
    %66 = arith.mulf %16, %65 : vector<32x8x32xf32>
    %cst_17 = arith.constant dense<0.000000e+00> : vector<32x32xf32>
    %67 = vector.multi_reduction <add>, %66, %cst_17 [1] : vector<32x8x32xf32> to vector<32x32xf32>
    %c0_18 = arith.constant 0 : index
    %c0_19 = arith.constant 0 : index
    %68 = vector.load %arg8[%c0_18, %c0_19] : memref<32x32xf32, #tpu.memory_space<vmem>>, vector<32x32xf32>
    %cst_20 = arith.constant dense<0.000000e+00> : vector<32x32xf32>
    %69 = tpu.matmul %67, %68, %cst_20 {dimension_numbers = #tpu.dot_dimension_numbers<[1], [0], [0], [1], [0, 0, 1, 1], [], []>} : vector<32x32xf32>, vector<32x32xf32>, vector<32x32xf32> -> vector<32x32xf32>
    %c0_21 = arith.constant 0 : index
    %c0_22 = arith.constant 0 : index
    %70 = vector.load %arg9[%c0_21, %c0_22] : memref<1x32xf32, #tpu.memory_space<vmem>>, vector<1x32xf32>
    %71 = vector.broadcast %70 : vector<1x32xf32> to vector<32x32xf32>
    %72 = arith.addf %69, %71 : vector<32x32xf32>
    %c0_23 = arith.constant 0 : index
    %c0_24 = arith.constant 0 : index
    %73 = vector.load %arg10[%c0_23, %c0_24] : memref<32x32xf32, #tpu.memory_space<vmem>>, vector<32x32xf32>
    tpu.vector_store %arg10[%c0_23, %c0_24], %72 {strides = array<i32>} : memref<32x32xf32, #tpu.memory_space<vmem>>, vector<32x32xf32>,
    return
  }
  func.func @transform_0(%arg0: i32) -> (i32, i32) {
    %c0_i32 = arith.constant 0 : i32
    %c0_i32_0 = arith.constant 0 : i32
    return %arg0, %c0_i32 : i32, i32
  }
  func.func @transform_1(%arg0: i32) -> (i32, i32) {
    %c0_i32 = arith.constant 0 : i32
    %c0_i32_0 = arith.constant 0 : i32
    return %arg0, %c0_i32 : i32, i32
  }
  func.func @transform_2(%arg0: i32) -> (i32, i32, i32) {
    %c0_i32 = arith.constant 0 : i32
    %c0_i32_0 = arith.constant 0 : i32
    %c0_i32_1 = arith.constant 0 : i32
    return %arg0, %c0_i32, %c0_i32_0 : i32, i32, i32
  }
  func.func @transform_3(%arg0: i32) -> (i32, i32) {
    %c0_i32 = arith.constant 0 : i32
    %c0_i32_0 = arith.constant 0 : i32
    %c0_i32_1 = arith.constant 0 : i32
    return %c0_i32, %c0_i32_0 : i32, i32
  }
  func.func @transform_4(%arg0: i32) -> (i32, i32) {
    %c0_i32 = arith.constant 0 : i32
    %c0_i32_0 = arith.constant 0 : i32
    %c0_i32_1 = arith.constant 0 : i32
    return %c0_i32, %c0_i32_0 : i32, i32
  }
  func.func @transform_5(%arg0: i32) -> (i32, i32) {
    %c0_i32 = arith.constant 0 : i32
    %c0_i32_0 = arith.constant 0 : i32
    %c0_i32_1 = arith.constant 0 : i32
    return %c0_i32, %c0_i32_0 : i32, i32
  }
  func.func @transform_6(%arg0: i32) -> (i32, i32) {
    %c0_i32 = arith.constant 0 : i32
    %c0_i32_0 = arith.constant 0 : i32
    %c0_i32_1 = arith.constant 0 : i32
    return %c0_i32, %c0_i32_0 : i32, i32
  }
  func.func @transform_7(%arg0: i32) -> (i32, i32) {
    %c0_i32 = arith.constant 0 : i32
    %c0_i32_0 = arith.constant 0 : i32
    %c0_i32_1 = arith.constant 0 : i32
    return %c0_i32, %c0_i32_0 : i32, i32
  }
  func.func @transform_8(%arg0: i32) -> (i32, i32) {
    %c0_i32 = arith.constant 0 : i32
    %c0_i32_0 = arith.constant 0 : i32
    %c0_i32_1 = arith.constant 0 : i32
    return %c0_i32, %c0_i32_0 : i32, i32
  }
  func.func @transform_9(%arg0: i32) -> (i32, i32) {
    %c0_i32 = arith.constant 0 : i32
    %c0_i32_0 = arith.constant 0 : i32
    return %arg0, %c0_i32 : i32, i32
  }
}

</mosaic_0001>

<llo_original>
// kernel: tpu_custom_call.1
$region0: #{tpu_custom_call.1}
  #allocation0 [shape = 'u32[]', space=smem, size = 0x4, offset = 0x4, fixed_abs, tag = 'smem constant byte address 0x4 - core index']
  #allocation1 [shape = 'u32[144,128]{1,0:T(1,128)}', space=vmem, size = 0x12000, scoped, tag = 'internal scratch']
  %s0 = inlined_call_operand.vmem [shape: bf16[512,32], index: 0, kind: input, shape index: {}]
  %s1 = inlined_call_operand.vmem [shape: bf16[512,32], index: 1, kind: input, shape index: {}]
  %s2 = inlined_call_operand.vmem [shape: f32[64,8,8], index: 2, kind: input, shape index: {}]
  %s3 = inlined_call_operand.vmem [shape: bf16[32,32], index: 3, kind: input, shape index: {}]
  %s4 = inlined_call_operand.vmem [shape: f32[1,32], index: 4, kind: input, shape index: {}]
  %s5 = inlined_call_operand.vmem [shape: bf16[32,32], index: 5, kind: input, shape index: {}]
  %s6 = inlined_call_operand.vmem [shape: f32[1,32], index: 6, kind: input, shape index: {}]
  %s7 = inlined_call_operand.vmem [shape: f32[32,32], index: 7, kind: input, shape index: {}]
  %s8 = inlined_call_operand.vmem [shape: f32[1,32], index: 8, kind: input, shape index: {}]
  %s9 = inlined_call_operand.vmem [shape: f32[64,32], index: 9, kind: output, shape index: {}]
  %s10 = sld [smem:[#allocation0]]
  $region69: #{tpu_custom_call.1} parent=0
    _
  %s12 = ssub.s32 1, %s10
  %s13 = scalar_select 0, %s12, %s10
  loop: start=0, step=1, limit=4
  $region2: #{tpu_custom_call.1} parent=0 // loop_pre_header
    _
  $region3: #{tpu_custom_call.1} parent=0 // loop_header
    %s15 = sphi 0, %s19
    %p16 = scmp.ge.s32.totalorder %s15, 4
    %s25 = sphi 0, %s27
    %s28 = sphi 0, %s25
    %s29 = sphi 0, %s28
    %s45 = sphi 0, %s29
    %s51 = sphi 0, %s53
    %s54 = sphi 0, %s51
    %s55 = sphi 0, %s54
    %s71 = sphi 0, %s55
    %s77 = sphi 0, %s79
    %s80 = sphi 0, %s77
    %s81 = sphi 0, %s80
    %s97 = sphi 0, %s81
    %s101 = sphi 0, %s101
    %s103 = sphi 0, %s101
    %s104 = sphi 0, %s103
    %s118 = sphi 0, %s104
    %s122 = sphi 0, %s122
    %s124 = sphi 0, %s122
    %s125 = sphi 0, %s124
    %s139 = sphi 0, %s125
    %s143 = sphi 0, %s143
    %s145 = sphi 0, %s143
    %s146 = sphi 0, %s145
    %s160 = sphi 0, %s146
    %s164 = sphi 0, %s164
    %s166 = sphi 0, %s164
    %s167 = sphi 0, %s166
    %s181 = sphi 0, %s167
    %s185 = sphi 0, %s185
    %s187 = sphi 0, %s185
    %s188 = sphi 0, %s187
    %s202 = sphi 0, %s188
    %s206 = sphi 0, %s206
    %s208 = sphi 0, %s206
    %s209 = sphi 0, %s208
    %s223 = sphi 0, %s209
    %s229 = sphi 0, %s231
    %s232 = sphi 0, %s229
    %s233 = sphi 0, %s232
    %s249 = sphi 0, %s233
  $region4: #{tpu_custom_call.1} parent=0 // loop_header_branch
    %18 = sbr.rel (%p16) target = $region8
  $region5: #{tpu_custom_call.1} parent=0 // loop_body
    %s20 = ssub.s32 %s15, 1
    %s21 = ssub.s32 %s15, 2
    %s22 = sadd.s32 %s15, 1
    %s23 = ssub.s32 %s15, %s22
    %p24 = scmp.eq.s32.totalorder %s23, 0
    %s26 = sadd.s32 %s25, 1
    %s27 = scalar_select %p24, %s25, %s26
    %p30 = pneg %p24
    %p31 = scmp.eq.s32.totalorder %s15, 1
    %p32 = por %p30, %p31
    %p33 = scmp.ne.s32.totalorder %s25, %s28
    %p34 = scmp.eq.s32.totalorder %s15, 0
    %p35 = por %p33, %p34
    %p36 = scmp.ne.s32.totalorder %s25, %s28
    %p37 = scmp.eq.s32.totalorder %s20, 1
    %p38 = por %p36, %p37
    %p39 = scmp.ne.s32.totalorder %s28, %s29
    %p40 = scmp.eq.s32.totalorder %s20, 0
    %p41 = por %p39, %p40
    %p42 = scmp.ne.s32.totalorder %s28, %s29
    %p43 = scmp.eq.s32.totalorder %s21, 1
    %p44 = por %p42, %p43
    %p46 = scmp.ne.s32.totalorder %s29, %s45
    %p47 = scmp.eq.s32.totalorder %s21, 0
    %p48 = por %p46, %p47
    %s49 = ssub.s32 %s15, %s22
    %p50 = scmp.eq.s32.totalorder %s49, 0
    %s52 = sadd.s32 %s51, 1
    %s53 = scalar_select %p50, %s51, %s52
    %p56 = pneg %p50
    %p57 = scmp.eq.s32.totalorder %s15, 1
    %p58 = por %p56, %p57
    %p59 = scmp.ne.s32.totalorder %s51, %s54
    %p60 = scmp.eq.s32.totalorder %s15, 0
    %p61 = por %p59, %p60
    %p62 = scmp.ne.s32.totalorder %s51, %s54
    %p63 = scmp.eq.s32.totalorder %s20, 1
    %p64 = por %p62, %p63
    %p65 = scmp.ne.s32.totalorder %s54, %s55
    %p66 = scmp.eq.s32.totalorder %s20, 0
    %p67 = por %p65, %p66
    %p68 = scmp.ne.s32.totalorder %s54, %s55
    %p69 = scmp.eq.s32.totalorder %s21, 1
    %p70 = por %p68, %p69
    %p72 = scmp.ne.s32.totalorder %s55, %s71
    %p73 = scmp.eq.s32.totalorder %s21, 0
    %p74 = por %p72, %p73
    %s75 = ssub.s32 %s15, %s22
    %p76 = scmp.eq.s32.totalorder %s75, 0
    %s78 = sadd.s32 %s77, 1
    %s79 = scalar_select %p76, %s77, %s78
    %p82 = pneg %p76
    %p83 = scmp.eq.s32.totalorder %s15, 1
    %p84 = por %p82, %p83
    %p85 = scmp.ne.s32.totalorder %s77, %s80
    %p86 = scmp.eq.s32.totalorder %s15, 0
    %p87 = por %p85, %p86
    %p88 = scmp.ne.s32.totalorder %s77, %s80
    %p89 = scmp.eq.s32.totalorder %s20, 1
    %p90 = por %p88, %p89
    %p91 = scmp.ne.s32.totalorder %s80, %s81
    %p92 = scmp.eq.s32.totalorder %s20, 0
    %p93 = por %p91, %p92
    %p94 = scmp.ne.s32.totalorder %s80, %s81
    %p95 = scmp.eq.s32.totalorder %s21, 1
    %p96 = por %p94, %p95
    %p98 = scmp.ne.s32.totalorder %s81, %s97
    %p99 = scmp.eq.s32.totalorder %s21, 0
    %p100 = por %p98, %p99
    %s102 = sadd.s32 %s101, 1
    %p105 = scmp.eq.s32.totalorder %s15, 1
    %p106 = scmp.ne.s32.totalorder %s101, %s103
    %p107 = scmp.eq.s32.totalorder %s15, 0
    %p108 = por %p106, %p107
    %p109 = scmp.ne.s32.totalorder %s101, %s103
    %p110 = scmp.eq.s32.totalorder %s20, 1
    %p111 = por %p109, %p110
    %p112 = scmp.ne.s32.totalorder %s103, %s104
    %p113 = scmp.eq.s32.totalorder %s20, 0
    %p114 = por %p112, %p113
    %p115 = scmp.ne.s32.totalorder %s103, %s104
    %p116 = scmp.eq.s32.totalorder %s21, 1
    %p117 = por %p115, %p116
    %p119 = scmp.ne.s32.totalorder %s104, %s118
    %p120 = scmp.eq.s32.totalorder %s21, 0
    %p121 = por %p119, %p120
    %s123 = sadd.s32 %s122, 1
    %p126 = scmp.eq.s32.totalorder %s15, 1
    %p127 = scmp.ne.s32.totalorder %s122, %s124
    %p128 = scmp.eq.s32.totalorder %s15, 0
    %p129 = por %p127, %p128
    %p130 = scmp.ne.s32.totalorder %s122, %s124
    %p131 = scmp.eq.s32.totalorder %s20, 1
    %p132 = por %p130, %p131
    %p133 = scmp.ne.s32.totalorder %s124, %s125
    %p134 = scmp.eq.s32.totalorder %s20, 0
    %p135 = por %p133, %p134
    %p136 = scmp.ne.s32.totalorder %s124, %s125
    %p137 = scmp.eq.s32.totalorder %s21, 1
    %p138 = por %p136, %p137
    %p140 = scmp.ne.s32.totalorder %s125, %s139
    %p141 = scmp.eq.s32.totalorder %s21, 0
    %p142 = por %p140, %p141
    %s144 = sadd.s32 %s143, 1
    %p147 = scmp.eq.s32.totalorder %s15, 1
    %p148 = scmp.ne.s32.totalorder %s143, %s145
    %p149 = scmp.eq.s32.totalorder %s15, 0
    %p150 = por %p148, %p149
    %p151 = scmp.ne.s32.totalorder %s143, %s145
    %p152 = scmp.eq.s32.totalorder %s20, 1
    %p153 = por %p151, %p152
    %p154 = scmp.ne.s32.totalorder %s145, %s146
    %p155 = scmp.eq.s32.totalorder %s20, 0
    %p156 = por %p154, %p155
    %p157 = scmp.ne.s32.totalorder %s145, %s146
    %p158 = scmp.eq.s32.totalorder %s21, 1
    %p159 = por %p157, %p158
    %p161 = scmp.ne.s32.totalorder %s146, %s160
    %p162 = scmp.eq.s32.totalorder %s21, 0
    %p163 = por %p161, %p162
    %s165 = sadd.s32 %s164, 1
    %p168 = scmp.eq.s32.totalorder %s15, 1
    %p169 = scmp.ne.s32.totalorder %s164, %s166
    %p170 = scmp.eq.s32.totalorder %s15, 0
    %p171 = por %p169, %p170
    %p172 = scmp.ne.s32.totalorder %s164, %s166
    %p173 = scmp.eq.s32.totalorder %s20, 1
    %p174 = por %p172, %p173
    %p175 = scmp.ne.s32.totalorder %s166, %s167
    %p176 = scmp.eq.s32.totalorder %s20, 0
    %p177 = por %p175, %p176
    %p178 = scmp.ne.s32.totalorder %s166, %s167
    %p179 = scmp.eq.s32.totalorder %s21, 1
    %p180 = por %p178, %p179
    %p182 = scmp.ne.s32.totalorder %s167, %s181
    %p183 = scmp.eq.s32.totalorder %s21, 0
    %p184 = por %p182, %p183
    %s186 = sadd.s32 %s185, 1
    %p189 = scmp.eq.s32.totalorder %s15, 1
    %p190 = scmp.ne.s32.totalorder %s185, %s187
    %p191 = scmp.eq.s32.totalorder %s15, 0
    %p192 = por %p190, %p191
    %p193 = scmp.ne.s32.totalorder %s185, %s187
    %p194 = scmp.eq.s32.totalorder %s20, 1
    %p195 = por %p193, %p194
    %p196 = scmp.ne.s32.totalorder %s187, %s188
    %p197 = scmp.eq.s32.totalorder %s20, 0
    %p198 = por %p196, %p197
    %p199 = scmp.ne.s32.totalorder %s187, %s188
    %p200 = scmp.eq.s32.totalorder %s21, 1
    %p201 = por %p199, %p200
    %p203 = scmp.ne.s32.totalorder %s188, %s202
    %p204 = scmp.eq.s32.totalorder %s21, 0
    %p205 = por %p203, %p204
    %s207 = sadd.s32 %s206, 1
    %p210 = scmp.eq.s32.totalorder %s15, 1
    %p211 = scmp.ne.s32.totalorder %s206, %s208
    %p212 = scmp.eq.s32.totalorder %s15, 0
    %p213 = por %p211, %p212
    %p214 = scmp.ne.s32.totalorder %s206, %s208
    %p215 = scmp.eq.s32.totalorder %s20, 1
    %p216 = por %p214, %p215
    %p217 = scmp.ne.s32.totalorder %s208, %s209
    %p218 = scmp.eq.s32.totalorder %s20, 0
    %p219 = por %p217, %p218
    %p220 = scmp.ne.s32.totalorder %s208, %s209
    %p221 = scmp.eq.s32.totalorder %s21, 1
    %p222 = por %p220, %p221
    %p224 = scmp.ne.s32.totalorder %s209, %s223
    %p225 = scmp.eq.s32.totalorder %s21, 0
    %p226 = por %p224, %p225
    %s227 = ssub.s32 %s15, %s22
    %p228 = scmp.eq.s32.totalorder %s227, 0
    %s230 = sadd.s32 %s229, 1
    %s231 = scalar_select %p228, %s229, %s230
    %p234 = pneg %p228
    %p235 = scmp.eq.s32.totalorder %s15, 1
    %p236 = por %p234, %p235
    %p237 = scmp.ne.s32.totalorder %s229, %s232
    %p238 = scmp.eq.s32.totalorder %s15, 0
    %p239 = por %p237, %p238
    %p240 = scmp.ne.s32.totalorder %s229, %s232
    %p241 = scmp.eq.s32.totalorder %s20, 1
    %p242 = por %p240, %p241
    %p243 = scmp.ne.s32.totalorder %s232, %s233
    %p244 = scmp.eq.s32.totalorder %s20, 0
    %p245 = por %p243, %p244
    %p246 = scmp.ne.s32.totalorder %s232, %s233
    %p247 = scmp.eq.s32.totalorder %s21, 1
    %p248 = por %p246, %p247
    %p250 = scmp.ne.s32.totalorder %s233, %s249
    %p251 = scmp.eq.s32.totalorder %s21, 0
    %p252 = por %p250, %p251
    %p253 = scmp.le.s32.totalorder 1, %s15
    %p254 = scmp.lt.s32.totalorder %s15, 3
    %p255 = pnand %p253, %p254
    %p256 = pneg %p255
    // Predicated region
    $region9: #{tpu_custom_call.1} parent=5 // pred_check
      _
    $region10: #{tpu_custom_call.1} parent=5 // pred_check_branch
      %258 = sbr.rel (%p255) target = $region12
    $region11: #{tpu_custom_call.1} parent=5 // pred_region
      %s259 = ssub.s32 %s15, 1
      // Predicated region
      $region13: #{tpu_custom_call.1} parent=11 // pred_check
        %p260 = pneg %p114
      $region14: #{tpu_custom_call.1} parent=11 // pred_check_branch
        %262 = sbr.rel (%p260) target = $region16
      $region15: #{tpu_custom_call.1} parent=11 // pred_region
        _
      $region16: #{tpu_custom_call.1} parent=11 // pred_fallthru
        _
      // Predicated region
      $region17: #{tpu_custom_call.1} parent=11 // pred_check
        %p263 = pneg %p135
      $region18: #{tpu_custom_call.1} parent=11 // pred_check_branch
        %265 = sbr.rel (%p263) target = $region20
      $region19: #{tpu_custom_call.1} parent=11 // pred_region
        _
      $region20: #{tpu_custom_call.1} parent=11 // pred_fallthru
        _
      // Predicated region
      $region21: #{tpu_custom_call.1} parent=11 // pred_check
        %p266 = pneg %p156
      $region22: #{tpu_custom_call.1} parent=11 // pred_check_branch
        %268 = sbr.rel (%p266) target = $region24
      $region23: #{tpu_custom_call.1} parent=11 // pred_region
        _
      $region24: #{tpu_custom_call.1} parent=11 // pred_fallthru
        _
      // Predicated region
      $region25: #{tpu_custom_call.1} parent=11 // pred_check
        %p269 = pneg %p177
      $region26: #{tpu_custom_call.1} parent=11 // pred_check_branch
        %271 = sbr.rel (%p269) target = $region28
      $region27: #{tpu_custom_call.1} parent=11 // pred_region
        _
      $region28: #{tpu_custom_call.1} parent=11 // pred_fallthru
        _
      // Predicated region
      $region29: #{tpu_custom_call.1} parent=11 // pred_check
        %p272 = pneg %p198
      $region30: #{tpu_custom_call.1} parent=11 // pred_check_branch
        %274 = sbr.rel (%p272) target = $region32
      $region31: #{tpu_custom_call.1} parent=11 // pred_region
        _
      $region32: #{tpu_custom_call.1} parent=11 // pred_fallthru
        _
      // Predicated region
      $region33: #{tpu_custom_call.1} parent=11 // pred_check
        %p275 = pneg %p219
      $region34: #{tpu_custom_call.1} parent=11 // pred_check_branch
        %277 = sbr.rel (%p275) target = $region36
      $region35: #{tpu_custom_call.1} parent=11 // pred_region
        _
      $region36: #{tpu_custom_call.1} parent=11 // pred_fallthru
        _
    $region12: #{tpu_custom_call.1} parent=5 // pred_fallthru
      _
    %p278 = scmp.lt.s32.totalorder %s15, 2
    // Predicated region
    $region37: #{tpu_custom_call.1} parent=5 // pred_check
      %p279 = pneg %p278
    $region38: #{tpu_custom_call.1} parent=5 // pred_check_branch
      %281 = sbr.rel (%p279) target = $region40
    $region39: #{tpu_custom_call.1} parent=5 // pred_region
      // Predicated region
      $region41: #{tpu_custom_call.1} parent=39 // pred_check
        %p282 = pneg %p35
      $region42: #{tpu_custom_call.1} parent=39 // pred_check_branch
        %284 = sbr.rel (%p282) target = $region44
      $region43: #{tpu_custom_call.1} parent=39 // pred_region
        %s285 = smul.u32 32, %s15
        %p286 = scmp.lt.s32.totalorder %s285, 63
        %s287 = scalar_select %p286, %s285, 63
        %s288 = smul.addr %s287, 4
        %s289 = scalar_lea.vmem %s0, %s288
        %s290 = smul.u32 32, %s15
      $region44: #{tpu_custom_call.1} parent=39 // pred_fallthru
        _
      // Predicated region
      $region45: #{tpu_custom_call.1} parent=39 // pred_check
        %p291 = pneg %p61
      $region46: #{tpu_custom_call.1} parent=39 // pred_check_branch
        %293 = sbr.rel (%p291) target = $region48
      $region47: #{tpu_custom_call.1} parent=39 // pred_region
        %s294 = smul.u32 32, %s15
        %p295 = scmp.lt.s32.totalorder %s294, 63
        %s296 = scalar_select %p295, %s294, 63
        %s297 = smul.addr %s296, 4
        %s298 = scalar_lea.vmem %s1, %s297
        %s299 = smul.u32 32, %s15
      $region48: #{tpu_custom_call.1} parent=39 // pred_fallthru
        _
      // Predicated region
      $region49: #{tpu_custom_call.1} parent=39 // pred_check
        %p300 = pneg %p87
      $region50: #{tpu_custom_call.1} parent=39 // pred_check_branch
        %302 = sbr.rel (%p300) target = $region52
      $region51: #{tpu_custom_call.1} parent=39 // pred_region
        %s303 = smul.u32 32, %s15
        %p304 = scmp.lt.s32.totalorder %s303, 63
        %s305 = scalar_select %p304, %s303, 63
        %s306 = smul.addr %s305, 8
        %s307 = scalar_lea.vmem %s2, %s306
        %s308 = smul.u32 32, %s15
      $region52: #{tpu_custom_call.1} parent=39 // pred_fallthru
        _
    $region40: #{tpu_custom_call.1} parent=5 // pred_fallthru
      _
    %p309 = scmp.le.s32.totalorder 1, %s15
    %p310 = scmp.lt.s32.totalorder %s15, 3
    %p311 = pnand %p309, %p310
    %p312 = pneg %p311
    // Predicated region
    $region53: #{tpu_custom_call.1} parent=5 // pred_check
      _
    $region54: #{tpu_custom_call.1} parent=5 // pred_check_branch
      %314 = sbr.rel (%p311) target = $region56
    $region55: #{tpu_custom_call.1} parent=5 // pred_region
      %s315 = ssub.s32 %s15, 1
      %s316 = smul.u32 32, %s20
      %p317 = scmp.lt.s32.totalorder %s316, 63
      %s318 = scalar_select %p317, %s316, 63
      %s319 = smul.addr %s318, 4
      %s320 = scalar_lea.vmem %s0, %s319
      %p321 = pneg %p41
      %p322 = pneg %p38
      %s323 = smul.u32 32, %s20
      %p324 = scmp.lt.s32.totalorder %s323, 63
      %s325 = scalar_select %p324, %s323, 63
      %s326 = smul.addr %s325, 4
      %s327 = scalar_lea.vmem %s1, %s326
      %p328 = pneg %p67
      %p329 = pneg %p64
      %s330 = smul.u32 32, %s20
      %p331 = scmp.lt.s32.totalorder %s330, 63
      %s332 = scalar_select %p331, %s330, 63
      %s333 = smul.addr %s332, 8
      %s334 = scalar_lea.vmem %s2, %s333
      %p335 = pneg %p93
      %p336 = pneg %p90
      %p337 = pneg %p114
      %p338 = pneg %p111
      %p339 = pneg %p135
      %p340 = pneg %p132
      %p341 = pneg %p156
      %p342 = pneg %p153
      %p343 = pneg %p177
      %p344 = pneg %p174
      %p345 = pneg %p198
      %p346 = pneg %p195
      %p347 = pneg %p219
      %p348 = pneg %p216
      %p349 = pneg %p245
      %p350 = pneg %p242
      %s351 = smul.u32 4, %s20
      %p352 = scmp.lt.s32.totalorder %s351, 7
      %s353 = scalar_select %p352, %s351, 7
      %s354 = smul.addr %s353, 8
      %s355 = scalar_lea.vmem %s9, %s354
      %s356 = smul.u32 32, %s20
      %p357 = scmp.lt.s32.totalorder %s356, 63
      %s358 = scalar_select %p357, %s356, 63
      %s359 = smul.addr %s358, 4
      %s360 = scalar_lea.vmem %s0, %s359
      %s361 = smul.u32 32, %s20
      %s362 = smul.u32 32, %s20
      %p363 = scmp.lt.s32.totalorder %s362, 63
      %s364 = scalar_select %p363, %s362, 63
      %s365 = smul.addr %s364, 4
      %s366 = scalar_lea.vmem %s1, %s365
      %s367 = smul.u32 32, %s20
      %s368 = smul.u32 32, %s20
      %p369 = scmp.lt.s32.totalorder %s368, 63
      %s370 = scalar_select %p369, %s368, 63
      %s371 = smul.addr %s370, 8
      %s372 = scalar_lea.vmem %s2, %s371
      %s373 = smul.u32 32, %s20
      %s374 = smul.u32 4, %s20
      %p375 = scmp.lt.s32.totalorder %s374, 7
      %s376 = scalar_select %p375, %s374, 7
      %s377 = smul.addr %s376, 8
      %s378 = scalar_lea.vmem %s9, %s377
      %s379 = smul.u32 4, %s20
      %v381 = vld [vmem:[%s360] sm:$0xf]
      %v382 = vld [vmem:[%s360 + $0x4] sm:$0xf]
      %v383 = vld [vmem:[%s360 + $0x8] sm:$0xf]
      %v384 = vld [vmem:[%s360 + $0xc] sm:$0xf]
      %v385 = vld [vmem:[%s360 + $0x10] sm:$0xf]
      %v386 = vld [vmem:[%s360 + $0x14] sm:$0xf]
      %v387 = vld [vmem:[%s360 + $0x18] sm:$0xf]
      %v388 = vld [vmem:[%s360 + $0x1c] sm:$0xf]
      %v389 = vld [vmem:[%s360 + $0x20] sm:$0xf]
      %v390 = vld [vmem:[%s360 + $0x24] sm:$0xf]
      %v391 = vld [vmem:[%s360 + $0x28] sm:$0xf]
      %v392 = vld [vmem:[%s360 + $0x2c] sm:$0xf]
      %v393 = vld [vmem:[%s360 + $0x30] sm:$0xf]
      %v394 = vld [vmem:[%s360 + $0x34] sm:$0xf]
      %v395 = vld [vmem:[%s360 + $0x38] sm:$0xf]
      %v396 = vld [vmem:[%s360 + $0x3c] sm:$0xf]
      %v397 = vld [vmem:[%s360 + $0x40] sm:$0xf]
      %v398 = vld [vmem:[%s360 + $0x44] sm:$0xf]
      %v399 = vld [vmem:[%s360 + $0x48] sm:$0xf]
      %v400 = vld [vmem:[%s360 + $0x4c] sm:$0xf]
      %v401 = vld [vmem:[%s360 + $0x50] sm:$0xf]
      %v402 = vld [vmem:[%s360 + $0x54] sm:$0xf]
      %v403 = vld [vmem:[%s360 + $0x58] sm:$0xf]
      %v404 = vld [vmem:[%s360 + $0x5c] sm:$0xf]
      %v405 = vld [vmem:[%s360 + $0x60] sm:$0xf]
      %v406 = vld [vmem:[%s360 + $0x64] sm:$0xf]
      %v407 = vld [vmem:[%s360 + $0x68] sm:$0xf]
      %v408 = vld [vmem:[%s360 + $0x6c] sm:$0xf]
      %v409 = vld [vmem:[%s360 + $0x70] sm:$0xf]
      %v410 = vld [vmem:[%s360 + $0x74] sm:$0xf]
      %v411 = vld [vmem:[%s360 + $0x78] sm:$0xf]
      %v412 = vld [vmem:[%s360 + $0x7c] sm:$0xf]
      %v413 = vld [vmem:[%s3] sm:$0xf]
      %v414 = vld [vmem:[%s3 + $0x4] sm:$0xf]
      %v415 = vld [vmem:[%s3 + $0x8] sm:$0xf]
      %v416 = vld [vmem:[%s3 + $0xc] sm:$0xf]
      %v417 = vld [vmem:[%s4] sm:$0x1]
      %v419 = vlaneseq
      %v420 = vshrl.u32 %v419, 7
      %v421 = vsub.s32 0, %v420
      %v422 = vrot.slane %v417, %v421
      %v456 = vunpack.c.l.b16 %v381
      %v457 = vunpack.c.l.b16 %v382
      %v458 = vunpack.c.l.b16 %v383
      %v459 = vunpack.c.l.b16 %v384
      %v460 = vunpack.c.l.b16 %v385
      %v461 = vunpack.c.l.b16 %v386
      %v462 = vunpack.c.l.b16 %v387
      %v463 = vunpack.c.l.b16 %v388
      %v464 = vunpack.c.l.b16 %v389
      %v465 = vunpack.c.l.b16 %v390
      %v466 = vunpack.c.l.b16 %v391
      %v467 = vunpack.c.l.b16 %v392
      %v468 = vunpack.c.l.b16 %v393
      %v469 = vunpack.c.l.b16 %v394
      %v470 = vunpack.c.l.b16 %v395
      %v471 = vunpack.c.l.b16 %v396
      %v472 = vunpack.c.l.b16 %v397
      %v473 = vunpack.c.l.b16 %v398
      %v474 = vunpack.c.l.b16 %v399
      %v475 = vunpack.c.l.b16 %v400
      %v476 = vunpack.c.l.b16 %v401
      %v477 = vunpack.c.l.b16 %v402
      %v478 = vunpack.c.l.b16 %v403
      %v479 = vunpack.c.l.b16 %v404
      %v480 = vunpack.c.l.b16 %v405
      %v481 = vunpack.c.l.b16 %v406
      %v482 = vunpack.c.l.b16 %v407
      %v483 = vunpack.c.l.b16 %v408
      %v484 = vunpack.c.l.b16 %v409
      %v485 = vunpack.c.l.b16 %v410
      %v486 = vunpack.c.l.b16 %v411
      %v487 = vunpack.c.l.b16 %v412
      %v488 = vpack.c.b16 %v457, %v456
      %v489 = vpack.c.b16 %v459, %v458
      %v490 = vpack.c.b16 %v461, %v460
      %v491 = vpack.c.b16 %v463, %v462
      %v492 = vpack.c.b16 %v465, %v464
      %v493 = vpack.c.b16 %v467, %v466
      %v494 = vpack.c.b16 %v469, %v468
      %v495 = vpack.c.b16 %v471, %v470
      %v496 = vpack.c.b16 %v473, %v472
      %v497 = vpack.c.b16 %v475, %v474
      %v498 = vpack.c.b16 %v477, %v476
      %v499 = vpack.c.b16 %v479, %v478
      %v500 = vpack.c.b16 %v481, %v480
      %v501 = vpack.c.b16 %v483, %v482
      %v502 = vpack.c.b16 %v485, %v484
      %v503 = vpack.c.b16 %v487, %v486
      %v508 = vunpack.c.l.b16 %v413
      %v509 = vunpack.c.l.b16 %v414
      %v510 = vunpack.c.l.b16 %v415
      %v511 = vunpack.c.l.b16 %v416
      %v512 = vpack.c.b16 %v509, %v508
      %v513 = vpack.c.b16 %v511, %v510
      %vm516 = vcmask 261120
      %v518 = vsel %vm516, %v488, 0
      %v521 = vsel %vm516, %v489, 0
      %v524 = vsel %vm516, %v490, 0
      %v527 = vsel %vm516, %v491, 0
      %v530 = vsel %vm516, %v492, 0
      %v533 = vsel %vm516, %v493, 0
      %v536 = vsel %vm516, %v494, 0
      %v539 = vsel %vm516, %v495, 0
      %v542 = vsel %vm516, %v496, 0
      %v545 = vsel %vm516, %v497, 0
      %v548 = vsel %vm516, %v498, 0
      %v551 = vsel %vm516, %v499, 0
      %v554 = vsel %vm516, %v500, 0
      %v557 = vsel %vm516, %v501, 0
      %v560 = vsel %vm516, %v502, 0
      %v563 = vsel %vm516, %v503, 0
      %565 = vmatprep.subr.bf16.mxu0 0
      %566 = vmatpush1.bf16.msra.mxu0 %v512
      %567 = vmatprep.subr.bf16.mxu0 0
      %568 = vmatpush1.bf16.msra.mxu0 %v513
      %569 = vmatprep.subr.bf16.mxu0 0
      %570 = vmatpush1.bf16.msra.mxu0 0
      %571 = vmatprep.subr.bf16.mxu0 0
      %572 = vmatpush1.bf16.msra.mxu0 0
      %573 = vmatprep.subr.bf16.mxu0 0
      %574 = vmatpush1.bf16.msra.mxu0 0
      %575 = vmatprep.subr.bf16.mxu0 0
      %576 = vmatpush1.bf16.msra.mxu0 0
      %577 = vmatprep.subr.bf16.mxu0 0
      %578 = vmatpush1.bf16.msra.mxu0 0
      %579 = vmatprep.subr.bf16.mxu0 0
      %580 = vmatpush1.bf16.msra.mxu0 0
      %581 = vmatprep.subr.bf16.mxu0 0
      %582 = vmatpush1.bf16.msra.mxu0 0
      %583 = vmatprep.subr.bf16.mxu0 0
      %584 = vmatpush1.bf16.msra.mxu0 0
      %585 = vmatprep.subr.bf16.mxu0 0
      %586 = vmatpush1.bf16.msra.mxu0 0
      %587 = vmatprep.subr.bf16.mxu0 0
      %588 = vmatpush1.bf16.msra.mxu0 0
      %589 = vmatprep.subr.bf16.mxu0 0
      %590 = vmatpush1.bf16.msra.mxu0 0
      %591 = vmatprep.subr.bf16.mxu0 0
      %592 = vmatpush1.bf16.msra.mxu0 0
      %593 = vmatprep.subr.bf16.mxu0 0
      %594 = vmatpush1.bf16.msra.mxu0 0
      %595 = vmatprep.subr.bf16.mxu0 0
      %596 = vmatpush1.bf16.msra.mxu0 0
      %597 = vmatprep.mubr.bf16.mxu0 0
      %598 = vmatmul.mubr.bf16.gmra.mrb[0].mxu0 %v518
      %v599 = vpop.f32.mrb[0].mxu0
      %v600 = vadd.f32 %v422, %v599
      %v601 = vpop.f32.mrb[0].mxu0
      %v602 = vpop.f32.mrb[0].mxu0
      %v603 = vadd.f32 %v422, %v602
      %v604 = vpop.f32.mrb[0].mxu0
      %605 = vmatprep.mubr.bf16.mxu0 0
      %606 = vmatmul.mubr.bf16.gmra.mrb[0].mxu0 %v521
      %v607 = vpop.f32.mrb[0].mxu0
      %v608 = vadd.f32 %v422, %v607
      %v609 = vpop.f32.mrb[0].mxu0
      %v610 = vpop.f32.mrb[0].mxu0
      %v611 = vadd.f32 %v422, %v610
      %v612 = vpop.f32.mrb[0].mxu0
      %613 = vmatprep.mubr.bf16.mxu0 0
      %614 = vmatmul.mubr.bf16.gmra.mrb[0].mxu0 %v524
      %v615 = vpop.f32.mrb[0].mxu0
      %v616 = vadd.f32 %v422, %v615
      %v617 = vpop.f32.mrb[0].mxu0
      %v618 = vpop.f32.mrb[0].mxu0
      %v619 = vadd.f32 %v422, %v618
      %v620 = vpop.f32.mrb[0].mxu0
      %621 = vmatprep.mubr.bf16.mxu0 0
      %622 = vmatmul.mubr.bf16.gmra.mrb[0].mxu0 %v527
      %v623 = vpop.f32.mrb[0].mxu0
      %v624 = vadd.f32 %v422, %v623
      %v625 = vpop.f32.mrb[0].mxu0
      %v626 = vpop.f32.mrb[0].mxu0
      %v627 = vadd.f32 %v422, %v626
      %v628 = vpop.f32.mrb[0].mxu0
      %629 = vmatprep.mubr.bf16.mxu0 0
      %630 = vmatmul.mubr.bf16.gmra.mrb[0].mxu0 %v530
      %v631 = vpop.f32.mrb[0].mxu0
      %v632 = vadd.f32 %v422, %v631
      %v633 = vpop.f32.mrb[0].mxu0
      %v634 = vpop.f32.mrb[0].mxu0
      %v635 = vadd.f32 %v422, %v634
      %v636 = vpop.f32.mrb[0].mxu0
      %637 = vmatprep.mubr.bf16.mxu0 0
      %638 = vmatmul.mubr.bf16.gmra.mrb[0].mxu0 %v533
      %v639 = vpop.f32.mrb[0].mxu0
      %v640 = vadd.f32 %v422, %v639
      %v641 = vpop.f32.mrb[0].mxu0
      %v642 = vpop.f32.mrb[0].mxu0
      %v643 = vadd.f32 %v422, %v642
      %v644 = vpop.f32.mrb[0].mxu0
      %645 = vmatprep.mubr.bf16.mxu0 0
      %646 = vmatmul.mubr.bf16.gmra.mrb[0].mxu0 %v536
      %v647 = vpop.f32.mrb[0].mxu0
      %v648 = vadd.f32 %v422, %v647
      %v649 = vpop.f32.mrb[0].mxu0
      %v650 = vpop.f32.mrb[0].mxu0
      %v651 = vadd.f32 %v422, %v650
      %v652 = vpop.f32.mrb[0].mxu0
      %653 = vmatprep.mubr.bf16.mxu0 0
      %654 = vmatmul.mubr.bf16.gmra.mrb[0].mxu0 %v539
      %v655 = vpop.f32.mrb[0].mxu0
      %v656 = vadd.f32 %v422, %v655
      %v657 = vpop.f32.mrb[0].mxu0
      %v658 = vpop.f32.mrb[0].mxu0
      %v659 = vadd.f32 %v422, %v658
      %v660 = vpop.f32.mrb[0].mxu0
      %661 = vmatprep.mubr.bf16.mxu0 0
      %662 = vmatmul.mubr.bf16.gmra.mrb[0].mxu0 %v542
      %v663 = vpop.f32.mrb[0].mxu0
      %v664 = vadd.f32 %v422, %v663
      %v665 = vpop.f32.mrb[0].mxu0
      %v666 = vpop.f32.mrb[0].mxu0
      %v667 = vadd.f32 %v422, %v666
      %v668 = vpop.f32.mrb[0].mxu0
      %669 = vmatprep.mubr.bf16.mxu0 0
      %670 = vmatmul.mubr.bf16.gmra.mrb[0].mxu0 %v545
      %v671 = vpop.f32.mrb[0].mxu0
      %v672 = vadd.f32 %v422, %v671
      %v673 = vpop.f32.mrb[0].mxu0
      %v674 = vpop.f32.mrb[0].mxu0
      %v675 = vadd.f32 %v422, %v674
      %v676 = vpop.f32.mrb[0].mxu0
      %677 = vmatprep.mubr.bf16.mxu0 0
      %678 = vmatmul.mubr.bf16.gmra.mrb[0].mxu0 %v548
      %v679 = vpop.f32.mrb[0].mxu0
      %v680 = vadd.f32 %v422, %v679
      %v681 = vpop.f32.mrb[0].mxu0
      %v682 = vpop.f32.mrb[0].mxu0
      %v683 = vadd.f32 %v422, %v682
      %v684 = vpop.f32.mrb[0].mxu0
      %685 = vmatprep.mubr.bf16.mxu0 0
      %686 = vmatmul.mubr.bf16.gmra.mrb[0].mxu0 %v551
      %v687 = vpop.f32.mrb[0].mxu0
      %v688 = vadd.f32 %v422, %v687
      %v689 = vpop.f32.mrb[0].mxu0
      %v690 = vpop.f32.mrb[0].mxu0
      %v691 = vadd.f32 %v422, %v690
      %v692 = vpop.f32.mrb[0].mxu0
      %693 = vmatprep.mubr.bf16.mxu0 0
      %694 = vmatmul.mubr.bf16.gmra.mrb[0].mxu0 %v554
      %v695 = vpop.f32.mrb[0].mxu0
      %v696 = vadd.f32 %v422, %v695
      %v697 = vpop.f32.mrb[0].mxu0
      %v698 = vpop.f32.mrb[0].mxu0
      %v699 = vadd.f32 %v422, %v698
      %v700 = vpop.f32.mrb[0].mxu0
      %701 = vmatprep.mubr.bf16.mxu0 0
      %702 = vmatmul.mubr.bf16.gmra.mrb[0].mxu0 %v557
      %v703 = vpop.f32.mrb[0].mxu0
      %v704 = vadd.f32 %v422, %v703
      %v705 = vpop.f32.mrb[0].mxu0
      %v706 = vpop.f32.mrb[0].mxu0
      %v707 = vadd.f32 %v422, %v706
      %v708 = vpop.f32.mrb[0].mxu0
      %709 = vmatprep.mubr.bf16.mxu0 0
      %710 = vmatmul.mubr.bf16.gmra.mrb[0].mxu0 %v560
      %v711 = vpop.f32.mrb[0].mxu0
      %v712 = vadd.f32 %v422, %v711
      %v713 = vpop.f32.mrb[0].mxu0
      %v714 = vpop.f32.mrb[0].mxu0
      %v715 = vadd.f32 %v422, %v714
      %v716 = vpop.f32.mrb[0].mxu0
      %717 = vmatprep.mubr.bf16.mxu0 0
      %718 = vmatmul.mubr.bf16.gmra.mrb[0].mxu0 %v563
      %v719 = vpop.f32.mrb[0].mxu0
      %v720 = vadd.f32 %v422, %v719
      %v721 = vpop.f32.mrb[0].mxu0
      %v722 = vpop.f32.mrb[0].mxu0
      %v723 = vadd.f32 %v422, %v722
      %v724 = vpop.f32.mrb[0].mxu0
      %725 = vdwg.mxu0
      %v726 = vmax.f32 %v600, 0.0
      %v727 = vmax.f32 %v603, 0.0
      %v728 = vmax.f32 %v608, 0.0
      %v729 = vmax.f32 %v611, 0.0
      %v730 = vmax.f32 %v616, 0.0
      %v731 = vmax.f32 %v619, 0.0
      %v732 = vmax.f32 %v624, 0.0
      %v733 = vmax.f32 %v627, 0.0
      %v734 = vmax.f32 %v632, 0.0
      %v735 = vmax.f32 %v635, 0.0
      %v736 = vmax.f32 %v640, 0.0
      %v737 = vmax.f32 %v643, 0.0
      %v738 = vmax.f32 %v648, 0.0
      %v739 = vmax.f32 %v651, 0.0
      %v740 = vmax.f32 %v656, 0.0
      %v741 = vmax.f32 %v659, 0.0
      %v742 = vmax.f32 %v664, 0.0
      %v743 = vmax.f32 %v667, 0.0
      %v744 = vmax.f32 %v672, 0.0
      %v745 = vmax.f32 %v675, 0.0
      %v746 = vmax.f32 %v680, 0.0
      %v747 = vmax.f32 %v683, 0.0
      %v748 = vmax.f32 %v688, 0.0
      %v749 = vmax.f32 %v691, 0.0
      %v750 = vmax.f32 %v696, 0.0
      %v751 = vmax.f32 %v699, 0.0
      %v752 = vmax.f32 %v704, 0.0
      %v753 = vmax.f32 %v707, 0.0
      %v754 = vmax.f32 %v712, 0.0
      %v755 = vmax.f32 %v715, 0.0
      %v756 = vmax.f32 %v720, 0.0
      %v757 = vmax.f32 %v723, 0.0
      %v758 = vld [vmem:[%s366] sm:$0xf]
      %v759 = vld [vmem:[%s366 + $0x4] sm:$0xf]
      %v760 = vld [vmem:[%s366 + $0x8] sm:$0xf]
      %v761 = vld [vmem:[%s366 + $0xc] sm:$0xf]
      %v762 = vld [vmem:[%s366 + $0x10] sm:$0xf]
      %v763 = vld [vmem:[%s366 + $0x14] sm:$0xf]
      %v764 = vld [vmem:[%s366 + $0x18] sm:$0xf]
      %v765 = vld [vmem:[%s366 + $0x1c] sm:$0xf]
      %v766 = vld [vmem:[%s366 + $0x20] sm:$0xf]
      %v767 = vld [vmem:[%s366 + $0x24] sm:$0xf]
      %v768 = vld [vmem:[%s366 + $0x28] sm:$0xf]
      %v769 = vld [vmem:[%s366 + $0x2c] sm:$0xf]
      %v770 = vld [vmem:[%s366 + $0x30] sm:$0xf]
      %v771 = vld [vmem:[%s366 + $0x34] sm:$0xf]
      %v772 = vld [vmem:[%s366 + $0x38] sm:$0xf]
      %v773 = vld [vmem:[%s366 + $0x3c] sm:$0xf]
      %v774 = vld [vmem:[%s366 + $0x40] sm:$0xf]
      %v775 = vld [vmem:[%s366 + $0x44] sm:$0xf]
      %v776 = vld [vmem:[%s366 + $0x48] sm:$0xf]
      %v777 = vld [vmem:[%s366 + $0x4c] sm:$0xf]
      %v778 = vld [vmem:[%s366 + $0x50] sm:$0xf]
      %v779 = vld [vmem:[%s366 + $0x54] sm:$0xf]
      %v780 = vld [vmem:[%s366 + $0x58] sm:$0xf]
      %v781 = vld [vmem:[%s366 + $0x5c] sm:$0xf]
      %v782 = vld [vmem:[%s366 + $0x60] sm:$0xf]
      %v783 = vld [vmem:[%s366 + $0x64] sm:$0xf]
      %v784 = vld [vmem:[%s366 + $0x68] sm:$0xf]
      %v785 = vld [vmem:[%s366 + $0x6c] sm:$0xf]
      %v786 = vld [vmem:[%s366 + $0x70] sm:$0xf]
      %v787 = vld [vmem:[%s366 + $0x74] sm:$0xf]
      %v788 = vld [vmem:[%s366 + $0x78] sm:$0xf]
      %v789 = vld [vmem:[%s366 + $0x7c] sm:$0xf]
      %v790 = vld [vmem:[%s5] sm:$0xf]
      %v791 = vld [vmem:[%s5 + $0x4] sm:$0xf]
      %v792 = vld [vmem:[%s5 + $0x8] sm:$0xf]
      %v793 = vld [vmem:[%s5 + $0xc] sm:$0xf]
      %v794 = vld [vmem:[%s6] sm:$0x1]
      %v796 = vlaneseq
      %v797 = vshrl.u32 %v796, 7
      %v798 = vsub.s32 0, %v797
      %v799 = vrot.slane %v794, %v798
      %v833 = vunpack.c.l.b16 %v758
      %v834 = vunpack.c.l.b16 %v759
      %v835 = vunpack.c.l.b16 %v760
      %v836 = vunpack.c.l.b16 %v761
      %v837 = vunpack.c.l.b16 %v762
      %v838 = vunpack.c.l.b16 %v763
      %v839 = vunpack.c.l.b16 %v764
      %v840 = vunpack.c.l.b16 %v765
      %v841 = vunpack.c.l.b16 %v766
      %v842 = vunpack.c.l.b16 %v767
      %v843 = vunpack.c.l.b16 %v768
      %v844 = vunpack.c.l.b16 %v769
      %v845 = vunpack.c.l.b16 %v770
      %v846 = vunpack.c.l.b16 %v771
      %v847 = vunpack.c.l.b16 %v772
      %v848 = vunpack.c.l.b16 %v773
      %v849 = vunpack.c.l.b16 %v774
      %v850 = vunpack.c.l.b16 %v775
      %v851 = vunpack.c.l.b16 %v776
      %v852 = vunpack.c.l.b16 %v777
      %v853 = vunpack.c.l.b16 %v778
      %v854 = vunpack.c.l.b16 %v779
      %v855 = vunpack.c.l.b16 %v780
      %v856 = vunpack.c.l.b16 %v781
      %v857 = vunpack.c.l.b16 %v782
      %v858 = vunpack.c.l.b16 %v783
      %v859 = vunpack.c.l.b16 %v784
      %v860 = vunpack.c.l.b16 %v785
      %v861 = vunpack.c.l.b16 %v786
      %v862 = vunpack.c.l.b16 %v787
      %v863 = vunpack.c.l.b16 %v788
      %v864 = vunpack.c.l.b16 %v789
      %v865 = vpack.c.b16 %v834, %v833
      %v866 = vpack.c.b16 %v836, %v835
      %v867 = vpack.c.b16 %v838, %v837
      %v868 = vpack.c.b16 %v840, %v839
      %v869 = vpack.c.b16 %v842, %v841
      %v870 = vpack.c.b16 %v844, %v843
      %v871 = vpack.c.b16 %v846, %v845
      %v872 = vpack.c.b16 %v848, %v847
      %v873 = vpack.c.b16 %v850, %v849
      %v874 = vpack.c.b16 %v852, %v851
      %v875 = vpack.c.b16 %v854, %v853
      %v876 = vpack.c.b16 %v856, %v855
      %v877 = vpack.c.b16 %v858, %v857
      %v878 = vpack.c.b16 %v860, %v859
      %v879 = vpack.c.b16 %v862, %v861
      %v880 = vpack.c.b16 %v864, %v863
      %v885 = vunpack.c.l.b16 %v790
      %v886 = vunpack.c.l.b16 %v791
      %v887 = vunpack.c.l.b16 %v792
      %v888 = vunpack.c.l.b16 %v793
      %v889 = vpack.c.b16 %v886, %v885
      %v890 = vpack.c.b16 %v888, %v887
      %v894 = vsel %vm516, %v865, 0
      %v897 = vsel %vm516, %v866, 0
      %v900 = vsel %vm516, %v867, 0
      %v903 = vsel %vm516, %v868, 0
      %v906 = vsel %vm516, %v869, 0
      %v909 = vsel %vm516, %v870, 0
      %v912 = vsel %vm516, %v871, 0
      %v915 = vsel %vm516, %v872, 0
      %v918 = vsel %vm516, %v873, 0
      %v921 = vsel %vm516, %v874, 0
      %v924 = vsel %vm516, %v875, 0
      %v927 = vsel %vm516, %v876, 0
      %v930 = vsel %vm516, %v877, 0
      %v933 = vsel %vm516, %v878, 0
      %v936 = vsel %vm516, %v879, 0
      %v939 = vsel %vm516, %v880, 0
      %941 = vmatprep.subr.bf16.mxu0 0
      %942 = vmatpush1.bf16.msra.mxu0 %v889
      %943 = vmatprep.subr.bf16.mxu0 0
      %944 = vmatpush1.bf16.msra.mxu0 %v890
      %945 = vmatprep.subr.bf16.mxu0 0
      %946 = vmatpush1.bf16.msra.mxu0 0
      %947 = vmatprep.subr.bf16.mxu0 0
      %948 = vmatpush1.bf16.msra.mxu0 0
      %949 = vmatprep.subr.bf16.mxu0 0
      %950 = vmatpush1.bf16.msra.mxu0 0
      %951 = vmatprep.subr.bf16.mxu0 0
      %952 = vmatpush1.bf16.msra.mxu0 0
      %953 = vmatprep.subr.bf16.mxu0 0
      %954 = vmatpush1.bf16.msra.mxu0 0
      %955 = vmatprep.subr.bf16.mxu0 0
      %956 = vmatpush1.bf16.msra.mxu0 0
      %957 = vmatprep.subr.bf16.mxu0 0
      %958 = vmatpush1.bf16.msra.mxu0 0
      %959 = vmatprep.subr.bf16.mxu0 0
      %960 = vmatpush1.bf16.msra.mxu0 0
      %961 = vmatprep.subr.bf16.mxu0 0
      %962 = vmatpush1.bf16.msra.mxu0 0
      %963 = vmatprep.subr.bf16.mxu0 0
      %964 = vmatpush1.bf16.msra.mxu0 0
      %965 = vmatprep.subr.bf16.mxu0 0
      %966 = vmatpush1.bf16.msra.mxu0 0
      %967 = vmatprep.subr.bf16.mxu0 0
      %968 = vmatpush1.bf16.msra.mxu0 0
      %969 = vmatprep.subr.bf16.mxu0 0
      %970 = vmatpush1.bf16.msra.mxu0 0
      %971 = vmatprep.subr.bf16.mxu0 0
      %972 = vmatpush1.bf16.msra.mxu0 0
      %973 = vmatprep.mubr.bf16.mxu0 0
      %974 = vmatmul.mubr.bf16.gmra.mrb[0].mxu0 %v894
      %v975 = vpop.f32.mrb[0].mxu0
      %v976 = vadd.f32 %v799, %v975
      %v977 = vpop.f32.mrb[0].mxu0
      %v978 = vpop.f32.mrb[0].mxu0
      %v979 = vadd.f32 %v799, %v978
      %v980 = vpop.f32.mrb[0].mxu0
      %981 = vmatprep.mubr.bf16.mxu0 0
      %982 = vmatmul.mubr.bf16.gmra.mrb[0].mxu0 %v897
      %v983 = vpop.f32.mrb[0].mxu0
      %v984 = vadd.f32 %v799, %v983
      %v985 = vpop.f32.mrb[0].mxu0
      %v986 = vpop.f32.mrb[0].mxu0
      %v987 = vadd.f32 %v799, %v986
      %v988 = vpop.f32.mrb[0].mxu0
      %989 = vmatprep.mubr.bf16.mxu0 0
      %990 = vmatmul.mubr.bf16.gmra.mrb[0].mxu0 %v900
      %v991 = vpop.f32.mrb[0].mxu0
      %v992 = vadd.f32 %v799, %v991
      %v993 = vpop.f32.mrb[0].mxu0
      %v994 = vpop.f32.mrb[0].mxu0
      %v995 = vadd.f32 %v799, %v994
      %v996 = vpop.f32.mrb[0].mxu0
      %997 = vmatprep.mubr.bf16.mxu0 0
      %998 = vmatmul.mubr.bf16.gmra.mrb[0].mxu0 %v903
      %v999 = vpop.f32.mrb[0].mxu0
      %v1000 = vadd.f32 %v799, %v999
      %v1001 = vpop.f32.mrb[0].mxu0
      %v1002 = vpop.f32.mrb[0].mxu0
      %v1003 = vadd.f32 %v799, %v1002
      %v1004 = vpop.f32.mrb[0].mxu0
      %1005 = vmatprep.mubr.bf16.mxu0 0
      %1006 = vmatmul.mubr.bf16.gmra.mrb[0].mxu0 %v906
      %v1007 = vpop.f32.mrb[0].mxu0
      %v1008 = vadd.f32 %v799, %v1007
      %v1009 = vpop.f32.mrb[0].mxu0
      %v1010 = vpop.f32.mrb[0].mxu0
      %v1011 = vadd.f32 %v799, %v1010
      %v1012 = vpop.f32.mrb[0].mxu0
      %1013 = vmatprep.mubr.bf16.mxu0 0
      %1014 = vmatmul.mubr.bf16.gmra.mrb[0].mxu0 %v909
      %v1015 = vpop.f32.mrb[0].mxu0
      %v1016 = vadd.f32 %v799, %v1015
      %v1017 = vpop.f32.mrb[0].mxu0
      %v1018 = vpop.f32.mrb[0].mxu0
      %v1019 = vadd.f32 %v799, %v1018
      %v1020 = vpop.f32.mrb[0].mxu0
      %1021 = vmatprep.mubr.bf16.mxu0 0
      %1022 = vmatmul.mubr.bf16.gmra.mrb[0].mxu0 %v912
      %v1023 = vpop.f32.mrb[0].mxu0
      %v1024 = vadd.f32 %v799, %v1023
      %v1025 = vpop.f32.mrb[0].mxu0
      %v1026 = vpop.f32.mrb[0].mxu0
      %v1027 = vadd.f32 %v799, %v1026
      %v1028 = vpop.f32.mrb[0].mxu0
      %1029 = vmatprep.mubr.bf16.mxu0 0
      %1030 = vmatmul.mubr.bf16.gmra.mrb[0].mxu0 %v915
      %v1031 = vpop.f32.mrb[0].mxu0
      %v1032 = vadd.f32 %v799, %v1031
      %v1033 = vpop.f32.mrb[0].mxu0
      %v1034 = vpop.f32.mrb[0].mxu0
      %v1035 = vadd.f32 %v799, %v1034
      %v1036 = vpop.f32.mrb[0].mxu0
      %1037 = vmatprep.mubr.bf16.mxu0 0
      %1038 = vmatmul.mubr.bf16.gmra.mrb[0].mxu0 %v918
      %v1039 = vpop.f32.mrb[0].mxu0
      %v1040 = vadd.f32 %v799, %v1039
      %v1041 = vpop.f32.mrb[0].mxu0
      %v1042 = vpop.f32.mrb[0].mxu0
      %v1043 = vadd.f32 %v799, %v1042
      %v1044 = vpop.f32.mrb[0].mxu0
      %1045 = vmatprep.mubr.bf16.mxu0 0
      %1046 = vmatmul.mubr.bf16.gmra.mrb[0].mxu0 %v921
      %v1047 = vpop.f32.mrb[0].mxu0
      %v1048 = vadd.f32 %v799, %v1047
      %v1049 = vpop.f32.mrb[0].mxu0
      %v1050 = vpop.f32.mrb[0].mxu0
      %v1051 = vadd.f32 %v799, %v1050
      %v1052 = vpop.f32.mrb[0].mxu0
      %1053 = vmatprep.mubr.bf16.mxu0 0
      %1054 = vmatmul.mubr.bf16.gmra.mrb[0].mxu0 %v924
      %v1055 = vpop.f32.mrb[0].mxu0
      %v1056 = vadd.f32 %v799, %v1055
      %v1057 = vpop.f32.mrb[0].mxu0
      %v1058 = vpop.f32.mrb[0].mxu0
      %v1059 = vadd.f32 %v799, %v1058
      %v1060 = vpop.f32.mrb[0].mxu0
      %1061 = vmatprep.mubr.bf16.mxu0 0
      %1062 = vmatmul.mubr.bf16.gmra.mrb[0].mxu0 %v927
      %v1063 = vpop.f32.mrb[0].mxu0
      %v1064 = vadd.f32 %v799, %v1063
      %v1065 = vpop.f32.mrb[0].mxu0
      %v1066 = vpop.f32.mrb[0].mxu0
      %v1067 = vadd.f32 %v799, %v1066
      %v1068 = vpop.f32.mrb[0].mxu0
      %1069 = vmatprep.mubr.bf16.mxu0 0
      %1070 = vmatmul.mubr.bf16.gmra.mrb[0].mxu0 %v930
      %v1071 = vpop.f32.mrb[0].mxu0
      %v1072 = vadd.f32 %v799, %v1071
      %v1073 = vpop.f32.mrb[0].mxu0
      %v1074 = vpop.f32.mrb[0].mxu0
      %v1075 = vadd.f32 %v799, %v1074
      %v1076 = vpop.f32.mrb[0].mxu0
      %1077 = vmatprep.mubr.bf16.mxu0 0
      %1078 = vmatmul.mubr.bf16.gmra.mrb[0].mxu0 %v933
      %v1079 = vpop.f32.mrb[0].mxu0
      %v1080 = vadd.f32 %v799, %v1079
      %v1081 = vpop.f32.mrb[0].mxu0
      %v1082 = vpop.f32.mrb[0].mxu0
      %v1083 = vadd.f32 %v799, %v1082
      %v1084 = vpop.f32.mrb[0].mxu0
      %1085 = vmatprep.mubr.bf16.mxu0 0
      %1086 = vmatmul.mubr.bf16.gmra.mrb[0].mxu0 %v936
      %v1087 = vpop.f32.mrb[0].mxu0
      %v1088 = vadd.f32 %v799, %v1087
      %v1089 = vpop.f32.mrb[0].mxu0
      %v1090 = vpop.f32.mrb[0].mxu0
      %v1091 = vadd.f32 %v799, %v1090
      %v1092 = vpop.f32.mrb[0].mxu0
      %1093 = vmatprep.mubr.bf16.mxu0 0
      %1094 = vmatmul.mubr.bf16.gmra.mrb[0].mxu0 %v939
      %v1095 = vpop.f32.mrb[0].mxu0
      %v1096 = vadd.f32 %v799, %v1095
      %v1097 = vpop.f32.mrb[0].mxu0
      %v1098 = vpop.f32.mrb[0].mxu0
      %v1099 = vadd.f32 %v799, %v1098
      %v1100 = vpop.f32.mrb[0].mxu0
      %1101 = vdwg.mxu0
      %v1102 = vmax.f32 %v976, 0.0
      %v1103 = vmax.f32 %v979, 0.0
      %v1104 = vmax.f32 %v984, 0.0
      %v1105 = vmax.f32 %v987, 0.0
      %v1106 = vmax.f32 %v992, 0.0
      %v1107 = vmax.f32 %v995, 0.0
      %v1108 = vmax.f32 %v1000, 0.0
      %v1109 = vmax.f32 %v1003, 0.0
      %v1110 = vmax.f32 %v1008, 0.0
      %v1111 = vmax.f32 %v1011, 0.0
      %v1112 = vmax.f32 %v1016, 0.0
      %v1113 = vmax.f32 %v1019, 0.0
      %v1114 = vmax.f32 %v1024, 0.0
      %v1115 = vmax.f32 %v1027, 0.0
      %v1116 = vmax.f32 %v1032, 0.0
      %v1117 = vmax.f32 %v1035, 0.0
      %v1118 = vmax.f32 %v1040, 0.0
      %v1119 = vmax.f32 %v1043, 0.0
      %v1120 = vmax.f32 %v1048, 0.0
      %v1121 = vmax.f32 %v1051, 0.0
      %v1122 = vmax.f32 %v1056, 0.0
      %v1123 = vmax.f32 %v1059, 0.0
      %v1124 = vmax.f32 %v1064, 0.0
      %v1125 = vmax.f32 %v1067, 0.0
      %v1126 = vmax.f32 %v1072, 0.0
      %v1127 = vmax.f32 %v1075, 0.0
      %v1128 = vmax.f32 %v1080, 0.0
      %v1129 = vmax.f32 %v1083, 0.0
      %v1130 = vmax.f32 %v1088, 0.0
      %v1131 = vmax.f32 %v1091, 0.0
      %v1132 = vmax.f32 %v1096, 0.0
      %v1133 = vmax.f32 %v1099, 0.0
      %v1134 = vld [vmem:[%s372] sm:$0xff]
      %v1135 = vld [vmem:[%s372 + $0x8] sm:$0xff]
      %v1136 = vld [vmem:[%s372 + $0x10] sm:$0xff]
      %v1137 = vld [vmem:[%s372 + $0x18] sm:$0xff]
      %v1138 = vld [vmem:[%s372 + $0x20] sm:$0xff]
      %v1139 = vld [vmem:[%s372 + $0x28] sm:$0xff]
      %v1140 = vld [vmem:[%s372 + $0x30] sm:$0xff]
      %v1141 = vld [vmem:[%s372 + $0x38] sm:$0xff]
      %v1142 = vld [vmem:[%s372 + $0x40] sm:$0xff]
      %v1143 = vld [vmem:[%s372 + $0x48] sm:$0xff]
      %v1144 = vld [vmem:[%s372 + $0x50] sm:$0xff]
      %v1145 = vld [vmem:[%s372 + $0x58] sm:$0xff]
      %v1146 = vld [vmem:[%s372 + $0x60] sm:$0xff]
      %v1147 = vld [vmem:[%s372 + $0x68] sm:$0xff]
      %v1148 = vld [vmem:[%s372 + $0x70] sm:$0xff]
      %v1149 = vld [vmem:[%s372 + $0x78] sm:$0xff]
      %v1150 = vld [vmem:[%s372 + $0x80] sm:$0xff]
      %v1151 = vld [vmem:[%s372 + $0x88] sm:$0xff]
      %v1152 = vld [vmem:[%s372 + $0x90] sm:$0xff]
      %v1153 = vld [vmem:[%s372 + $0x98] sm:$0xff]
      %v1154 = vld [vmem:[%s372 + $0xa0] sm:$0xff]
      %v1155 = vld [vmem:[%s372 + $0xa8] sm:$0xff]
      %v1156 = vld [vmem:[%s372 + $0xb0] sm:$0xff]
      %v1157 = vld [vmem:[%s372 + $0xb8] sm:$0xff]
      %v1158 = vld [vmem:[%s372 + $0xc0] sm:$0xff]
      %v1159 = vld [vmem:[%s372 + $0xc8] sm:$0xff]
      %v1160 = vld [vmem:[%s372 + $0xd0] sm:$0xff]
      %v1161 = vld [vmem:[%s372 + $0xd8] sm:$0xff]
      %v1162 = vld [vmem:[%s372 + $0xe0] sm:$0xff]
      %v1163 = vld [vmem:[%s372 + $0xe8] sm:$0xff]
      %v1164 = vld [vmem:[%s372 + $0xf0] sm:$0xff]
      %v1165 = vld [vmem:[%s372 + $0xf8] sm:$0xff]
      %1167 = vset.pattern.permute.xlu0 0
      %1168 = vperm.xlu0 %1167, %v1134
      %v1169 = vpop.permute.xlu0 %1168
      %1172 = vset.pattern.permute.xlu0 0
      %1173 = vperm.xlu0 %1172, %v1135
      %v1174 = vpop.permute.xlu0 %1173
      %1177 = vset.pattern.permute.xlu0 0
      %1178 = vperm.xlu0 %1177, %v1136
      %v1179 = vpop.permute.xlu0 %1178
      %1182 = vset.pattern.permute.xlu0 0
      %1183 = vperm.xlu0 %1182, %v1137
      %v1184 = vpop.permute.xlu0 %1183
      %1187 = vset.pattern.permute.xlu0 0
      %1188 = vperm.xlu0 %1187, %v1138
      %v1189 = vpop.permute.xlu0 %1188
      %1192 = vset.pattern.permute.xlu0 0
      %1193 = vperm.xlu0 %1192, %v1139
      %v1194 = vpop.permute.xlu0 %1193
      %1197 = vset.pattern.permute.xlu0 0
      %1198 = vperm.xlu0 %1197, %v1140
      %v1199 = vpop.permute.xlu0 %1198
      %1202 = vset.pattern.permute.xlu0 0
      %1203 = vperm.xlu0 %1202, %v1141
      %v1204 = vpop.permute.xlu0 %1203
      %1207 = vset.pattern.permute.xlu0 0
      %1208 = vperm.xlu0 %1207, %v1142
      %v1209 = vpop.permute.xlu0 %1208
      %1212 = vset.pattern.permute.xlu0 0
      %1213 = vperm.xlu0 %1212, %v1143
      %v1214 = vpop.permute.xlu0 %1213
      %1217 = vset.pattern.permute.xlu0 0
      %1218 = vperm.xlu0 %1217, %v1144
      %v1219 = vpop.permute.xlu0 %1218
      %1222 = vset.pattern.permute.xlu0 0
      %1223 = vperm.xlu0 %1222, %v1145
      %v1224 = vpop.permute.xlu0 %1223
      %1227 = vset.pattern.permute.xlu0 0
      %1228 = vperm.xlu0 %1227, %v1146
      %v1229 = vpop.permute.xlu0 %1228
      %1232 = vset.pattern.permute.xlu0 0
      %1233 = vperm.xlu0 %1232, %v1147
      %v1234 = vpop.permute.xlu0 %1233
      %1237 = vset.pattern.permute.xlu0 0
      %1238 = vperm.xlu0 %1237, %v1148
      %v1239 = vpop.permute.xlu0 %1238
      %1242 = vset.pattern.permute.xlu0 0
      %1243 = vperm.xlu0 %1242, %v1149
      %v1244 = vpop.permute.xlu0 %1243
      %1247 = vset.pattern.permute.xlu0 0
      %1248 = vperm.xlu0 %1247, %v1150
      %v1249 = vpop.permute.xlu0 %1248
      %1252 = vset.pattern.permute.xlu0 0
      %1253 = vperm.xlu0 %1252, %v1151
      %v1254 = vpop.permute.xlu0 %1253
      %1257 = vset.pattern.permute.xlu0 0
      %1258 = vperm.xlu0 %1257, %v1152
      %v1259 = vpop.permute.xlu0 %1258
      %1262 = vset.pattern.permute.xlu0 0
      %1263 = vperm.xlu0 %1262, %v1153
      %v1264 = vpop.permute.xlu0 %1263
      %1267 = vset.pattern.permute.xlu0 0
      %1268 = vperm.xlu0 %1267, %v1154
      %v1269 = vpop.permute.xlu0 %1268
      %1272 = vset.pattern.permute.xlu0 0
      %1273 = vperm.xlu0 %1272, %v1155
      %v1274 = vpop.permute.xlu0 %1273
      %1277 = vset.pattern.permute.xlu0 0
      %1278 = vperm.xlu0 %1277, %v1156
      %v1279 = vpop.permute.xlu0 %1278
      %1282 = vset.pattern.permute.xlu0 0
      %1283 = vperm.xlu0 %1282, %v1157
      %v1284 = vpop.permute.xlu0 %1283
      %1287 = vset.pattern.permute.xlu0 0
      %1288 = vperm.xlu0 %1287, %v1158
      %v1289 = vpop.permute.xlu0 %1288
      %1292 = vset.pattern.permute.xlu0 0
      %1293 = vperm.xlu0 %1292, %v1159
      %v1294 = vpop.permute.xlu0 %1293
      %1297 = vset.pattern.permute.xlu0 0
      %1298 = vperm.xlu0 %1297, %v1160
      %v1299 = vpop.permute.xlu0 %1298
      %1302 = vset.pattern.permute.xlu0 0
      %1303 = vperm.xlu0 %1302, %v1161
      %v1304 = vpop.permute.xlu0 %1303
      %1307 = vset.pattern.permute.xlu0 0
      %1308 = vperm.xlu0 %1307, %v1162
      %v1309 = vpop.permute.xlu0 %1308
      %1312 = vset.pattern.permute.xlu0 0
      %1313 = vperm.xlu0 %1312, %v1163
      %v1314 = vpop.permute.xlu0 %1313
      %1317 = vset.pattern.permute.xlu0 0
      %1318 = vperm.xlu0 %1317, %v1164
      %v1319 = vpop.permute.xlu0 %1318
      %1322 = vset.pattern.permute.xlu0 0
      %1323 = vperm.xlu0 %1322, %v1165
      %v1324 = vpop.permute.xlu0 %1323
      %v1326 = vlaneseq
      %v1327 = vshrl.u32 %v1326, 7
      %v1328 = vsub.s32 0, %v1327
      %v1329 = vrot.slane %v1102, %v1328
      %v1330 = vlaneseq
      %v1331 = vshrl.u32 %v1330, 7
      %v1332 = vsub.s32 0, %v1331
      %v1333 = vrot.slane %v1103, %v1332
      %v1334 = vlaneseq
      %v1335 = vshrl.u32 %v1334, 7
      %v1336 = vsub.s32 0, %v1335
      %v1337 = vrot.slane %v1104, %v1336
      %v1338 = vlaneseq
      %v1339 = vshrl.u32 %v1338, 7
      %v1340 = vsub.s32 0, %v1339
      %v1341 = vrot.slane %v1105, %v1340
      %v1342 = vlaneseq
      %v1343 = vshrl.u32 %v1342, 7
      %v1344 = vsub.s32 0, %v1343
      %v1345 = vrot.slane %v1106, %v1344
      %v1346 = vlaneseq
      %v1347 = vshrl.u32 %v1346, 7
      %v1348 = vsub.s32 0, %v1347
      %v1349 = vrot.slane %v1107, %v1348
      %v1350 = vlaneseq
      %v1351 = vshrl.u32 %v1350, 7
      %v1352 = vsub.s32 0, %v1351
      %v1353 = vrot.slane %v1108, %v1352
      %v1354 = vlaneseq
      %v1355 = vshrl.u32 %v1354, 7
      %v1356 = vsub.s32 0, %v1355
      %v1357 = vrot.slane %v1109, %v1356
      %v1358 = vlaneseq
      %v1359 = vshrl.u32 %v1358, 7
      %v1360 = vsub.s32 0, %v1359
      %v1361 = vrot.slane %v1110, %v1360
      %v1362 = vlaneseq
      %v1363 = vshrl.u32 %v1362, 7
      %v1364 = vsub.s32 0, %v1363
      %v1365 = vrot.slane %v1111, %v1364
      %v1366 = vlaneseq
      %v1367 = vshrl.u32 %v1366, 7
      %v1368 = vsub.s32 0, %v1367
      %v1369 = vrot.slane %v1112, %v1368
      %v1370 = vlaneseq
      %v1371 = vshrl.u32 %v1370, 7
      %v1372 = vsub.s32 0, %v1371
      %v1373 = vrot.slane %v1113, %v1372
      %v1374 = vlaneseq
      %v1375 = vshrl.u32 %v1374, 7
      %v1376 = vsub.s32 0, %v1375
      %v1377 = vrot.slane %v1114, %v1376
      %v1378 = vlaneseq
      %v1379 = vshrl.u32 %v1378, 7
      %v1380 = vsub.s32 0, %v1379
      %v1381 = vrot.slane %v1115, %v1380
      %v1382 = vlaneseq
      %v1383 = vshrl.u32 %v1382, 7
      %v1384 = vsub.s32 0, %v1383
      %v1385 = vrot.slane %v1116, %v1384
      %v1386 = vlaneseq
      %v1387 = vshrl.u32 %v1386, 7
      %v1388 = vsub.s32 0, %v1387
      %v1389 = vrot.slane %v1117, %v1388
      %v1390 = vlaneseq
      %v1391 = vshrl.u32 %v1390, 7
      %v1392 = vsub.s32 0, %v1391
      %v1393 = vrot.slane %v1118, %v1392
      %v1394 = vlaneseq
      %v1395 = vshrl.u32 %v1394, 7
      %v1396 = vsub.s32 0, %v1395
      %v1397 = vrot.slane %v1119, %v1396
      %v1398 = vlaneseq
      %v1399 = vshrl.u32 %v1398, 7
      %v1400 = vsub.s32 0, %v1399
      %v1401 = vrot.slane %v1120, %v1400
      %v1402 = vlaneseq
      %v1403 = vshrl.u32 %v1402, 7
      %v1404 = vsub.s32 0, %v1403
      %v1405 = vrot.slane %v1121, %v1404
      %v1406 = vlaneseq
      %v1407 = vshrl.u32 %v1406, 7
      %v1408 = vsub.s32 0, %v1407
      %v1409 = vrot.slane %v1122, %v1408
      %v1410 = vlaneseq
      %v1411 = vshrl.u32 %v1410, 7
      %v1412 = vsub.s32 0, %v1411
      %v1413 = vrot.slane %v1123, %v1412
      %v1414 = vlaneseq
      %v1415 = vshrl.u32 %v1414, 7
      %v1416 = vsub.s32 0, %v1415
      %v1417 = vrot.slane %v1124, %v1416
      %v1418 = vlaneseq
      %v1419 = vshrl.u32 %v1418, 7
      %v1420 = vsub.s32 0, %v1419
      %v1421 = vrot.slane %v1125, %v1420
      %v1422 = vlaneseq
      %v1423 = vshrl.u32 %v1422, 7
      %v1424 = vsub.s32 0, %v1423
      %v1425 = vrot.slane %v1126, %v1424
      %v1426 = vlaneseq
      %v1427 = vshrl.u32 %v1426, 7
      %v1428 = vsub.s32 0, %v1427
      %v1429 = vrot.slane %v1127, %v1428
      %v1430 = vlaneseq
      %v1431 = vshrl.u32 %v1430, 7
      %v1432 = vsub.s32 0, %v1431
      %v1433 = vrot.slane %v1128, %v1432
      %v1434 = vlaneseq
      %v1435 = vshrl.u32 %v1434, 7
      %v1436 = vsub.s32 0, %v1435
      %v1437 = vrot.slane %v1129, %v1436
      %v1438 = vlaneseq
      %v1439 = vshrl.u32 %v1438, 7
      %v1440 = vsub.s32 0, %v1439
      %v1441 = vrot.slane %v1130, %v1440
      %v1442 = vlaneseq
      %v1443 = vshrl.u32 %v1442, 7
      %v1444 = vsub.s32 0, %v1443
      %v1445 = vrot.slane %v1131, %v1444
      %v1446 = vlaneseq
      %v1447 = vshrl.u32 %v1446, 7
      %v1448 = vsub.s32 0, %v1447
      %v1449 = vrot.slane %v1132, %v1448
      %v1450 = vlaneseq
      %v1451 = vshrl.u32 %v1450, 7
      %v1452 = vsub.s32 0, %v1451
      %v1453 = vrot.slane %v1133, %v1452
      %v1454 = vmul.f32 %v1169, %v1329
      %v1455 = vmul.f32 %v1174, %v1333
      %v1456 = vmul.f32 %v1179, %v1337
      %v1457 = vmul.f32 %v1184, %v1341
      %v1458 = vmul.f32 %v1189, %v1345
      %v1459 = vmul.f32 %v1194, %v1349
      %v1460 = vmul.f32 %v1199, %v1353
      %v1461 = vmul.f32 %v1204, %v1357
      %v1462 = vmul.f32 %v1209, %v1361
      %v1463 = vmul.f32 %v1214, %v1365
      %v1464 = vmul.f32 %v1219, %v1369
      %v1465 = vmul.f32 %v1224, %v1373
      %v1466 = vmul.f32 %v1229, %v1377
      %v1467 = vmul.f32 %v1234, %v1381
      %v1468 = vmul.f32 %v1239, %v1385
      %v1469 = vmul.f32 %v1244, %v1389
      %v1470 = vmul.f32 %v1249, %v1393
      %v1471 = vmul.f32 %v1254, %v1397
      %v1472 = vmul.f32 %v1259, %v1401
      %v1473 = vmul.f32 %v1264, %v1405
      %v1474 = vmul.f32 %v1269, %v1409
      %v1475 = vmul.f32 %v1274, %v1413
      %v1476 = vmul.f32 %v1279, %v1417
      %v1477 = vmul.f32 %v1284, %v1421
      %v1478 = vmul.f32 %v1289, %v1425
      %v1479 = vmul.f32 %v1294, %v1429
      %v1480 = vmul.f32 %v1299, %v1433
      %v1481 = vmul.f32 %v1304, %v1437
      %v1482 = vmul.f32 %v1309, %v1441
      %v1483 = vmul.f32 %v1314, %v1445
      %v1484 = vmul.f32 %v1319, %v1449
      %v1485 = vmul.f32 %v1324, %v1453
      %1486 = vset.pattern.permute.xlu0 1
      %1487 = vperm.xlu0 %1486, %v1134
      %v1488 = vpop.permute.xlu0 %1487
      %1490 = vset.pattern.permute.xlu0 1
      %1491 = vperm.xlu0 %1490, %v1135
      %v1492 = vpop.permute.xlu0 %1491
      %1494 = vset.pattern.permute.xlu0 1
      %1495 = vperm.xlu0 %1494, %v1136
      %v1496 = vpop.permute.xlu0 %1495
      %1498 = vset.pattern.permute.xlu0 1
      %1499 = vperm.xlu0 %1498, %v1137
      %v1500 = vpop.permute.xlu0 %1499
      %1502 = vset.pattern.permute.xlu0 1
      %1503 = vperm.xlu0 %1502, %v1138
      %v1504 = vpop.permute.xlu0 %1503
      %1506 = vset.pattern.permute.xlu0 1
      %1507 = vperm.xlu0 %1506, %v1139
      %v1508 = vpop.permute.xlu0 %1507
      %1510 = vset.pattern.permute.xlu0 1
      %1511 = vperm.xlu0 %1510, %v1140
      %v1512 = vpop.permute.xlu0 %1511
      %1514 = vset.pattern.permute.xlu0 1
      %1515 = vperm.xlu0 %1514, %v1141
      %v1516 = vpop.permute.xlu0 %1515
      %1518 = vset.pattern.permute.xlu0 1
      %1519 = vperm.xlu0 %1518, %v1142
      %v1520 = vpop.permute.xlu0 %1519
      %1522 = vset.pattern.permute.xlu0 1
      %1523 = vperm.xlu0 %1522, %v1143
      %v1524 = vpop.permute.xlu0 %1523
      %1526 = vset.pattern.permute.xlu0 1
      %1527 = vperm.xlu0 %1526, %v1144
      %v1528 = vpop.permute.xlu0 %1527
      %1530 = vset.pattern.permute.xlu0 1
      %1531 = vperm.xlu0 %1530, %v1145
      %v1532 = vpop.permute.xlu0 %1531
      %1534 = vset.pattern.permute.xlu0 1
      %1535 = vperm.xlu0 %1534, %v1146
      %v1536 = vpop.permute.xlu0 %1535
      %1538 = vset.pattern.permute.xlu0 1
      %1539 = vperm.xlu0 %1538, %v1147
      %v1540 = vpop.permute.xlu0 %1539
      %1542 = vset.pattern.permute.xlu0 1
      %1543 = vperm.xlu0 %1542, %v1148
      %v1544 = vpop.permute.xlu0 %1543
      %1546 = vset.pattern.permute.xlu0 1
      %1547 = vperm.xlu0 %1546, %v1149
      %v1548 = vpop.permute.xlu0 %1547
      %1550 = vset.pattern.permute.xlu0 1
      %1551 = vperm.xlu0 %1550, %v1150
      %v1552 = vpop.permute.xlu0 %1551
      %1554 = vset.pattern.permute.xlu0 1
      %1555 = vperm.xlu0 %1554, %v1151
      %v1556 = vpop.permute.xlu0 %1555
      %1558 = vset.pattern.permute.xlu0 1
      %1559 = vperm.xlu0 %1558, %v1152
      %v1560 = vpop.permute.xlu0 %1559
      %1562 = vset.pattern.permute.xlu0 1
      %1563 = vperm.xlu0 %1562, %v1153
      %v1564 = vpop.permute.xlu0 %1563
      %1566 = vset.pattern.permute.xlu0 1
      %1567 = vperm.xlu0 %1566, %v1154
      %v1568 = vpop.permute.xlu0 %1567
      %1570 = vset.pattern.permute.xlu0 1
      %1571 = vperm.xlu0 %1570, %v1155
      %v1572 = vpop.permute.xlu0 %1571
      %1574 = vset.pattern.permute.xlu0 1
      %1575 = vperm.xlu0 %1574, %v1156
      %v1576 = vpop.permute.xlu0 %1575
      %1578 = vset.pattern.permute.xlu0 1
      %1579 = vperm.xlu0 %1578, %v1157
      %v1580 = vpop.permute.xlu0 %1579
      %1582 = vset.pattern.permute.xlu0 1
      %1583 = vperm.xlu0 %1582, %v1158
      %v1584 = vpop.permute.xlu0 %1583
      %1586 = vset.pattern.permute.xlu0 1
      %1587 = vperm.xlu0 %1586, %v1159
      %v1588 = vpop.permute.xlu0 %1587
      %1590 = vset.pattern.permute.xlu0 1
      %1591 = vperm.xlu0 %1590, %v1160
      %v1592 = vpop.permute.xlu0 %1591
      %1594 = vset.pattern.permute.xlu0 1
      %1595 = vperm.xlu0 %1594, %v1161
      %v1596 = vpop.permute.xlu0 %1595
      %1598 = vset.pattern.permute.xlu0 1
      %1599 = vperm.xlu0 %1598, %v1162
      %v1600 = vpop.permute.xlu0 %1599
      %1602 = vset.pattern.permute.xlu0 1
      %1603 = vperm.xlu0 %1602, %v1163
      %v1604 = vpop.permute.xlu0 %1603
      %1606 = vset.pattern.permute.xlu0 1
      %1607 = vperm.xlu0 %1606, %v1164
      %v1608 = vpop.permute.xlu0 %1607
      %1610 = vset.pattern.permute.xlu0 1
      %1611 = vperm.xlu0 %1610, %v1165
      %v1612 = vpop.permute.xlu0 %1611
      %v1614 = vlaneseq
      %v1615 = vshrl.u32 %v1614, 7
      %v1616 = vsub.s32 1, %v1615
      %v1617 = vrot.slane %v1102, %v1616
      %v1618 = vlaneseq
      %v1619 = vshrl.u32 %v1618, 7
      %v1620 = vsub.s32 1, %v1619
      %v1621 = vrot.slane %v1103, %v1620
      %v1622 = vlaneseq
      %v1623 = vshrl.u32 %v1622, 7
      %v1624 = vsub.s32 1, %v1623
      %v1625 = vrot.slane %v1104, %v1624
      %v1626 = vlaneseq
      %v1627 = vshrl.u32 %v1626, 7
      %v1628 = vsub.s32 1, %v1627
      %v1629 = vrot.slane %v1105, %v1628
      %v1630 = vlaneseq
      %v1631 = vshrl.u32 %v1630, 7
      %v1632 = vsub.s32 1, %v1631
      %v1633 = vrot.slane %v1106, %v1632
      %v1634 = vlaneseq
      %v1635 = vshrl.u32 %v1634, 7
      %v1636 = vsub.s32 1, %v1635
      %v1637 = vrot.slane %v1107, %v1636
      %v1638 = vlaneseq
      %v1639 = vshrl.u32 %v1638, 7
      %v1640 = vsub.s32 1, %v1639
      %v1641 = vrot.slane %v1108, %v1640
      %v1642 = vlaneseq
      %v1643 = vshrl.u32 %v1642, 7
      %v1644 = vsub.s32 1, %v1643
      %v1645 = vrot.slane %v1109, %v1644
      %v1646 = vlaneseq
      %v1647 = vshrl.u32 %v1646, 7
      %v1648 = vsub.s32 1, %v1647
      %v1649 = vrot.slane %v1110, %v1648
      %v1650 = vlaneseq
      %v1651 = vshrl.u32 %v1650, 7
      %v1652 = vsub.s32 1, %v1651
      %v1653 = vrot.slane %v1111, %v1652
      %v1654 = vlaneseq
      %v1655 = vshrl.u32 %v1654, 7
      %v1656 = vsub.s32 1, %v1655
      %v1657 = vrot.slane %v1112, %v1656
      %v1658 = vlaneseq
      %v1659 = vshrl.u32 %v1658, 7
      %v1660 = vsub.s32 1, %v1659
      %v1661 = vrot.slane %v1113, %v1660
      %v1662 = vlaneseq
      %v1663 = vshrl.u32 %v1662, 7
      %v1664 = vsub.s32 1, %v1663
      %v1665 = vrot.slane %v1114, %v1664
      %v1666 = vlaneseq
      %v1667 = vshrl.u32 %v1666, 7
      %v1668 = vsub.s32 1, %v1667
      %v1669 = vrot.slane %v1115, %v1668
      %v1670 = vlaneseq
      %v1671 = vshrl.u32 %v1670, 7
      %v1672 = vsub.s32 1, %v1671
      %v1673 = vrot.slane %v1116, %v1672
      %v1674 = vlaneseq
      %v1675 = vshrl.u32 %v1674, 7
      %v1676 = vsub.s32 1, %v1675
      %v1677 = vrot.slane %v1117, %v1676
      %v1678 = vlaneseq
      %v1679 = vshrl.u32 %v1678, 7
      %v1680 = vsub.s32 1, %v1679
      %v1681 = vrot.slane %v1118, %v1680
      %v1682 = vlaneseq
      %v1683 = vshrl.u32 %v1682, 7
      %v1684 = vsub.s32 1, %v1683
      %v1685 = vrot.slane %v1119, %v1684
      %v1686 = vlaneseq
      %v1687 = vshrl.u32 %v1686, 7
      %v1688 = vsub.s32 1, %v1687
      %v1689 = vrot.slane %v1120, %v1688
      %v1690 = vlaneseq
      %v1691 = vshrl.u32 %v1690, 7
      %v1692 = vsub.s32 1, %v1691
      %v1693 = vrot.slane %v1121, %v1692
      %v1694 = vlaneseq
      %v1695 = vshrl.u32 %v1694, 7
      %v1696 = vsub.s32 1, %v1695
      %v1697 = vrot.slane %v1122, %v1696
      %v1698 = vlaneseq
      %v1699 = vshrl.u32 %v1698, 7
      %v1700 = vsub.s32 1, %v1699
      %v1701 = vrot.slane %v1123, %v1700
      %v1702 = vlaneseq
      %v1703 = vshrl.u32 %v1702, 7
      %v1704 = vsub.s32 1, %v1703
      %v1705 = vrot.slane %v1124, %v1704
      %v1706 = vlaneseq
      %v1707 = vshrl.u32 %v1706, 7
      %v1708 = vsub.s32 1, %v1707
      %v1709 = vrot.slane %v1125, %v1708
      %v1710 = vlaneseq
      %v1711 = vshrl.u32 %v1710, 7
      %v1712 = vsub.s32 1, %v1711
      %v1713 = vrot.slane %v1126, %v1712
      %v1714 = vlaneseq
      %v1715 = vshrl.u32 %v1714, 7
      %v1716 = vsub.s32 1, %v1715
      %v1717 = vrot.slane %v1127, %v1716
      %v1718 = vlaneseq
      %v1719 = vshrl.u32 %v1718, 7
      %v1720 = vsub.s32 1, %v1719
      %v1721 = vrot.slane %v1128, %v1720
      %v1722 = vlaneseq
      %v1723 = vshrl.u32 %v1722, 7
      %v1724 = vsub.s32 1, %v1723
      %v1725 = vrot.slane %v1129, %v1724
      %v1726 = vlaneseq
      %v1727 = vshrl.u32 %v1726, 7
      %v1728 = vsub.s32 1, %v1727
      %v1729 = vrot.slane %v1130, %v1728
      %v1730 = vlaneseq
      %v1731 = vshrl.u32 %v1730, 7
      %v1732 = vsub.s32 1, %v1731
      %v1733 = vrot.slane %v1131, %v1732
      %v1734 = vlaneseq
      %v1735 = vshrl.u32 %v1734, 7
      %v1736 = vsub.s32 1, %v1735
      %v1737 = vrot.slane %v1132, %v1736
      %v1738 = vlaneseq
      %v1739 = vshrl.u32 %v1738, 7
      %v1740 = vsub.s32 1, %v1739
      %v1741 = vrot.slane %v1133, %v1740
      %v1742 = vmul.f32 %v1488, %v1617
      %v1743 = vmul.f32 %v1492, %v1621
      %v1744 = vmul.f32 %v1496, %v1625
      %v1745 = vmul.f32 %v1500, %v1629
      %v1746 = vmul.f32 %v1504, %v1633
      %v1747 = vmul.f32 %v1508, %v1637
      %v1748 = vmul.f32 %v1512, %v1641
      %v1749 = vmul.f32 %v1516, %v1645
      %v1750 = vmul.f32 %v1520, %v1649
      %v1751 = vmul.f32 %v1524, %v1653
      %v1752 = vmul.f32 %v1528, %v1657
      %v1753 = vmul.f32 %v1532, %v1661
      %v1754 = vmul.f32 %v1536, %v1665
      %v1755 = vmul.f32 %v1540, %v1669
      %v1756 = vmul.f32 %v1544, %v1673
      %v1757 = vmul.f32 %v1548, %v1677
      %v1758 = vmul.f32 %v1552, %v1681
      %v1759 = vmul.f32 %v1556, %v1685
      %v1760 = vmul.f32 %v1560, %v1689
      %v1761 = vmul.f32 %v1564, %v1693
      %v1762 = vmul.f32 %v1568, %v1697
      %v1763 = vmul.f32 %v1572, %v1701
      %v1764 = vmul.f32 %v1576, %v1705
      %v1765 = vmul.f32 %v1580, %v1709
      %v1766 = vmul.f32 %v1584, %v1713
      %v1767 = vmul.f32 %v1588, %v1717
      %v1768 = vmul.f32 %v1592, %v1721
      %v1769 = vmul.f32 %v1596, %v1725
      %v1770 = vmul.f32 %v1600, %v1729
      %v1771 = vmul.f32 %v1604, %v1733
      %v1772 = vmul.f32 %v1608, %v1737
      %v1773 = vmul.f32 %v1612, %v1741
      %v1774 = vadd.f32 %v1454, %v1742
      %v1775 = vadd.f32 %v1455, %v1743
      %v1776 = vadd.f32 %v1456, %v1744
      %v1777 = vadd.f32 %v1457, %v1745
      %v1778 = vadd.f32 %v1458, %v1746
      %v1779 = vadd.f32 %v1459, %v1747
      %v1780 = vadd.f32 %v1460, %v1748
      %v1781 = vadd.f32 %v1461, %v1749
      %v1782 = vadd.f32 %v1462, %v1750
      %v1783 = vadd.f32 %v1463, %v1751
      %v1784 = vadd.f32 %v1464, %v1752
      %v1785 = vadd.f32 %v1465, %v1753
      %v1786 = vadd.f32 %v1466, %v1754
      %v1787 = vadd.f32 %v1467, %v1755
      %v1788 = vadd.f32 %v1468, %v1756
      %v1789 = vadd.f32 %v1469, %v1757
      %v1790 = vadd.f32 %v1470, %v1758
      %v1791 = vadd.f32 %v1471, %v1759
      %v1792 = vadd.f32 %v1472, %v1760
      %v1793 = vadd.f32 %v1473, %v1761
      %v1794 = vadd.f32 %v1474, %v1762
      %v1795 = vadd.f32 %v1475, %v1763
      %v1796 = vadd.f32 %v1476, %v1764
      %v1797 = vadd.f32 %v1477, %v1765
      %v1798 = vadd.f32 %v1478, %v1766
      %v1799 = vadd.f32 %v1479, %v1767
      %v1800 = vadd.f32 %v1480, %v1768
      %v1801 = vadd.f32 %v1481, %v1769
      %v1802 = vadd.f32 %v1482, %v1770
      %v1803 = vadd.f32 %v1483, %v1771
      %v1804 = vadd.f32 %v1484, %v1772
      %v1805 = vadd.f32 %v1485, %v1773
      %1806 = vset.pattern.permute.xlu0 2
      %1807 = vperm.xlu0 %1806, %v1134
      %v1808 = vpop.permute.xlu0 %1807
      %1810 = vset.pattern.permute.xlu0 2
      %1811 = vperm.xlu0 %1810, %v1135
      %v1812 = vpop.permute.xlu0 %1811
      %1814 = vset.pattern.permute.xlu0 2
      %1815 = vperm.xlu0 %1814, %v1136
      %v1816 = vpop.permute.xlu0 %1815
      %1818 = vset.pattern.permute.xlu0 2
      %1819 = vperm.xlu0 %1818, %v1137
      %v1820 = vpop.permute.xlu0 %1819
      %1822 = vset.pattern.permute.xlu0 2
      %1823 = vperm.xlu0 %1822, %v1138
      %v1824 = vpop.permute.xlu0 %1823
      %1826 = vset.pattern.permute.xlu0 2
      %1827 = vperm.xlu0 %1826, %v1139
      %v1828 = vpop.permute.xlu0 %1827
      %1830 = vset.pattern.permute.xlu0 2
      %1831 = vperm.xlu0 %1830, %v1140
      %v1832 = vpop.permute.xlu0 %1831
      %1834 = vset.pattern.permute.xlu0 2
      %1835 = vperm.xlu0 %1834, %v1141
      %v1836 = vpop.permute.xlu0 %1835
      %1838 = vset.pattern.permute.xlu0 2
      %1839 = vperm.xlu0 %1838, %v1142
      %v1840 = vpop.permute.xlu0 %1839
      %1842 = vset.pattern.permute.xlu0 2
      %1843 = vperm.xlu0 %1842, %v1143
      %v1844 = vpop.permute.xlu0 %1843
      %1846 = vset.pattern.permute.xlu0 2
      %1847 = vperm.xlu0 %1846, %v1144
      %v1848 = vpop.permute.xlu0 %1847
      %1850 = vset.pattern.permute.xlu0 2
      %1851 = vperm.xlu0 %1850, %v1145
      %v1852 = vpop.permute.xlu0 %1851
      %1854 = vset.pattern.permute.xlu0 2
      %1855 = vperm.xlu0 %1854, %v1146
      %v1856 = vpop.permute.xlu0 %1855
      %1858 = vset.pattern.permute.xlu0 2
      %1859 = vperm.xlu0 %1858, %v1147
      %v1860 = vpop.permute.xlu0 %1859
      %1862 = vset.pattern.permute.xlu0 2
      %1863 = vperm.xlu0 %1862, %v1148
      %v1864 = vpop.permute.xlu0 %1863
      %1866 = vset.pattern.permute.xlu0 2
      %1867 = vperm.xlu0 %1866, %v1149
      %v1868 = vpop.permute.xlu0 %1867
      %1870 = vset.pattern.permute.xlu0 2
      %1871 = vperm.xlu0 %1870, %v1150
      %v1872 = vpop.permute.xlu0 %1871
      %1874 = vset.pattern.permute.xlu0 2
      %1875 = vperm.xlu0 %1874, %v1151
      %v1876 = vpop.permute.xlu0 %1875
      %1878 = vset.pattern.permute.xlu0 2
      %1879 = vperm.xlu0 %1878, %v1152
      %v1880 = vpop.permute.xlu0 %1879
      %1882 = vset.pattern.permute.xlu0 2
      %1883 = vperm.xlu0 %1882, %v1153
      %v1884 = vpop.permute.xlu0 %1883
      %1886 = vset.pattern.permute.xlu0 2
      %1887 = vperm.xlu0 %1886, %v1154
      %v1888 = vpop.permute.xlu0 %1887
      %1890 = vset.pattern.permute.xlu0 2
      %1891 = vperm.xlu0 %1890, %v1155
      %v1892 = vpop.permute.xlu0 %1891
      %1894 = vset.pattern.permute.xlu0 2
      %1895 = vperm.xlu0 %1894, %v1156
      %v1896 = vpop.permute.xlu0 %1895
      %1898 = vset.pattern.permute.xlu0 2
      %1899 = vperm.xlu0 %1898, %v1157
      %v1900 = vpop.permute.xlu0 %1899
      %1902 = vset.pattern.permute.xlu0 2
      %1903 = vperm.xlu0 %1902, %v1158
      %v1904 = vpop.permute.xlu0 %1903
      %1906 = vset.pattern.permute.xlu0 2
      %1907 = vperm.xlu0 %1906, %v1159
      %v1908 = vpop.permute.xlu0 %1907
      %1910 = vset.pattern.permute.xlu0 2
      %1911 = vperm.xlu0 %1910, %v1160
      %v1912 = vpop.permute.xlu0 %1911
      %1914 = vset.pattern.permute.xlu0 2
      %1915 = vperm.xlu0 %1914, %v1161
      %v1916 = vpop.permute.xlu0 %1915
      %1918 = vset.pattern.permute.xlu0 2
      %1919 = vperm.xlu0 %1918, %v1162
      %v1920 = vpop.permute.xlu0 %1919
      %1922 = vset.pattern.permute.xlu0 2
      %1923 = vperm.xlu0 %1922, %v1163
      %v1924 = vpop.permute.xlu0 %1923
      %1926 = vset.pattern.permute.xlu0 2
      %1927 = vperm.xlu0 %1926, %v1164
      %v1928 = vpop.permute.xlu0 %1927
      %1930 = vset.pattern.permute.xlu0 2
      %1931 = vperm.xlu0 %1930, %v1165
      %v1932 = vpop.permute.xlu0 %1931
      %v1934 = vlaneseq
      %v1935 = vshrl.u32 %v1934, 7
      %v1936 = vsub.s32 2, %v1935
      %v1937 = vrot.slane %v1102, %v1936
      %v1938 = vlaneseq
      %v1939 = vshrl.u32 %v1938, 7
      %v1940 = vsub.s32 2, %v1939
      %v1941 = vrot.slane %v1103, %v1940
      %v1942 = vlaneseq
      %v1943 = vshrl.u32 %v1942, 7
      %v1944 = vsub.s32 2, %v1943
      %v1945 = vrot.slane %v1104, %v1944
      %v1946 = vlaneseq
      %v1947 = vshrl.u32 %v1946, 7
      %v1948 = vsub.s32 2, %v1947
      %v1949 = vrot.slane %v1105, %v1948
      %v1950 = vlaneseq
      %v1951 = vshrl.u32 %v1950, 7
      %v1952 = vsub.s32 2, %v1951
      %v1953 = vrot.slane %v1106, %v1952
      %v1954 = vlaneseq
      %v1955 = vshrl.u32 %v1954, 7
      %v1956 = vsub.s32 2, %v1955
      %v1957 = vrot.slane %v1107, %v1956
      %v1958 = vlaneseq
      %v1959 = vshrl.u32 %v1958, 7
      %v1960 = vsub.s32 2, %v1959
      %v1961 = vrot.slane %v1108, %v1960
      %v1962 = vlaneseq
      %v1963 = vshrl.u32 %v1962, 7
      %v1964 = vsub.s32 2, %v1963
      %v1965 = vrot.slane %v1109, %v1964
      %v1966 = vlaneseq
      %v1967 = vshrl.u32 %v1966, 7
      %v1968 = vsub.s32 2, %v1967
      %v1969 = vrot.slane %v1110, %v1968
      %v1970 = vlaneseq
      %v1971 = vshrl.u32 %v1970, 7
      %v1972 = vsub.s32 2, %v1971
      %v1973 = vrot.slane %v1111, %v1972
      %v1974 = vlaneseq
      %v1975 = vshrl.u32 %v1974, 7
      %v1976 = vsub.s32 2, %v1975
      %v1977 = vrot.slane %v1112, %v1976
      %v1978 = vlaneseq
      %v1979 = vshrl.u32 %v1978, 7
      %v1980 = vsub.s32 2, %v1979
      %v1981 = vrot.slane %v1113, %v1980
      %v1982 = vlaneseq
      %v1983 = vshrl.u32 %v1982, 7
      %v1984 = vsub.s32 2, %v1983
      %v1985 = vrot.slane %v1114, %v1984
      %v1986 = vlaneseq
      %v1987 = vshrl.u32 %v1986, 7
      %v1988 = vsub.s32 2, %v1987
      %v1989 = vrot.slane %v1115, %v1988
      %v1990 = vlaneseq
      %v1991 = vshrl.u32 %v1990, 7
      %v1992 = vsub.s32 2, %v1991
      %v1993 = vrot.slane %v1116, %v1992
      %v1994 = vlaneseq
      %v1995 = vshrl.u32 %v1994, 7
      %v1996 = vsub.s32 2, %v1995
      %v1997 = vrot.slane %v1117, %v1996
      %v1998 = vlaneseq
      %v1999 = vshrl.u32 %v1998, 7
      %v2000 = vsub.s32 2, %v1999
      %v2001 = vrot.slane %v1118, %v2000
      %v2002 = vlaneseq
      %v2003 = vshrl.u32 %v2002, 7
      %v2004 = vsub.s32 2, %v2003
      %v2005 = vrot.slane %v1119, %v2004
      %v2006 = vlaneseq
      %v2007 = vshrl.u32 %v2006, 7
      %v2008 = vsub.s32 2, %v2007
      %v2009 = vrot.slane %v1120, %v2008
      %v2010 = vlaneseq
      %v2011 = vshrl.u32 %v2010, 7
      %v2012 = vsub.s32 2, %v2011
      %v2013 = vrot.slane %v1121, %v2012
      %v2014 = vlaneseq
      %v2015 = vshrl.u32 %v2014, 7
      %v2016 = vsub.s32 2, %v2015
      %v2017 = vrot.slane %v1122, %v2016
      %v2018 = vlaneseq
      %v2019 = vshrl.u32 %v2018, 7
      %v2020 = vsub.s32 2, %v2019
      %v2021 = vrot.slane %v1123, %v2020
      %v2022 = vlaneseq
      %v2023 = vshrl.u32 %v2022, 7
      %v2024 = vsub.s32 2, %v2023
      %v2025 = vrot.slane %v1124, %v2024
      %v2026 = vlaneseq
      %v2027 = vshrl.u32 %v2026, 7
      %v2028 = vsub.s32 2, %v2027
      %v2029 = vrot.slane %v1125, %v2028
      %v2030 = vlaneseq
      %v2031 = vshrl.u32 %v2030, 7
      %v2032 = vsub.s32 2, %v2031
      %v2033 = vrot.slane %v1126, %v2032
      %v2034 = vlaneseq
      %v2035 = vshrl.u32 %v2034, 7
      %v2036 = vsub.s32 2, %v2035
      %v2037 = vrot.slane %v1127, %v2036
      %v2038 = vlaneseq
      %v2039 = vshrl.u32 %v2038, 7
      %v2040 = vsub.s32 2, %v2039
      %v2041 = vrot.slane %v1128, %v2040
      %v2042 = vlaneseq
      %v2043 = vshrl.u32 %v2042, 7
      %v2044 = vsub.s32 2, %v2043
      %v2045 = vrot.slane %v1129, %v2044
      %v2046 = vlaneseq
      %v2047 = vshrl.u32 %v2046, 7
      %v2048 = vsub.s32 2, %v2047
      %v2049 = vrot.slane %v1130, %v2048
      %v2050 = vlaneseq
      %v2051 = vshrl.u32 %v2050, 7
      %v2052 = vsub.s32 2, %v2051
      %v2053 = vrot.slane %v1131, %v2052
      %v2054 = vlaneseq
      %v2055 = vshrl.u32 %v2054, 7
      %v2056 = vsub.s32 2, %v2055
      %v2057 = vrot.slane %v1132, %v2056
      %v2058 = vlaneseq
      %v2059 = vshrl.u32 %v2058, 7
      %v2060 = vsub.s32 2, %v2059
      %v2061 = vrot.slane %v1133, %v2060
      %v2062 = vmul.f32 %v1808, %v1937
      %v2063 = vmul.f32 %v1812, %v1941
      %v2064 = vmul.f32 %v1816, %v1945
      %v2065 = vmul.f32 %v1820, %v1949
      %v2066 = vmul.f32 %v1824, %v1953
      %v2067 = vmul.f32 %v1828, %v1957
      %v2068 = vmul.f32 %v1832, %v1961
      %v2069 = vmul.f32 %v1836, %v1965
      %v2070 = vmul.f32 %v1840, %v1969
      %v2071 = vmul.f32 %v1844, %v1973
      %v2072 = vmul.f32 %v1848, %v1977
      %v2073 = vmul.f32 %v1852, %v1981
      %v2074 = vmul.f32 %v1856, %v1985
      %v2075 = vmul.f32 %v1860, %v1989
      %v2076 = vmul.f32 %v1864, %v1993
      %v2077 = vmul.f32 %v1868, %v1997
      %v2078 = vmul.f32 %v1872, %v2001
      %v2079 = vmul.f32 %v1876, %v2005
      %v2080 = vmul.f32 %v1880, %v2009
      %v2081 = vmul.f32 %v1884, %v2013
      %v2082 = vmul.f32 %v1888, %v2017
      %v2083 = vmul.f32 %v1892, %v2021
      %v2084 = vmul.f32 %v1896, %v2025
      %v2085 = vmul.f32 %v1900, %v2029
      %v2086 = vmul.f32 %v1904, %v2033
      %v2087 = vmul.f32 %v1908, %v2037
      %v2088 = vmul.f32 %v1912, %v2041
      %v2089 = vmul.f32 %v1916, %v2045
      %v2090 = vmul.f32 %v1920, %v2049
      %v2091 = vmul.f32 %v1924, %v2053
      %v2092 = vmul.f32 %v1928, %v2057
      %v2093 = vmul.f32 %v1932, %v2061
      %v2094 = vadd.f32 %v1774, %v2062
      %v2095 = vadd.f32 %v1775, %v2063
      %v2096 = vadd.f32 %v1776, %v2064
      %v2097 = vadd.f32 %v1777, %v2065
      %v2098 = vadd.f32 %v1778, %v2066
      %v2099 = vadd.f32 %v1779, %v2067
      %v2100 = vadd.f32 %v1780, %v2068
      %v2101 = vadd.f32 %v1781, %v2069
      %v2102 = vadd.f32 %v1782, %v2070
      %v2103 = vadd.f32 %v1783, %v2071
      %v2104 = vadd.f32 %v1784, %v2072
      %v2105 = vadd.f32 %v1785, %v2073
      %v2106 = vadd.f32 %v1786, %v2074
      %v2107 = vadd.f32 %v1787, %v2075
      %v2108 = vadd.f32 %v1788, %v2076
      %v2109 = vadd.f32 %v1789, %v2077
      %v2110 = vadd.f32 %v1790, %v2078
      %v2111 = vadd.f32 %v1791, %v2079
      %v2112 = vadd.f32 %v1792, %v2080
      %v2113 = vadd.f32 %v1793, %v2081
      %v2114 = vadd.f32 %v1794, %v2082
      %v2115 = vadd.f32 %v1795, %v2083
      %v2116 = vadd.f32 %v1796, %v2084
      %v2117 = vadd.f32 %v1797, %v2085
      %v2118 = vadd.f32 %v1798, %v2086
      %v2119 = vadd.f32 %v1799, %v2087
      %v2120 = vadd.f32 %v1800, %v2088
      %v2121 = vadd.f32 %v1801, %v2089
      %v2122 = vadd.f32 %v1802, %v2090
      %v2123 = vadd.f32 %v1803, %v2091
      %v2124 = vadd.f32 %v1804, %v2092
      %v2125 = vadd.f32 %v1805, %v2093
      %2126 = vset.pattern.permute.xlu0 3
      %2127 = vperm.xlu0 %2126, %v1134
      %v2128 = vpop.permute.xlu0 %2127
      %2130 = vset.pattern.permute.xlu0 3
      %2131 = vperm.xlu0 %2130, %v1135
      %v2132 = vpop.permute.xlu0 %2131
      %2134 = vset.pattern.permute.xlu0 3
      %2135 = vperm.xlu0 %2134, %v1136
      %v2136 = vpop.permute.xlu0 %2135
      %2138 = vset.pattern.permute.xlu0 3
      %2139 = vperm.xlu0 %2138, %v1137
      %v2140 = vpop.permute.xlu0 %2139
      %2142 = vset.pattern.permute.xlu0 3
      %2143 = vperm.xlu0 %2142, %v1138
      %v2144 = vpop.permute.xlu0 %2143
      %2146 = vset.pattern.permute.xlu0 3
      %2147 = vperm.xlu0 %2146, %v1139
      %v2148 = vpop.permute.xlu0 %2147
      %2150 = vset.pattern.permute.xlu0 3
      %2151 = vperm.xlu0 %2150, %v1140
      %v2152 = vpop.permute.xlu0 %2151
      %2154 = vset.pattern.permute.xlu0 3
      %2155 = vperm.xlu0 %2154, %v1141
      %v2156 = vpop.permute.xlu0 %2155
      %2158 = vset.pattern.permute.xlu0 3
      %2159 = vperm.xlu0 %2158, %v1142
      %v2160 = vpop.permute.xlu0 %2159
      %2162 = vset.pattern.permute.xlu0 3
      %2163 = vperm.xlu0 %2162, %v1143
      %v2164 = vpop.permute.xlu0 %2163
      %2166 = vset.pattern.permute.xlu0 3
      %2167 = vperm.xlu0 %2166, %v1144
      %v2168 = vpop.permute.xlu0 %2167
      %2170 = vset.pattern.permute.xlu0 3
      %2171 = vperm.xlu0 %2170, %v1145
      %v2172 = vpop.permute.xlu0 %2171
      %2174 = vset.pattern.permute.xlu0 3
      %2175 = vperm.xlu0 %2174, %v1146
      %v2176 = vpop.permute.xlu0 %2175
      %2178 = vset.pattern.permute.xlu0 3
      %2179 = vperm.xlu0 %2178, %v1147
      %v2180 = vpop.permute.xlu0 %2179
      %2182 = vset.pattern.permute.xlu0 3
      %2183 = vperm.xlu0 %2182, %v1148
      %v2184 = vpop.permute.xlu0 %2183
      %2186 = vset.pattern.permute.xlu0 3
      %2187 = vperm.xlu0 %2186, %v1149
      %v2188 = vpop.permute.xlu0 %2187
      %2190 = vset.pattern.permute.xlu0 3
      %2191 = vperm.xlu0 %2190, %v1150
      %v2192 = vpop.permute.xlu0 %2191
      %2194 = vset.pattern.permute.xlu0 3
      %2195 = vperm.xlu0 %2194, %v1151
      %v2196 = vpop.permute.xlu0 %2195
      %2198 = vset.pattern.permute.xlu0 3
      %2199 = vperm.xlu0 %2198, %v1152
      %v2200 = vpop.permute.xlu0 %2199
      %2202 = vset.pattern.permute.xlu0 3
      %2203 = vperm.xlu0 %2202, %v1153
      %v2204 = vpop.permute.xlu0 %2203
      %2206 = vset.pattern.permute.xlu0 3
      %2207 = vperm.xlu0 %2206, %v1154
      %v2208 = vpop.permute.xlu0 %2207
      %2210 = vset.pattern.permute.xlu0 3
      %2211 = vperm.xlu0 %2210, %v1155
      %v2212 = vpop.permute.xlu0 %2211
      %2214 = vset.pattern.permute.xlu0 3
      %2215 = vperm.xlu0 %2214, %v1156
      %v2216 = vpop.permute.xlu0 %2215
      %2218 = vset.pattern.permute.xlu0 3
      %2219 = vperm.xlu0 %2218, %v1157
      %v2220 = vpop.permute.xlu0 %2219
      %2222 = vset.pattern.permute.xlu0 3
      %2223 = vperm.xlu0 %2222, %v1158
      %v2224 = vpop.permute.xlu0 %2223
      %2226 = vset.pattern.permute.xlu0 3
      %2227 = vperm.xlu0 %2226, %v1159
      %v2228 = vpop.permute.xlu0 %2227
      %2230 = vset.pattern.permute.xlu0 3
      %2231 = vperm.xlu0 %2230, %v1160
      %v2232 = vpop.permute.xlu0 %2231
      %2234 = vset.pattern.permute.xlu0 3
      %2235 = vperm.xlu0 %2234, %v1161
      %v2236 = vpop.permute.xlu0 %2235
      %2238 = vset.pattern.permute.xlu0 3
      %2239 = vperm.xlu0 %2238, %v1162
      %v2240 = vpop.permute.xlu0 %2239
      %2242 = vset.pattern.permute.xlu0 3
      %2243 = vperm.xlu0 %2242, %v1163
      %v2244 = vpop.permute.xlu0 %2243
      %2246 = vset.pattern.permute.xlu0 3
      %2247 = vperm.xlu0 %2246, %v1164
      %v2248 = vpop.permute.xlu0 %2247
      %2250 = vset.pattern.permute.xlu0 3
      %2251 = vperm.xlu0 %2250, %v1165
      %v2252 = vpop.permute.xlu0 %2251
      %v2254 = vlaneseq
      %v2255 = vshrl.u32 %v2254, 7
      %v2256 = vsub.s32 3, %v2255
      %v2257 = vrot.slane %v1102, %v2256
      %v2258 = vlaneseq
      %v2259 = vshrl.u32 %v2258, 7
      %v2260 = vsub.s32 3, %v2259
      %v2261 = vrot.slane %v1103, %v2260
      %v2262 = vlaneseq
      %v2263 = vshrl.u32 %v2262, 7
      %v2264 = vsub.s32 3, %v2263
      %v2265 = vrot.slane %v1104, %v2264
      %v2266 = vlaneseq
      %v2267 = vshrl.u32 %v2266, 7
      %v2268 = vsub.s32 3, %v2267
      %v2269 = vrot.slane %v1105, %v2268
      %v2270 = vlaneseq
      %v2271 = vshrl.u32 %v2270, 7
      %v2272 = vsub.s32 3, %v2271
      %v2273 = vrot.slane %v1106, %v2272
      %v2274 = vlaneseq
      %v2275 = vshrl.u32 %v2274, 7
      %v2276 = vsub.s32 3, %v2275
      %v2277 = vrot.slane %v1107, %v2276
      %v2278 = vlaneseq
      %v2279 = vshrl.u32 %v2278, 7
      %v2280 = vsub.s32 3, %v2279
      %v2281 = vrot.slane %v1108, %v2280
      %v2282 = vlaneseq
      %v2283 = vshrl.u32 %v2282, 7
      %v2284 = vsub.s32 3, %v2283
      %v2285 = vrot.slane %v1109, %v2284
      %v2286 = vlaneseq
      %v2287 = vshrl.u32 %v2286, 7
      %v2288 = vsub.s32 3, %v2287
      %v2289 = vrot.slane %v1110, %v2288
      %v2290 = vlaneseq
      %v2291 = vshrl.u32 %v2290, 7
      %v2292 = vsub.s32 3, %v2291
      %v2293 = vrot.slane %v1111, %v2292
      %v2294 = vlaneseq
      %v2295 = vshrl.u32 %v2294, 7
      %v2296 = vsub.s32 3, %v2295
      %v2297 = vrot.slane %v1112, %v2296
      %v2298 = vlaneseq
      %v2299 = vshrl.u32 %v2298, 7
      %v2300 = vsub.s32 3, %v2299
      %v2301 = vrot.slane %v1113, %v2300
      %v2302 = vlaneseq
      %v2303 = vshrl.u32 %v2302, 7
      %v2304 = vsub.s32 3, %v2303
      %v2305 = vrot.slane %v1114, %v2304
      %v2306 = vlaneseq
      %v2307 = vshrl.u32 %v2306, 7
      %v2308 = vsub.s32 3, %v2307
      %v2309 = vrot.slane %v1115, %v2308
      %v2310 = vlaneseq
      %v2311 = vshrl.u32 %v2310, 7
      %v2312 = vsub.s32 3, %v2311
      %v2313 = vrot.slane %v1116, %v2312
      %v2314 = vlaneseq
      %v2315 = vshrl.u32 %v2314, 7
      %v2316 = vsub.s32 3, %v2315
      %v2317 = vrot.slane %v1117, %v2316
      %v2318 = vlaneseq
      %v2319 = vshrl.u32 %v2318, 7
      %v2320 = vsub.s32 3, %v2319
      %v2321 = vrot.slane %v1118, %v2320
      %v2322 = vlaneseq
      %v2323 = vshrl.u32 %v2322, 7
      %v2324 = vsub.s32 3, %v2323
      %v2325 = vrot.slane %v1119, %v2324
      %v2326 = vlaneseq
      %v2327 = vshrl.u32 %v2326, 7
      %v2328 = vsub.s32 3, %v2327
      %v2329 = vrot.slane %v1120, %v2328
      %v2330 = vlaneseq
      %v2331 = vshrl.u32 %v2330, 7
      %v2332 = vsub.s32 3, %v2331
      %v2333 = vrot.slane %v1121, %v2332
      %v2334 = vlaneseq
      %v2335 = vshrl.u32 %v2334, 7
      %v2336 = vsub.s32 3, %v2335
      %v2337 = vrot.slane %v1122, %v2336
      %v2338 = vlaneseq
      %v2339 = vshrl.u32 %v2338, 7
      %v2340 = vsub.s32 3, %v2339
      %v2341 = vrot.slane %v1123, %v2340
      %v2342 = vlaneseq
      %v2343 = vshrl.u32 %v2342, 7
      %v2344 = vsub.s32 3, %v2343
      %v2345 = vrot.slane %v1124, %v2344
      %v2346 = vlaneseq
      %v2347 = vshrl.u32 %v2346, 7
      %v2348 = vsub.s32 3, %v2347
      %v2349 = vrot.slane %v1125, %v2348
      %v2350 = vlaneseq
      %v2351 = vshrl.u32 %v2350, 7
      %v2352 = vsub.s32 3, %v2351
      %v2353 = vrot.slane %v1126, %v2352
      %v2354 = vlaneseq
      %v2355 = vshrl.u32 %v2354, 7
      %v2356 = vsub.s32 3, %v2355
      %v2357 = vrot.slane %v1127, %v2356
      %v2358 = vlaneseq
      %v2359 = vshrl.u32 %v2358, 7
      %v2360 = vsub.s32 3, %v2359
      %v2361 = vrot.slane %v1128, %v2360
      %v2362 = vlaneseq
      %v2363 = vshrl.u32 %v2362, 7
      %v2364 = vsub.s32 3, %v2363
      %v2365 = vrot.slane %v1129, %v2364
      %v2366 = vlaneseq
      %v2367 = vshrl.u32 %v2366, 7
      %v2368 = vsub.s32 3, %v2367
      %v2369 = vrot.slane %v1130, %v2368
      %v2370 = vlaneseq
      %v2371 = vshrl.u32 %v2370, 7
      %v2372 = vsub.s32 3, %v2371
      %v2373 = vrot.slane %v1131, %v2372
      %v2374 = vlaneseq
      %v2375 = vshrl.u32 %v2374, 7
      %v2376 = vsub.s32 3, %v2375
      %v2377 = vrot.slane %v1132, %v2376
      %v2378 = vlaneseq
      %v2379 = vshrl.u32 %v2378, 7
      %v2380 = vsub.s32 3, %v2379
      %v2381 = vrot.slane %v1133, %v2380
      %v2382 = vmul.f32 %v2128, %v2257
      %v2383 = vmul.f32 %v2132, %v2261
      %v2384 = vmul.f32 %v2136, %v2265
      %v2385 = vmul.f32 %v2140, %v2269
      %v2386 = vmul.f32 %v2144, %v2273
      %v2387 = vmul.f32 %v2148, %v2277
      %v2388 = vmul.f32 %v2152, %v2281
      %v2389 = vmul.f32 %v2156, %v2285
      %v2390 = vmul.f32 %v2160, %v2289
      %v2391 = vmul.f32 %v2164, %v2293
      %v2392 = vmul.f32 %v2168, %v2297
      %v2393 = vmul.f32 %v2172, %v2301
      %v2394 = vmul.f32 %v2176, %v2305
      %v2395 = vmul.f32 %v2180, %v2309
      %v2396 = vmul.f32 %v2184, %v2313
      %v2397 = vmul.f32 %v2188, %v2317
      %v2398 = vmul.f32 %v2192, %v2321
      %v2399 = vmul.f32 %v2196, %v2325
      %v2400 = vmul.f32 %v2200, %v2329
      %v2401 = vmul.f32 %v2204, %v2333
      %v2402 = vmul.f32 %v2208, %v2337
      %v2403 = vmul.f32 %v2212, %v2341
      %v2404 = vmul.f32 %v2216, %v2345
      %v2405 = vmul.f32 %v2220, %v2349
      %v2406 = vmul.f32 %v2224, %v2353
      %v2407 = vmul.f32 %v2228, %v2357
      %v2408 = vmul.f32 %v2232, %v2361
      %v2409 = vmul.f32 %v2236, %v2365
      %v2410 = vmul.f32 %v2240, %v2369
      %v2411 = vmul.f32 %v2244, %v2373
      %v2412 = vmul.f32 %v2248, %v2377
      %v2413 = vmul.f32 %v2252, %v2381
      %v2414 = vadd.f32 %v2094, %v2382
      %v2415 = vadd.f32 %v2095, %v2383
      %v2416 = vadd.f32 %v2096, %v2384
      %v2417 = vadd.f32 %v2097, %v2385
      %v2418 = vadd.f32 %v2098, %v2386
      %v2419 = vadd.f32 %v2099, %v2387
      %v2420 = vadd.f32 %v2100, %v2388
      %v2421 = vadd.f32 %v2101, %v2389
      %v2422 = vadd.f32 %v2102, %v2390
      %v2423 = vadd.f32 %v2103, %v2391
      %v2424 = vadd.f32 %v2104, %v2392
      %v2425 = vadd.f32 %v2105, %v2393
      %v2426 = vadd.f32 %v2106, %v2394
      %v2427 = vadd.f32 %v2107, %v2395
      %v2428 = vadd.f32 %v2108, %v2396
      %v2429 = vadd.f32 %v2109, %v2397
      %v2430 = vadd.f32 %v2110, %v2398
      %v2431 = vadd.f32 %v2111, %v2399
      %v2432 = vadd.f32 %v2112, %v2400
      %v2433 = vadd.f32 %v2113, %v2401
      %v2434 = vadd.f32 %v2114, %v2402
      %v2435 = vadd.f32 %v2115, %v2403
      %v2436 = vadd.f32 %v2116, %v2404
      %v2437 = vadd.f32 %v2117, %v2405
      %v2438 = vadd.f32 %v2118, %v2406
      %v2439 = vadd.f32 %v2119, %v2407
      %v2440 = vadd.f32 %v2120, %v2408
      %v2441 = vadd.f32 %v2121, %v2409
      %v2442 = vadd.f32 %v2122, %v2410
      %v2443 = vadd.f32 %v2123, %v2411
      %v2444 = vadd.f32 %v2124, %v2412
      %v2445 = vadd.f32 %v2125, %v2413
      %2446 = vset.pattern.permute.xlu0 4
      %2447 = vperm.xlu0 %2446, %v1134
      %v2448 = vpop.permute.xlu0 %2447
      %2450 = vset.pattern.permute.xlu0 4
      %2451 = vperm.xlu0 %2450, %v1135
      %v2452 = vpop.permute.xlu0 %2451
      %2454 = vset.pattern.permute.xlu0 4
      %2455 = vperm.xlu0 %2454, %v1136
      %v2456 = vpop.permute.xlu0 %2455
      %2458 = vset.pattern.permute.xlu0 4
      %2459 = vperm.xlu0 %2458, %v1137
      %v2460 = vpop.permute.xlu0 %2459
      %2462 = vset.pattern.permute.xlu0 4
      %2463 = vperm.xlu0 %2462, %v1138
      %v2464 = vpop.permute.xlu0 %2463
      %2466 = vset.pattern.permute.xlu0 4
      %2467 = vperm.xlu0 %2466, %v1139
      %v2468 = vpop.permute.xlu0 %2467
      %2470 = vset.pattern.permute.xlu0 4
      %2471 = vperm.xlu0 %2470, %v1140
      %v2472 = vpop.permute.xlu0 %2471
      %2474 = vset.pattern.permute.xlu0 4
      %2475 = vperm.xlu0 %2474, %v1141
      %v2476 = vpop.permute.xlu0 %2475
      %2478 = vset.pattern.permute.xlu0 4
      %2479 = vperm.xlu0 %2478, %v1142
      %v2480 = vpop.permute.xlu0 %2479
      %2482 = vset.pattern.permute.xlu0 4
      %2483 = vperm.xlu0 %2482, %v1143
      %v2484 = vpop.permute.xlu0 %2483
      %2486 = vset.pattern.permute.xlu0 4
      %2487 = vperm.xlu0 %2486, %v1144
      %v2488 = vpop.permute.xlu0 %2487
      %2490 = vset.pattern.permute.xlu0 4
      %2491 = vperm.xlu0 %2490, %v1145
      %v2492 = vpop.permute.xlu0 %2491
      %2494 = vset.pattern.permute.xlu0 4
      %2495 = vperm.xlu0 %2494, %v1146
      %v2496 = vpop.permute.xlu0 %2495
      %2498 = vset.pattern.permute.xlu0 4
      %2499 = vperm.xlu0 %2498, %v1147
      %v2500 = vpop.permute.xlu0 %2499
      %2502 = vset.pattern.permute.xlu0 4
      %2503 = vperm.xlu0 %2502, %v1148
      %v2504 = vpop.permute.xlu0 %2503
      %2506 = vset.pattern.permute.xlu0 4
      %2507 = vperm.xlu0 %2506, %v1149
      %v2508 = vpop.permute.xlu0 %2507
      %2510 = vset.pattern.permute.xlu0 4
      %2511 = vperm.xlu0 %2510, %v1150
      %v2512 = vpop.permute.xlu0 %2511
      %2514 = vset.pattern.permute.xlu0 4
      %2515 = vperm.xlu0 %2514, %v1151
      %v2516 = vpop.permute.xlu0 %2515
      %2518 = vset.pattern.permute.xlu0 4
      %2519 = vperm.xlu0 %2518, %v1152
      %v2520 = vpop.permute.xlu0 %2519
      %2522 = vset.pattern.permute.xlu0 4
      %2523 = vperm.xlu0 %2522, %v1153
      %v2524 = vpop.permute.xlu0 %2523
      %2526 = vset.pattern.permute.xlu0 4
      %2527 = vperm.xlu0 %2526, %v1154
      %v2528 = vpop.permute.xlu0 %2527
      %2530 = vset.pattern.permute.xlu0 4
      %2531 = vperm.xlu0 %2530, %v1155
      %v2532 = vpop.permute.xlu0 %2531
      %2534 = vset.pattern.permute.xlu0 4
      %2535 = vperm.xlu0 %2534, %v1156
      %v2536 = vpop.permute.xlu0 %2535
      %2538 = vset.pattern.permute.xlu0 4
      %2539 = vperm.xlu0 %2538, %v1157
      %v2540 = vpop.permute.xlu0 %2539
      %2542 = vset.pattern.permute.xlu0 4
      %2543 = vperm.xlu0 %2542, %v1158
      %v2544 = vpop.permute.xlu0 %2543
      %2546 = vset.pattern.permute.xlu0 4
      %2547 = vperm.xlu0 %2546, %v1159
      %v2548 = vpop.permute.xlu0 %2547
      %2550 = vset.pattern.permute.xlu0 4
      %2551 = vperm.xlu0 %2550, %v1160
      %v2552 = vpop.permute.xlu0 %2551
      %2554 = vset.pattern.permute.xlu0 4
      %2555 = vperm.xlu0 %2554, %v1161
      %v2556 = vpop.permute.xlu0 %2555
      %2558 = vset.pattern.permute.xlu0 4
      %2559 = vperm.xlu0 %2558, %v1162
      %v2560 = vpop.permute.xlu0 %2559
      %2562 = vset.pattern.permute.xlu0 4
      %2563 = vperm.xlu0 %2562, %v1163
      %v2564 = vpop.permute.xlu0 %2563
      %2566 = vset.pattern.permute.xlu0 4
      %2567 = vperm.xlu0 %2566, %v1164
      %v2568 = vpop.permute.xlu0 %2567
      %2570 = vset.pattern.permute.xlu0 4
      %2571 = vperm.xlu0 %2570, %v1165
      %v2572 = vpop.permute.xlu0 %2571
      %v2574 = vlaneseq
      %v2575 = vshrl.u32 %v2574, 7
      %v2576 = vsub.s32 4, %v2575
      %v2577 = vrot.slane %v1102, %v2576
      %v2578 = vlaneseq
      %v2579 = vshrl.u32 %v2578, 7
      %v2580 = vsub.s32 4, %v2579
      %v2581 = vrot.slane %v1103, %v2580
      %v2582 = vlaneseq
      %v2583 = vshrl.u32 %v2582, 7
      %v2584 = vsub.s32 4, %v2583
      %v2585 = vrot.slane %v1104, %v2584
      %v2586 = vlaneseq
      %v2587 = vshrl.u32 %v2586, 7
      %v2588 = vsub.s32 4, %v2587
      %v2589 = vrot.slane %v1105, %v2588
      %v2590 = vlaneseq
      %v2591 = vshrl.u32 %v2590, 7
      %v2592 = vsub.s32 4, %v2591
      %v2593 = vrot.slane %v1106, %v2592
      %v2594 = vlaneseq
      %v2595 = vshrl.u32 %v2594, 7
      %v2596 = vsub.s32 4, %v2595
      %v2597 = vrot.slane %v1107, %v2596
      %v2598 = vlaneseq
      %v2599 = vshrl.u32 %v2598, 7
      %v2600 = vsub.s32 4, %v2599
      %v2601 = vrot.slane %v1108, %v2600
      %v2602 = vlaneseq
      %v2603 = vshrl.u32 %v2602, 7
      %v2604 = vsub.s32 4, %v2603
      %v2605 = vrot.slane %v1109, %v2604
      %v2606 = vlaneseq
      %v2607 = vshrl.u32 %v2606, 7
      %v2608 = vsub.s32 4, %v2607
      %v2609 = vrot.slane %v1110, %v2608
      %v2610 = vlaneseq
      %v2611 = vshrl.u32 %v2610, 7
      %v2612 = vsub.s32 4, %v2611
      %v2613 = vrot.slane %v1111, %v2612
      %v2614 = vlaneseq
      %v2615 = vshrl.u32 %v2614, 7
      %v2616 = vsub.s32 4, %v2615
      %v2617 = vrot.slane %v1112, %v2616
      %v2618 = vlaneseq
      %v2619 = vshrl.u32 %v2618, 7
      %v2620 = vsub.s32 4, %v2619
      %v2621 = vrot.slane %v1113, %v2620
      %v2622 = vlaneseq
      %v2623 = vshrl.u32 %v2622, 7
      %v2624 = vsub.s32 4, %v2623
      %v2625 = vrot.slane %v1114, %v2624
      %v2626 = vlaneseq
      %v2627 = vshrl.u32 %v2626, 7
      %v2628 = vsub.s32 4, %v2627
      %v2629 = vrot.slane %v1115, %v2628
      %v2630 = vlaneseq
      %v2631 = vshrl.u32 %v2630, 7
      %v2632 = vsub.s32 4, %v2631
      %v2633 = vrot.slane %v1116, %v2632
      %v2634 = vlaneseq
      %v2635 = vshrl.u32 %v2634, 7
      %v2636 = vsub.s32 4, %v2635
      %v2637 = vrot.slane %v1117, %v2636
      %v2638 = vlaneseq
      %v2639 = vshrl.u32 %v2638, 7
      %v2640 = vsub.s32 4, %v2639
      %v2641 = vrot.slane %v1118, %v2640
      %v2642 = vlaneseq
      %v2643 = vshrl.u32 %v2642, 7
      %v2644 = vsub.s32 4, %v2643
      %v2645 = vrot.slane %v1119, %v2644
      %v2646 = vlaneseq
      %v2647 = vshrl.u32 %v2646, 7
      %v2648 = vsub.s32 4, %v2647
      %v2649 = vrot.slane %v1120, %v2648
      %v2650 = vlaneseq
      %v2651 = vshrl.u32 %v2650, 7
      %v2652 = vsub.s32 4, %v2651
      %v2653 = vrot.slane %v1121, %v2652
      %v2654 = vlaneseq
      %v2655 = vshrl.u32 %v2654, 7
      %v2656 = vsub.s32 4, %v2655
      %v2657 = vrot.slane %v1122, %v2656
      %v2658 = vlaneseq
      %v2659 = vshrl.u32 %v2658, 7
      %v2660 = vsub.s32 4, %v2659
      %v2661 = vrot.slane %v1123, %v2660
      %v2662 = vlaneseq
      %v2663 = vshrl.u32 %v2662, 7
      %v2664 = vsub.s32 4, %v2663
      %v2665 = vrot.slane %v1124, %v2664
      %v2666 = vlaneseq
      %v2667 = vshrl.u32 %v2666, 7
      %v2668 = vsub.s32 4, %v2667
      %v2669 = vrot.slane %v1125, %v2668
      %v2670 = vlaneseq
      %v2671 = vshrl.u32 %v2670, 7
      %v2672 = vsub.s32 4, %v2671
      %v2673 = vrot.slane %v1126, %v2672
      %v2674 = vlaneseq
      %v2675 = vshrl.u32 %v2674, 7
      %v2676 = vsub.s32 4, %v2675
      %v2677 = vrot.slane %v1127, %v2676
      %v2678 = vlaneseq
      %v2679 = vshrl.u32 %v2678, 7
      %v2680 = vsub.s32 4, %v2679
      %v2681 = vrot.slane %v1128, %v2680
      %v2682 = vlaneseq
      %v2683 = vshrl.u32 %v2682, 7
      %v2684 = vsub.s32 4, %v2683
      %v2685 = vrot.slane %v1129, %v2684
      %v2686 = vlaneseq
      %v2687 = vshrl.u32 %v2686, 7
      %v2688 = vsub.s32 4, %v2687
      %v2689 = vrot.slane %v1130, %v2688
      %v2690 = vlaneseq
      %v2691 = vshrl.u32 %v2690, 7
      %v2692 = vsub.s32 4, %v2691
      %v2693 = vrot.slane %v1131, %v2692
      %v2694 = vlaneseq
      %v2695 = vshrl.u32 %v2694, 7
      %v2696 = vsub.s32 4, %v2695
      %v2697 = vrot.slane %v1132, %v2696
      %v2698 = vlaneseq
      %v2699 = vshrl.u32 %v2698, 7
      %v2700 = vsub.s32 4, %v2699
      %v2701 = vrot.slane %v1133, %v2700
      %v2702 = vmul.f32 %v2448, %v2577
      %v2703 = vmul.f32 %v2452, %v2581
      %v2704 = vmul.f32 %v2456, %v2585
      %v2705 = vmul.f32 %v2460, %v2589
      %v2706 = vmul.f32 %v2464, %v2593
      %v2707 = vmul.f32 %v2468, %v2597
      %v2708 = vmul.f32 %v2472, %v2601
      %v2709 = vmul.f32 %v2476, %v2605
      %v2710 = vmul.f32 %v2480, %v2609
      %v2711 = vmul.f32 %v2484, %v2613
      %v2712 = vmul.f32 %v2488, %v2617
      %v2713 = vmul.f32 %v2492, %v2621
      %v2714 = vmul.f32 %v2496, %v2625
      %v2715 = vmul.f32 %v2500, %v2629
      %v2716 = vmul.f32 %v2504, %v2633
      %v2717 = vmul.f32 %v2508, %v2637
      %v2718 = vmul.f32 %v2512, %v2641
      %v2719 = vmul.f32 %v2516, %v2645
      %v2720 = vmul.f32 %v2520, %v2649
      %v2721 = vmul.f32 %v2524, %v2653
      %v2722 = vmul.f32 %v2528, %v2657
      %v2723 = vmul.f32 %v2532, %v2661
      %v2724 = vmul.f32 %v2536, %v2665
      %v2725 = vmul.f32 %v2540, %v2669
      %v2726 = vmul.f32 %v2544, %v2673
      %v2727 = vmul.f32 %v2548, %v2677
      %v2728 = vmul.f32 %v2552, %v2681
      %v2729 = vmul.f32 %v2556, %v2685
      %v2730 = vmul.f32 %v2560, %v2689
      %v2731 = vmul.f32 %v2564, %v2693
      %v2732 = vmul.f32 %v2568, %v2697
      %v2733 = vmul.f32 %v2572, %v2701
      %v2734 = vadd.f32 %v2414, %v2702
      %v2735 = vadd.f32 %v2415, %v2703
      %v2736 = vadd.f32 %v2416, %v2704
      %v2737 = vadd.f32 %v2417, %v2705
      %v2738 = vadd.f32 %v2418, %v2706
      %v2739 = vadd.f32 %v2419, %v2707
      %v2740 = vadd.f32 %v2420, %v2708
      %v2741 = vadd.f32 %v2421, %v2709
      %v2742 = vadd.f32 %v2422, %v2710
      %v2743 = vadd.f32 %v2423, %v2711
      %v2744 = vadd.f32 %v2424, %v2712
      %v2745 = vadd.f32 %v2425, %v2713
      %v2746 = vadd.f32 %v2426, %v2714
      %v2747 = vadd.f32 %v2427, %v2715
      %v2748 = vadd.f32 %v2428, %v2716
      %v2749 = vadd.f32 %v2429, %v2717
      %v2750 = vadd.f32 %v2430, %v2718
      %v2751 = vadd.f32 %v2431, %v2719
      %v2752 = vadd.f32 %v2432, %v2720
      %v2753 = vadd.f32 %v2433, %v2721
      %v2754 = vadd.f32 %v2434, %v2722
      %v2755 = vadd.f32 %v2435, %v2723
      %v2756 = vadd.f32 %v2436, %v2724
      %v2757 = vadd.f32 %v2437, %v2725
      %v2758 = vadd.f32 %v2438, %v2726
      %v2759 = vadd.f32 %v2439, %v2727
      %v2760 = vadd.f32 %v2440, %v2728
      %v2761 = vadd.f32 %v2441, %v2729
      %v2762 = vadd.f32 %v2442, %v2730
      %v2763 = vadd.f32 %v2443, %v2731
      %v2764 = vadd.f32 %v2444, %v2732
      %v2765 = vadd.f32 %v2445, %v2733
      %2766 = vset.pattern.permute.xlu0 5
      %2767 = vperm.xlu0 %2766, %v1134
      %v2768 = vpop.permute.xlu0 %2767
      %2770 = vset.pattern.permute.xlu0 5
      %2771 = vperm.xlu0 %2770, %v1135
      %v2772 = vpop.permute.xlu0 %2771
      %2774 = vset.pattern.permute.xlu0 5
      %2775 = vperm.xlu0 %2774, %v1136
      %v2776 = vpop.permute.xlu0 %2775
      %2778 = vset.pattern.permute.xlu0 5
      %2779 = vperm.xlu0 %2778, %v1137
      %v2780 = vpop.permute.xlu0 %2779
      %2782 = vset.pattern.permute.xlu0 5
      %2783 = vperm.xlu0 %2782, %v1138
      %v2784 = vpop.permute.xlu0 %2783
      %2786 = vset.pattern.permute.xlu0 5
      %2787 = vperm.xlu0 %2786, %v1139
      %v2788 = vpop.permute.xlu0 %2787
      %2790 = vset.pattern.permute.xlu0 5
      %2791 = vperm.xlu0 %2790, %v1140
      %v2792 = vpop.permute.xlu0 %2791
      %2794 = vset.pattern.permute.xlu0 5
      %2795 = vperm.xlu0 %2794, %v1141
      %v2796 = vpop.permute.xlu0 %2795
      %2798 = vset.pattern.permute.xlu0 5
      %2799 = vperm.xlu0 %2798, %v1142
      %v2800 = vpop.permute.xlu0 %2799
      %2802 = vset.pattern.permute.xlu0 5
      %2803 = vperm.xlu0 %2802, %v1143
      %v2804 = vpop.permute.xlu0 %2803
      %2806 = vset.pattern.permute.xlu0 5
      %2807 = vperm.xlu0 %2806, %v1144
      %v2808 = vpop.permute.xlu0 %2807
      %2810 = vset.pattern.permute.xlu0 5
      %2811 = vperm.xlu0 %2810, %v1145
      %v2812 = vpop.permute.xlu0 %2811
      %2814 = vset.pattern.permute.xlu0 5
      %2815 = vperm.xlu0 %2814, %v1146
      %v2816 = vpop.permute.xlu0 %2815
      %2818 = vset.pattern.permute.xlu0 5
      %2819 = vperm.xlu0 %2818, %v1147
      %v2820 = vpop.permute.xlu0 %2819
      %2822 = vset.pattern.permute.xlu0 5
      %2823 = vperm.xlu0 %2822, %v1148
      %v2824 = vpop.permute.xlu0 %2823
      %2826 = vset.pattern.permute.xlu0 5
      %2827 = vperm.xlu0 %2826, %v1149
      %v2828 = vpop.permute.xlu0 %2827
      %2830 = vset.pattern.permute.xlu0 5
      %2831 = vperm.xlu0 %2830, %v1150
      %v2832 = vpop.permute.xlu0 %2831
      %2834 = vset.pattern.permute.xlu0 5
      %2835 = vperm.xlu0 %2834, %v1151
      %v2836 = vpop.permute.xlu0 %2835
      %2838 = vset.pattern.permute.xlu0 5
      %2839 = vperm.xlu0 %2838, %v1152
      %v2840 = vpop.permute.xlu0 %2839
      %2842 = vset.pattern.permute.xlu0 5
      %2843 = vperm.xlu0 %2842, %v1153
      %v2844 = vpop.permute.xlu0 %2843
      %2846 = vset.pattern.permute.xlu0 5
      %2847 = vperm.xlu0 %2846, %v1154
      %v2848 = vpop.permute.xlu0 %2847
      %2850 = vset.pattern.permute.xlu0 5
      %2851 = vperm.xlu0 %2850, %v1155
      %v2852 = vpop.permute.xlu0 %2851
      %2854 = vset.pattern.permute.xlu0 5
      %2855 = vperm.xlu0 %2854, %v1156
      %v2856 = vpop.permute.xlu0 %2855
      %2858 = vset.pattern.permute.xlu0 5
      %2859 = vperm.xlu0 %2858, %v1157
      %v2860 = vpop.permute.xlu0 %2859
      %2862 = vset.pattern.permute.xlu0 5
      %2863 = vperm.xlu0 %2862, %v1158
      %v2864 = vpop.permute.xlu0 %2863
      %2866 = vset.pattern.permute.xlu0 5
      %2867 = vperm.xlu0 %2866, %v1159
      %v2868 = vpop.permute.xlu0 %2867
      %2870 = vset.pattern.permute.xlu0 5
      %2871 = vperm.xlu0 %2870, %v1160
      %v2872 = vpop.permute.xlu0 %2871
      %2874 = vset.pattern.permute.xlu0 5
      %2875 = vperm.xlu0 %2874, %v1161
      %v2876 = vpop.permute.xlu0 %2875
      %2878 = vset.pattern.permute.xlu0 5
      %2879 = vperm.xlu0 %2878, %v1162
      %v2880 = vpop.permute.xlu0 %2879
      %2882 = vset.pattern.permute.xlu0 5
      %2883 = vperm.xlu0 %2882, %v1163
      %v2884 = vpop.permute.xlu0 %2883
      %2886 = vset.pattern.permute.xlu0 5
      %2887 = vperm.xlu0 %2886, %v1164
      %v2888 = vpop.permute.xlu0 %2887
      %2890 = vset.pattern.permute.xlu0 5
      %2891 = vperm.xlu0 %2890, %v1165
      %v2892 = vpop.permute.xlu0 %2891
      %v2894 = vlaneseq
      %v2895 = vshrl.u32 %v2894, 7
      %v2896 = vsub.s32 5, %v2895
      %v2897 = vrot.slane %v1102, %v2896
      %v2898 = vlaneseq
      %v2899 = vshrl.u32 %v2898, 7
      %v2900 = vsub.s32 5, %v2899
      %v2901 = vrot.slane %v1103, %v2900
      %v2902 = vlaneseq
      %v2903 = vshrl.u32 %v2902, 7
      %v2904 = vsub.s32 5, %v2903
      %v2905 = vrot.slane %v1104, %v2904
      %v2906 = vlaneseq
      %v2907 = vshrl.u32 %v2906, 7
      %v2908 = vsub.s32 5, %v2907
      %v2909 = vrot.slane %v1105, %v2908
      %v2910 = vlaneseq
      %v2911 = vshrl.u32 %v2910, 7
      %v2912 = vsub.s32 5, %v2911
      %v2913 = vrot.slane %v1106, %v2912
      %v2914 = vlaneseq
      %v2915 = vshrl.u32 %v2914, 7
      %v2916 = vsub.s32 5, %v2915
      %v2917 = vrot.slane %v1107, %v2916
      %v2918 = vlaneseq
      %v2919 = vshrl.u32 %v2918, 7
      %v2920 = vsub.s32 5, %v2919
      %v2921 = vrot.slane %v1108, %v2920
      %v2922 = vlaneseq
      %v2923 = vshrl.u32 %v2922, 7
      %v2924 = vsub.s32 5, %v2923
      %v2925 = vrot.slane %v1109, %v2924
      %v2926 = vlaneseq
      %v2927 = vshrl.u32 %v2926, 7
      %v2928 = vsub.s32 5, %v2927
      %v2929 = vrot.slane %v1110, %v2928
      %v2930 = vlaneseq
      %v2931 = vshrl.u32 %v2930, 7
      %v2932 = vsub.s32 5, %v2931
      %v2933 = vrot.slane %v1111, %v2932
      %v2934 = vlaneseq
      %v2935 = vshrl.u32 %v2934, 7
      %v2936 = vsub.s32 5, %v2935
      %v2937 = vrot.slane %v1112, %v2936
      %v2938 = vlaneseq
      %v2939 = vshrl.u32 %v2938, 7
      %v2940 = vsub.s32 5, %v2939
      %v2941 = vrot.slane %v1113, %v2940
      %v2942 = vlaneseq
      %v2943 = vshrl.u32 %v2942, 7
      %v2944 = vsub.s32 5, %v2943
      %v2945 = vrot.slane %v1114, %v2944
      %v2946 = vlaneseq
      %v2947 = vshrl.u32 %v2946, 7
      %v2948 = vsub.s32 5, %v2947
      %v2949 = vrot.slane %v1115, %v2948
      %v2950 = vlaneseq
      %v2951 = vshrl.u32 %v2950, 7
      %v2952 = vsub.s32 5, %v2951
      %v2953 = vrot.slane %v1116, %v2952
      %v2954 = vlaneseq
      %v2955 = vshrl.u32 %v2954, 7
      %v2956 = vsub.s32 5, %v2955
      %v2957 = vrot.slane %v1117, %v2956
      %v2958 = vlaneseq
      %v2959 = vshrl.u32 %v2958, 7
      %v2960 = vsub.s32 5, %v2959
      %v2961 = vrot.slane %v1118, %v2960
      %v2962 = vlaneseq
      %v2963 = vshrl.u32 %v2962, 7
      %v2964 = vsub.s32 5, %v2963
      %v2965 = vrot.slane %v1119, %v2964
      %v2966 = vlaneseq
      %v2967 = vshrl.u32 %v2966, 7
      %v2968 = vsub.s32 5, %v2967
      %v2969 = vrot.slane %v1120, %v2968
      %v2970 = vlaneseq
      %v2971 = vshrl.u32 %v2970, 7
      %v2972 = vsub.s32 5, %v2971
      %v2973 = vrot.slane %v1121, %v2972
      %v2974 = vlaneseq
      %v2975 = vshrl.u32 %v2974, 7
      %v2976 = vsub.s32 5, %v2975
      %v2977 = vrot.slane %v1122, %v2976
      %v2978 = vlaneseq
      %v2979 = vshrl.u32 %v2978, 7
      %v2980 = vsub.s32 5, %v2979
      %v2981 = vrot.slane %v1123, %v2980
      %v2982 = vlaneseq
      %v2983 = vshrl.u32 %v2982, 7
      %v2984 = vsub.s32 5, %v2983
      %v2985 = vrot.slane %v1124, %v2984
      %v2986 = vlaneseq
      %v2987 = vshrl.u32 %v2986, 7
      %v2988 = vsub.s32 5, %v2987
      %v2989 = vrot.slane %v1125, %v2988
      %v2990 = vlaneseq
      %v2991 = vshrl.u32 %v2990, 7
      %v2992 = vsub.s32 5, %v2991
      %v2993 = vrot.slane %v1126, %v2992
      %v2994 = vlaneseq
      %v2995 = vshrl.u32 %v2994, 7
      %v2996 = vsub.s32 5, %v2995
      %v2997 = vrot.slane %v1127, %v2996
      %v2998 = vlaneseq
      %v2999 = vshrl.u32 %v2998, 7
      %v3000 = vsub.s32 5, %v2999
      %v3001 = vrot.slane %v1128, %v3000
      %v3002 = vlaneseq
      %v3003 = vshrl.u32 %v3002, 7
      %v3004 = vsub.s32 5, %v3003
      %v3005 = vrot.slane %v1129, %v3004
      %v3006 = vlaneseq
      %v3007 = vshrl.u32 %v3006, 7
      %v3008 = vsub.s32 5, %v3007
      %v3009 = vrot.slane %v1130, %v3008
      %v3010 = vlaneseq
      %v3011 = vshrl.u32 %v3010, 7
      %v3012 = vsub.s32 5, %v3011
      %v3013 = vrot.slane %v1131, %v3012
      %v3014 = vlaneseq
      %v3015 = vshrl.u32 %v3014, 7
      %v3016 = vsub.s32 5, %v3015
      %v3017 = vrot.slane %v1132, %v3016
      %v3018 = vlaneseq
      %v3019 = vshrl.u32 %v3018, 7
      %v3020 = vsub.s32 5, %v3019
      %v3021 = vrot.slane %v1133, %v3020
      %v3022 = vmul.f32 %v2768, %v2897
      %v3023 = vmul.f32 %v2772, %v2901
      %v3024 = vmul.f32 %v2776, %v2905
      %v3025 = vmul.f32 %v2780, %v2909
      %v3026 = vmul.f32 %v2784, %v2913
      %v3027 = vmul.f32 %v2788, %v2917
      %v3028 = vmul.f32 %v2792, %v2921
      %v3029 = vmul.f32 %v2796, %v2925
      %v3030 = vmul.f32 %v2800, %v2929
      %v3031 = vmul.f32 %v2804, %v2933
      %v3032 = vmul.f32 %v2808, %v2937
      %v3033 = vmul.f32 %v2812, %v2941
      %v3034 = vmul.f32 %v2816, %v2945
      %v3035 = vmul.f32 %v2820, %v2949
      %v3036 = vmul.f32 %v2824, %v2953
      %v3037 = vmul.f32 %v2828, %v2957
      %v3038 = vmul.f32 %v2832, %v2961
      %v3039 = vmul.f32 %v2836, %v2965
      %v3040 = vmul.f32 %v2840, %v2969
      %v3041 = vmul.f32 %v2844, %v2973
      %v3042 = vmul.f32 %v2848, %v2977
      %v3043 = vmul.f32 %v2852, %v2981
      %v3044 = vmul.f32 %v2856, %v2985
      %v3045 = vmul.f32 %v2860, %v2989
      %v3046 = vmul.f32 %v2864, %v2993
      %v3047 = vmul.f32 %v2868, %v2997
      %v3048 = vmul.f32 %v2872, %v3001
      %v3049 = vmul.f32 %v2876, %v3005
      %v3050 = vmul.f32 %v2880, %v3009
      %v3051 = vmul.f32 %v2884, %v3013
      %v3052 = vmul.f32 %v2888, %v3017
      %v3053 = vmul.f32 %v2892, %v3021
      %v3054 = vadd.f32 %v2734, %v3022
      %v3055 = vadd.f32 %v2735, %v3023
      %v3056 = vadd.f32 %v2736, %v3024
      %v3057 = vadd.f32 %v2737, %v3025
      %v3058 = vadd.f32 %v2738, %v3026
      %v3059 = vadd.f32 %v2739, %v3027
      %v3060 = vadd.f32 %v2740, %v3028
      %v3061 = vadd.f32 %v2741, %v3029
      %v3062 = vadd.f32 %v2742, %v3030
      %v3063 = vadd.f32 %v2743, %v3031
      %v3064 = vadd.f32 %v2744, %v3032
      %v3065 = vadd.f32 %v2745, %v3033
      %v3066 = vadd.f32 %v2746, %v3034
      %v3067 = vadd.f32 %v2747, %v3035
      %v3068 = vadd.f32 %v2748, %v3036
      %v3069 = vadd.f32 %v2749, %v3037
      %v3070 = vadd.f32 %v2750, %v3038
      %v3071 = vadd.f32 %v2751, %v3039
      %v3072 = vadd.f32 %v2752, %v3040
      %v3073 = vadd.f32 %v2753, %v3041
      %v3074 = vadd.f32 %v2754, %v3042
      %v3075 = vadd.f32 %v2755, %v3043
      %v3076 = vadd.f32 %v2756, %v3044
      %v3077 = vadd.f32 %v2757, %v3045
      %v3078 = vadd.f32 %v2758, %v3046
      %v3079 = vadd.f32 %v2759, %v3047
      %v3080 = vadd.f32 %v2760, %v3048
      %v3081 = vadd.f32 %v2761, %v3049
      %v3082 = vadd.f32 %v2762, %v3050
      %v3083 = vadd.f32 %v2763, %v3051
      %v3084 = vadd.f32 %v2764, %v3052
      %v3085 = vadd.f32 %v2765, %v3053
      %3086 = vset.pattern.permute.xlu0 6
      %3087 = vperm.xlu0 %3086, %v1134
      %v3088 = vpop.permute.xlu0 %3087
      %3090 = vset.pattern.permute.xlu0 6
      %3091 = vperm.xlu0 %3090, %v1135
      %v3092 = vpop.permute.xlu0 %3091
      %3094 = vset.pattern.permute.xlu0 6
      %3095 = vperm.xlu0 %3094, %v1136
      %v3096 = vpop.permute.xlu0 %3095
      %3098 = vset.pattern.permute.xlu0 6
      %3099 = vperm.xlu0 %3098, %v1137
      %v3100 = vpop.permute.xlu0 %3099
      %3102 = vset.pattern.permute.xlu0 6
      %3103 = vperm.xlu0 %3102, %v1138
      %v3104 = vpop.permute.xlu0 %3103
      %3106 = vset.pattern.permute.xlu0 6
      %3107 = vperm.xlu0 %3106, %v1139
      %v3108 = vpop.permute.xlu0 %3107
      %3110 = vset.pattern.permute.xlu0 6
      %3111 = vperm.xlu0 %3110, %v1140
      %v3112 = vpop.permute.xlu0 %3111
      %3114 = vset.pattern.permute.xlu0 6
      %3115 = vperm.xlu0 %3114, %v1141
      %v3116 = vpop.permute.xlu0 %3115
      %3118 = vset.pattern.permute.xlu0 6
      %3119 = vperm.xlu0 %3118, %v1142
      %v3120 = vpop.permute.xlu0 %3119
      %3122 = vset.pattern.permute.xlu0 6
      %3123 = vperm.xlu0 %3122, %v1143
      %v3124 = vpop.permute.xlu0 %3123
      %3126 = vset.pattern.permute.xlu0 6
      %3127 = vperm.xlu0 %3126, %v1144
      %v3128 = vpop.permute.xlu0 %3127
      %3130 = vset.pattern.permute.xlu0 6
      %3131 = vperm.xlu0 %3130, %v1145
      %v3132 = vpop.permute.xlu0 %3131
      %3134 = vset.pattern.permute.xlu0 6
      %3135 = vperm.xlu0 %3134, %v1146
      %v3136 = vpop.permute.xlu0 %3135
      %3138 = vset.pattern.permute.xlu0 6
      %3139 = vperm.xlu0 %3138, %v1147
      %v3140 = vpop.permute.xlu0 %3139
      %3142 = vset.pattern.permute.xlu0 6
      %3143 = vperm.xlu0 %3142, %v1148
      %v3144 = vpop.permute.xlu0 %3143
      %3146 = vset.pattern.permute.xlu0 6
      %3147 = vperm.xlu0 %3146, %v1149
      %v3148 = vpop.permute.xlu0 %3147
      %3150 = vset.pattern.permute.xlu0 6
      %3151 = vperm.xlu0 %3150, %v1150
      %v3152 = vpop.permute.xlu0 %3151
      %3154 = vset.pattern.permute.xlu0 6
      %3155 = vperm.xlu0 %3154, %v1151
      %v3156 = vpop.permute.xlu0 %3155
      %3158 = vset.pattern.permute.xlu0 6
      %3159 = vperm.xlu0 %3158, %v1152
      %v3160 = vpop.permute.xlu0 %3159
      %3162 = vset.pattern.permute.xlu0 6
      %3163 = vperm.xlu0 %3162, %v1153
      %v3164 = vpop.permute.xlu0 %3163
      %3166 = vset.pattern.permute.xlu0 6
      %3167 = vperm.xlu0 %3166, %v1154
      %v3168 = vpop.permute.xlu0 %3167
      %3170 = vset.pattern.permute.xlu0 6
      %3171 = vperm.xlu0 %3170, %v1155
      %v3172 = vpop.permute.xlu0 %3171
      %3174 = vset.pattern.permute.xlu0 6
      %3175 = vperm.xlu0 %3174, %v1156
      %v3176 = vpop.permute.xlu0 %3175
      %3178 = vset.pattern.permute.xlu0 6
      %3179 = vperm.xlu0 %3178, %v1157
      %v3180 = vpop.permute.xlu0 %3179
      %3182 = vset.pattern.permute.xlu0 6
      %3183 = vperm.xlu0 %3182, %v1158
      %v3184 = vpop.permute.xlu0 %3183
      %3186 = vset.pattern.permute.xlu0 6
      %3187 = vperm.xlu0 %3186, %v1159
      %v3188 = vpop.permute.xlu0 %3187
      %3190 = vset.pattern.permute.xlu0 6
      %3191 = vperm.xlu0 %3190, %v1160
      %v3192 = vpop.permute.xlu0 %3191
      %3194 = vset.pattern.permute.xlu0 6
      %3195 = vperm.xlu0 %3194, %v1161
      %v3196 = vpop.permute.xlu0 %3195
      %3198 = vset.pattern.permute.xlu0 6
      %3199 = vperm.xlu0 %3198, %v1162
      %v3200 = vpop.permute.xlu0 %3199
      %3202 = vset.pattern.permute.xlu0 6
      %3203 = vperm.xlu0 %3202, %v1163
      %v3204 = vpop.permute.xlu0 %3203
      %3206 = vset.pattern.permute.xlu0 6
      %3207 = vperm.xlu0 %3206, %v1164
      %v3208 = vpop.permute.xlu0 %3207
      %3210 = vset.pattern.permute.xlu0 6
      %3211 = vperm.xlu0 %3210, %v1165
      %v3212 = vpop.permute.xlu0 %3211
      %v3214 = vlaneseq
      %v3215 = vshrl.u32 %v3214, 7
      %v3216 = vsub.s32 6, %v3215
      %v3217 = vrot.slane %v1102, %v3216
      %v3218 = vlaneseq
      %v3219 = vshrl.u32 %v3218, 7
      %v3220 = vsub.s32 6, %v3219
      %v3221 = vrot.slane %v1103, %v3220
      %v3222 = vlaneseq
      %v3223 = vshrl.u32 %v3222, 7
      %v3224 = vsub.s32 6, %v3223
      %v3225 = vrot.slane %v1104, %v3224
      %v3226 = vlaneseq
      %v3227 = vshrl.u32 %v3226, 7
      %v3228 = vsub.s32 6, %v3227
      %v3229 = vrot.slane %v1105, %v3228
      %v3230 = vlaneseq
      %v3231 = vshrl.u32 %v3230, 7
      %v3232 = vsub.s32 6, %v3231
      %v3233 = vrot.slane %v1106, %v3232
      %v3234 = vlaneseq
      %v3235 = vshrl.u32 %v3234, 7
      %v3236 = vsub.s32 6, %v3235
      %v3237 = vrot.slane %v1107, %v3236
      %v3238 = vlaneseq
      %v3239 = vshrl.u32 %v3238, 7
      %v3240 = vsub.s32 6, %v3239
      %v3241 = vrot.slane %v1108, %v3240
      %v3242 = vlaneseq
      %v3243 = vshrl.u32 %v3242, 7
      %v3244 = vsub.s32 6, %v3243
      %v3245 = vrot.slane %v1109, %v3244
      %v3246 = vlaneseq
      %v3247 = vshrl.u32 %v3246, 7
      %v3248 = vsub.s32 6, %v3247
      %v3249 = vrot.slane %v1110, %v3248
      %v3250 = vlaneseq
      %v3251 = vshrl.u32 %v3250, 7
      %v3252 = vsub.s32 6, %v3251
      %v3253 = vrot.slane %v1111, %v3252
      %v3254 = vlaneseq
      %v3255 = vshrl.u32 %v3254, 7
      %v3256 = vsub.s32 6, %v3255
      %v3257 = vrot.slane %v1112, %v3256
      %v3258 = vlaneseq
      %v3259 = vshrl.u32 %v3258, 7
      %v3260 = vsub.s32 6, %v3259
      %v3261 = vrot.slane %v1113, %v3260
      %v3262 = vlaneseq
      %v3263 = vshrl.u32 %v3262, 7
      %v3264 = vsub.s32 6, %v3263
      %v3265 = vrot.slane %v1114, %v3264
      %v3266 = vlaneseq
      %v3267 = vshrl.u32 %v3266, 7
      %v3268 = vsub.s32 6, %v3267
      %v3269 = vrot.slane %v1115, %v3268
      %v3270 = vlaneseq
      %v3271 = vshrl.u32 %v3270, 7
      %v3272 = vsub.s32 6, %v3271
      %v3273 = vrot.slane %v1116, %v3272
      %v3274 = vlaneseq
      %v3275 = vshrl.u32 %v3274, 7
      %v3276 = vsub.s32 6, %v3275
      %v3277 = vrot.slane %v1117, %v3276
      %v3278 = vlaneseq
      %v3279 = vshrl.u32 %v3278, 7
      %v3280 = vsub.s32 6, %v3279
      %v3281 = vrot.slane %v1118, %v3280
      %v3282 = vlaneseq
      %v3283 = vshrl.u32 %v3282, 7
      %v3284 = vsub.s32 6, %v3283
      %v3285 = vrot.slane %v1119, %v3284
      %v3286 = vlaneseq
      %v3287 = vshrl.u32 %v3286, 7
      %v3288 = vsub.s32 6, %v3287
      %v3289 = vrot.slane %v1120, %v3288
      %v3290 = vlaneseq
      %v3291 = vshrl.u32 %v3290, 7
      %v3292 = vsub.s32 6, %v3291
      %v3293 = vrot.slane %v1121, %v3292
      %v3294 = vlaneseq
      %v3295 = vshrl.u32 %v3294, 7
      %v3296 = vsub.s32 6, %v3295
      %v3297 = vrot.slane %v1122, %v3296
      %v3298 = vlaneseq
      %v3299 = vshrl.u32 %v3298, 7
      %v3300 = vsub.s32 6, %v3299
      %v3301 = vrot.slane %v1123, %v3300
      %v3302 = vlaneseq
      %v3303 = vshrl.u32 %v3302, 7
      %v3304 = vsub.s32 6, %v3303
      %v3305 = vrot.slane %v1124, %v3304
      %v3306 = vlaneseq
      %v3307 = vshrl.u32 %v3306, 7
      %v3308 = vsub.s32 6, %v3307
      %v3309 = vrot.slane %v1125, %v3308
      %v3310 = vlaneseq
      %v3311 = vshrl.u32 %v3310, 7
      %v3312 = vsub.s32 6, %v3311
      %v3313 = vrot.slane %v1126, %v3312
      %v3314 = vlaneseq
      %v3315 = vshrl.u32 %v3314, 7
      %v3316 = vsub.s32 6, %v3315
      %v3317 = vrot.slane %v1127, %v3316
      %v3318 = vlaneseq
      %v3319 = vshrl.u32 %v3318, 7
      %v3320 = vsub.s32 6, %v3319
      %v3321 = vrot.slane %v1128, %v3320
      %v3322 = vlaneseq
      %v3323 = vshrl.u32 %v3322, 7
      %v3324 = vsub.s32 6, %v3323
      %v3325 = vrot.slane %v1129, %v3324
      %v3326 = vlaneseq
      %v3327 = vshrl.u32 %v3326, 7
      %v3328 = vsub.s32 6, %v3327
      %v3329 = vrot.slane %v1130, %v3328
      %v3330 = vlaneseq
      %v3331 = vshrl.u32 %v3330, 7
      %v3332 = vsub.s32 6, %v3331
      %v3333 = vrot.slane %v1131, %v3332
      %v3334 = vlaneseq
      %v3335 = vshrl.u32 %v3334, 7
      %v3336 = vsub.s32 6, %v3335
      %v3337 = vrot.slane %v1132, %v3336
      %v3338 = vlaneseq
      %v3339 = vshrl.u32 %v3338, 7
      %v3340 = vsub.s32 6, %v3339
      %v3341 = vrot.slane %v1133, %v3340
      %v3342 = vmul.f32 %v3088, %v3217
      %v3343 = vmul.f32 %v3092, %v3221
      %v3344 = vmul.f32 %v3096, %v3225
      %v3345 = vmul.f32 %v3100, %v3229
      %v3346 = vmul.f32 %v3104, %v3233
      %v3347 = vmul.f32 %v3108, %v3237
      %v3348 = vmul.f32 %v3112, %v3241
      %v3349 = vmul.f32 %v3116, %v3245
      %v3350 = vmul.f32 %v3120, %v3249
      %v3351 = vmul.f32 %v3124, %v3253
      %v3352 = vmul.f32 %v3128, %v3257
      %v3353 = vmul.f32 %v3132, %v3261
      %v3354 = vmul.f32 %v3136, %v3265
      %v3355 = vmul.f32 %v3140, %v3269
      %v3356 = vmul.f32 %v3144, %v3273
      %v3357 = vmul.f32 %v3148, %v3277
      %v3358 = vmul.f32 %v3152, %v3281
      %v3359 = vmul.f32 %v3156, %v3285
      %v3360 = vmul.f32 %v3160, %v3289
      %v3361 = vmul.f32 %v3164, %v3293
      %v3362 = vmul.f32 %v3168, %v3297
      %v3363 = vmul.f32 %v3172, %v3301
      %v3364 = vmul.f32 %v3176, %v3305
      %v3365 = vmul.f32 %v3180, %v3309
      %v3366 = vmul.f32 %v3184, %v3313
      %v3367 = vmul.f32 %v3188, %v3317
      %v3368 = vmul.f32 %v3192, %v3321
      %v3369 = vmul.f32 %v3196, %v3325
      %v3370 = vmul.f32 %v3200, %v3329
      %v3371 = vmul.f32 %v3204, %v3333
      %v3372 = vmul.f32 %v3208, %v3337
      %v3373 = vmul.f32 %v3212, %v3341
      %v3374 = vadd.f32 %v3054, %v3342
      %v3375 = vadd.f32 %v3055, %v3343
      %v3376 = vadd.f32 %v3056, %v3344
      %v3377 = vadd.f32 %v3057, %v3345
      %v3378 = vadd.f32 %v3058, %v3346
      %v3379 = vadd.f32 %v3059, %v3347
      %v3380 = vadd.f32 %v3060, %v3348
      %v3381 = vadd.f32 %v3061, %v3349
      %v3382 = vadd.f32 %v3062, %v3350
      %v3383 = vadd.f32 %v3063, %v3351
      %v3384 = vadd.f32 %v3064, %v3352
      %v3385 = vadd.f32 %v3065, %v3353
      %v3386 = vadd.f32 %v3066, %v3354
      %v3387 = vadd.f32 %v3067, %v3355
      %v3388 = vadd.f32 %v3068, %v3356
      %v3389 = vadd.f32 %v3069, %v3357
      %v3390 = vadd.f32 %v3070, %v3358
      %v3391 = vadd.f32 %v3071, %v3359
      %v3392 = vadd.f32 %v3072, %v3360
      %v3393 = vadd.f32 %v3073, %v3361
      %v3394 = vadd.f32 %v3074, %v3362
      %v3395 = vadd.f32 %v3075, %v3363
      %v3396 = vadd.f32 %v3076, %v3364
      %v3397 = vadd.f32 %v3077, %v3365
      %v3398 = vadd.f32 %v3078, %v3366
      %v3399 = vadd.f32 %v3079, %v3367
      %v3400 = vadd.f32 %v3080, %v3368
      %v3401 = vadd.f32 %v3081, %v3369
      %v3402 = vadd.f32 %v3082, %v3370
      %v3403 = vadd.f32 %v3083, %v3371
      %v3404 = vadd.f32 %v3084, %v3372
      %v3405 = vadd.f32 %v3085, %v3373
      %3406 = vset.pattern.permute.xlu0 7
      %3407 = vperm.xlu0 %3406, %v1134
      %v3408 = vpop.permute.xlu0 %3407
      %3410 = vset.pattern.permute.xlu0 7
      %3411 = vperm.xlu0 %3410, %v1135
      %v3412 = vpop.permute.xlu0 %3411
      %3414 = vset.pattern.permute.xlu0 7
      %3415 = vperm.xlu0 %3414, %v1136
      %v3416 = vpop.permute.xlu0 %3415
      %3418 = vset.pattern.permute.xlu0 7
      %3419 = vperm.xlu0 %3418, %v1137
      %v3420 = vpop.permute.xlu0 %3419
      %3422 = vset.pattern.permute.xlu0 7
      %3423 = vperm.xlu0 %3422, %v1138
      %v3424 = vpop.permute.xlu0 %3423
      %3426 = vset.pattern.permute.xlu0 7
      %3427 = vperm.xlu0 %3426, %v1139
      %v3428 = vpop.permute.xlu0 %3427
      %3430 = vset.pattern.permute.xlu0 7
      %3431 = vperm.xlu0 %3430, %v1140
      %v3432 = vpop.permute.xlu0 %3431
      %3434 = vset.pattern.permute.xlu0 7
      %3435 = vperm.xlu0 %3434, %v1141
      %v3436 = vpop.permute.xlu0 %3435
      %3438 = vset.pattern.permute.xlu0 7
      %3439 = vperm.xlu0 %3438, %v1142
      %v3440 = vpop.permute.xlu0 %3439
      %3442 = vset.pattern.permute.xlu0 7
      %3443 = vperm.xlu0 %3442, %v1143
      %v3444 = vpop.permute.xlu0 %3443
      %3446 = vset.pattern.permute.xlu0 7
      %3447 = vperm.xlu0 %3446, %v1144
      %v3448 = vpop.permute.xlu0 %3447
      %3450 = vset.pattern.permute.xlu0 7
      %3451 = vperm.xlu0 %3450, %v1145
      %v3452 = vpop.permute.xlu0 %3451
      %3454 = vset.pattern.permute.xlu0 7
      %3455 = vperm.xlu0 %3454, %v1146
      %v3456 = vpop.permute.xlu0 %3455
      %3458 = vset.pattern.permute.xlu0 7
      %3459 = vperm.xlu0 %3458, %v1147
      %v3460 = vpop.permute.xlu0 %3459
      %3462 = vset.pattern.permute.xlu0 7
      %3463 = vperm.xlu0 %3462, %v1148
      %v3464 = vpop.permute.xlu0 %3463
      %3466 = vset.pattern.permute.xlu0 7
      %3467 = vperm.xlu0 %3466, %v1149
      %v3468 = vpop.permute.xlu0 %3467
      %3470 = vset.pattern.permute.xlu0 7
      %3471 = vperm.xlu0 %3470, %v1150
      %v3472 = vpop.permute.xlu0 %3471
      %3474 = vset.pattern.permute.xlu0 7
      %3475 = vperm.xlu0 %3474, %v1151
      %v3476 = vpop.permute.xlu0 %3475
      %3478 = vset.pattern.permute.xlu0 7
      %3479 = vperm.xlu0 %3478, %v1152
      %v3480 = vpop.permute.xlu0 %3479
      %3482 = vset.pattern.permute.xlu0 7
      %3483 = vperm.xlu0 %3482, %v1153
      %v3484 = vpop.permute.xlu0 %3483
      %3486 = vset.pattern.permute.xlu0 7
      %3487 = vperm.xlu0 %3486, %v1154
      %v3488 = vpop.permute.xlu0 %3487
      %3490 = vset.pattern.permute.xlu0 7
      %3491 = vperm.xlu0 %3490, %v1155
      %v3492 = vpop.permute.xlu0 %3491
      %3494 = vset.pattern.permute.xlu0 7
      %3495 = vperm.xlu0 %3494, %v1156
      %v3496 = vpop.permute.xlu0 %3495
      %3498 = vset.pattern.permute.xlu0 7
      %3499 = vperm.xlu0 %3498, %v1157
      %v3500 = vpop.permute.xlu0 %3499
      %3502 = vset.pattern.permute.xlu0 7
      %3503 = vperm.xlu0 %3502, %v1158
      %v3504 = vpop.permute.xlu0 %3503
      %3506 = vset.pattern.permute.xlu0 7
      %3507 = vperm.xlu0 %3506, %v1159
      %v3508 = vpop.permute.xlu0 %3507
      %3510 = vset.pattern.permute.xlu0 7
      %3511 = vperm.xlu0 %3510, %v1160
      %v3512 = vpop.permute.xlu0 %3511
      %3514 = vset.pattern.permute.xlu0 7
      %3515 = vperm.xlu0 %3514, %v1161
      %v3516 = vpop.permute.xlu0 %3515
      %3518 = vset.pattern.permute.xlu0 7
      %3519 = vperm.xlu0 %3518, %v1162
      %v3520 = vpop.permute.xlu0 %3519
      %3522 = vset.pattern.permute.xlu0 7
      %3523 = vperm.xlu0 %3522, %v1163
      %v3524 = vpop.permute.xlu0 %3523
      %3526 = vset.pattern.permute.xlu0 7
      %3527 = vperm.xlu0 %3526, %v1164
      %v3528 = vpop.permute.xlu0 %3527
      %3530 = vset.pattern.permute.xlu0 7
      %3531 = vperm.xlu0 %3530, %v1165
      %v3532 = vpop.permute.xlu0 %3531
      %v3534 = vlaneseq
      %v3535 = vshrl.u32 %v3534, 7
      %v3536 = vsub.s32 7, %v3535
      %v3537 = vrot.slane %v1102, %v3536
      %v3538 = vlaneseq
      %v3539 = vshrl.u32 %v3538, 7
      %v3540 = vsub.s32 7, %v3539
      %v3541 = vrot.slane %v1103, %v3540
      %v3542 = vlaneseq
      %v3543 = vshrl.u32 %v3542, 7
      %v3544 = vsub.s32 7, %v3543
      %v3545 = vrot.slane %v1104, %v3544
      %v3546 = vlaneseq
      %v3547 = vshrl.u32 %v3546, 7
      %v3548 = vsub.s32 7, %v3547
      %v3549 = vrot.slane %v1105, %v3548
      %v3550 = vlaneseq
      %v3551 = vshrl.u32 %v3550, 7
      %v3552 = vsub.s32 7, %v3551
      %v3553 = vrot.slane %v1106, %v3552
      %v3554 = vlaneseq
      %v3555 = vshrl.u32 %v3554, 7
      %v3556 = vsub.s32 7, %v3555
      %v3557 = vrot.slane %v1107, %v3556
      %v3558 = vlaneseq
      %v3559 = vshrl.u32 %v3558, 7
      %v3560 = vsub.s32 7, %v3559
      %v3561 = vrot.slane %v1108, %v3560
      %v3562 = vlaneseq
      %v3563 = vshrl.u32 %v3562, 7
      %v3564 = vsub.s32 7, %v3563
      %v3565 = vrot.slane %v1109, %v3564
      %v3566 = vlaneseq
      %v3567 = vshrl.u32 %v3566, 7
      %v3568 = vsub.s32 7, %v3567
      %v3569 = vrot.slane %v1110, %v3568
      %v3570 = vlaneseq
      %v3571 = vshrl.u32 %v3570, 7
      %v3572 = vsub.s32 7, %v3571
      %v3573 = vrot.slane %v1111, %v3572
      %v3574 = vlaneseq
      %v3575 = vshrl.u32 %v3574, 7
      %v3576 = vsub.s32 7, %v3575
      %v3577 = vrot.slane %v1112, %v3576
      %v3578 = vlaneseq
      %v3579 = vshrl.u32 %v3578, 7
      %v3580 = vsub.s32 7, %v3579
      %v3581 = vrot.slane %v1113, %v3580
      %v3582 = vlaneseq
      %v3583 = vshrl.u32 %v3582, 7
      %v3584 = vsub.s32 7, %v3583
      %v3585 = vrot.slane %v1114, %v3584
      %v3586 = vlaneseq
      %v3587 = vshrl.u32 %v3586, 7
      %v3588 = vsub.s32 7, %v3587
      %v3589 = vrot.slane %v1115, %v3588
      %v3590 = vlaneseq
      %v3591 = vshrl.u32 %v3590, 7
      %v3592 = vsub.s32 7, %v3591
      %v3593 = vrot.slane %v1116, %v3592
      %v3594 = vlaneseq
      %v3595 = vshrl.u32 %v3594, 7
      %v3596 = vsub.s32 7, %v3595
      %v3597 = vrot.slane %v1117, %v3596
      %v3598 = vlaneseq
      %v3599 = vshrl.u32 %v3598, 7
      %v3600 = vsub.s32 7, %v3599
      %v3601 = vrot.slane %v1118, %v3600
      %v3602 = vlaneseq
      %v3603 = vshrl.u32 %v3602, 7
      %v3604 = vsub.s32 7, %v3603
      %v3605 = vrot.slane %v1119, %v3604
      %v3606 = vlaneseq
      %v3607 = vshrl.u32 %v3606, 7
      %v3608 = vsub.s32 7, %v3607
      %v3609 = vrot.slane %v1120, %v3608
      %v3610 = vlaneseq
      %v3611 = vshrl.u32 %v3610, 7
      %v3612 = vsub.s32 7, %v3611
      %v3613 = vrot.slane %v1121, %v3612
      %v3614 = vlaneseq
      %v3615 = vshrl.u32 %v3614, 7
      %v3616 = vsub.s32 7, %v3615
      %v3617 = vrot.slane %v1122, %v3616
      %v3618 = vlaneseq
      %v3619 = vshrl.u32 %v3618, 7
      %v3620 = vsub.s32 7, %v3619
      %v3621 = vrot.slane %v1123, %v3620
      %v3622 = vlaneseq
      %v3623 = vshrl.u32 %v3622, 7
      %v3624 = vsub.s32 7, %v3623
      %v3625 = vrot.slane %v1124, %v3624
      %v3626 = vlaneseq
      %v3627 = vshrl.u32 %v3626, 7
      %v3628 = vsub.s32 7, %v3627
      %v3629 = vrot.slane %v1125, %v3628
      %v3630 = vlaneseq
      %v3631 = vshrl.u32 %v3630, 7
      %v3632 = vsub.s32 7, %v3631
      %v3633 = vrot.slane %v1126, %v3632
      %v3634 = vlaneseq
      %v3635 = vshrl.u32 %v3634, 7
      %v3636 = vsub.s32 7, %v3635
      %v3637 = vrot.slane %v1127, %v3636
      %v3638 = vlaneseq
      %v3639 = vshrl.u32 %v3638, 7
      %v3640 = vsub.s32 7, %v3639
      %v3641 = vrot.slane %v1128, %v3640
      %v3642 = vlaneseq
      %v3643 = vshrl.u32 %v3642, 7
      %v3644 = vsub.s32 7, %v3643
      %v3645 = vrot.slane %v1129, %v3644
      %v3646 = vlaneseq
      %v3647 = vshrl.u32 %v3646, 7
      %v3648 = vsub.s32 7, %v3647
      %v3649 = vrot.slane %v1130, %v3648
      %v3650 = vlaneseq
      %v3651 = vshrl.u32 %v3650, 7
      %v3652 = vsub.s32 7, %v3651
      %v3653 = vrot.slane %v1131, %v3652
      %v3654 = vlaneseq
      %v3655 = vshrl.u32 %v3654, 7
      %v3656 = vsub.s32 7, %v3655
      %v3657 = vrot.slane %v1132, %v3656
      %v3658 = vlaneseq
      %v3659 = vshrl.u32 %v3658, 7
      %v3660 = vsub.s32 7, %v3659
      %v3661 = vrot.slane %v1133, %v3660
      %v3662 = vmul.f32 %v3408, %v3537
      %v3663 = vmul.f32 %v3412, %v3541
      %v3664 = vmul.f32 %v3416, %v3545
      %v3665 = vmul.f32 %v3420, %v3549
      %v3666 = vmul.f32 %v3424, %v3553
      %v3667 = vmul.f32 %v3428, %v3557
      %v3668 = vmul.f32 %v3432, %v3561
      %v3669 = vmul.f32 %v3436, %v3565
      %v3670 = vmul.f32 %v3440, %v3569
      %v3671 = vmul.f32 %v3444, %v3573
      %v3672 = vmul.f32 %v3448, %v3577
      %v3673 = vmul.f32 %v3452, %v3581
      %v3674 = vmul.f32 %v3456, %v3585
      %v3675 = vmul.f32 %v3460, %v3589
      %v3676 = vmul.f32 %v3464, %v3593
      %v3677 = vmul.f32 %v3468, %v3597
      %v3678 = vmul.f32 %v3472, %v3601
      %v3679 = vmul.f32 %v3476, %v3605
      %v3680 = vmul.f32 %v3480, %v3609
      %v3681 = vmul.f32 %v3484, %v3613
      %v3682 = vmul.f32 %v3488, %v3617
      %v3683 = vmul.f32 %v3492, %v3621
      %v3684 = vmul.f32 %v3496, %v3625
      %v3685 = vmul.f32 %v3500, %v3629
      %v3686 = vmul.f32 %v3504, %v3633
      %v3687 = vmul.f32 %v3508, %v3637
      %v3688 = vmul.f32 %v3512, %v3641
      %v3689 = vmul.f32 %v3516, %v3645
      %v3690 = vmul.f32 %v3520, %v3649
      %v3691 = vmul.f32 %v3524, %v3653
      %v3692 = vmul.f32 %v3528, %v3657
      %v3693 = vmul.f32 %v3532, %v3661
      %v3694 = vadd.f32 %v3374, %v3662
      %v3695 = vadd.f32 %v3375, %v3663
      %v3696 = vadd.f32 %v3376, %v3664
      %v3697 = vadd.f32 %v3377, %v3665
      %v3698 = vadd.f32 %v3378, %v3666
      %v3699 = vadd.f32 %v3379, %v3667
      %v3700 = vadd.f32 %v3380, %v3668
      %v3701 = vadd.f32 %v3381, %v3669
      %v3702 = vadd.f32 %v3382, %v3670
      %v3703 = vadd.f32 %v3383, %v3671
      %v3704 = vadd.f32 %v3384, %v3672
      %v3705 = vadd.f32 %v3385, %v3673
      %v3706 = vadd.f32 %v3386, %v3674
      %v3707 = vadd.f32 %v3387, %v3675
      %v3708 = vadd.f32 %v3388, %v3676
      %v3709 = vadd.f32 %v3389, %v3677
      %v3710 = vadd.f32 %v3390, %v3678
      %v3711 = vadd.f32 %v3391, %v3679
      %v3712 = vadd.f32 %v3392, %v3680
      %v3713 = vadd.f32 %v3393, %v3681
      %v3714 = vadd.f32 %v3394, %v3682
      %v3715 = vadd.f32 %v3395, %v3683
      %v3716 = vadd.f32 %v3396, %v3684
      %v3717 = vadd.f32 %v3397, %v3685
      %v3718 = vadd.f32 %v3398, %v3686
      %v3719 = vadd.f32 %v3399, %v3687
      %v3720 = vadd.f32 %v3400, %v3688
      %v3721 = vadd.f32 %v3401, %v3689
      %v3722 = vadd.f32 %v3402, %v3690
      %v3723 = vadd.f32 %v3403, %v3691
      %v3724 = vadd.f32 %v3404, %v3692
      %v3725 = vadd.f32 %v3405, %v3693
      %v3726 = vmul.f32 %v726, %v3694
      %v3727 = vmul.f32 %v727, %v3695
      %v3728 = vmul.f32 %v728, %v3696
      %v3729 = vmul.f32 %v729, %v3697
      %v3730 = vmul.f32 %v730, %v3698
      %v3731 = vmul.f32 %v731, %v3699
      %v3732 = vmul.f32 %v732, %v3700
      %v3733 = vmul.f32 %v733, %v3701
      %v3734 = vmul.f32 %v734, %v3702
      %v3735 = vmul.f32 %v735, %v3703
      %v3736 = vmul.f32 %v736, %v3704
      %v3737 = vmul.f32 %v737, %v3705
      %v3738 = vmul.f32 %v738, %v3706
      %v3739 = vmul.f32 %v739, %v3707
      %v3740 = vmul.f32 %v740, %v3708
      %v3741 = vmul.f32 %v741, %v3709
      %v3742 = vmul.f32 %v742, %v3710
      %v3743 = vmul.f32 %v743, %v3711
      %v3744 = vmul.f32 %v744, %v3712
      %v3745 = vmul.f32 %v745, %v3713
      %v3746 = vmul.f32 %v746, %v3714
      %v3747 = vmul.f32 %v747, %v3715
      %v3748 = vmul.f32 %v748, %v3716
      %v3749 = vmul.f32 %v749, %v3717
      %v3750 = vmul.f32 %v750, %v3718
      %v3751 = vmul.f32 %v751, %v3719
      %v3752 = vmul.f32 %v752, %v3720
      %v3753 = vmul.f32 %v753, %v3721
      %v3754 = vmul.f32 %v754, %v3722
      %v3755 = vmul.f32 %v755, %v3723
      %v3756 = vmul.f32 %v756, %v3724
      %v3757 = vmul.f32 %v757, %v3725
      %v3758 = vsel %vm516, %v3726, 0.0
      %v3759 = vrot.slane %v3758, 4
      %v3760 = vadd.f32 %v3758, %v3759
      %v3761 = vrot.slane %v3760, 2
      %v3762 = vadd.f32 %v3760, %v3761
      %v3763 = vrot.slane %v3762, 1
      %v3764 = vadd.f32 %v3762, %v3763
      %v3765 = vsel %vm516, %v3727, 0.0
      %v3766 = vrot.slane %v3765, 4
      %v3767 = vadd.f32 %v3765, %v3766
      %v3768 = vrot.slane %v3767, 2
      %v3769 = vadd.f32 %v3767, %v3768
      %v3770 = vrot.slane %v3769, 1
      %v3771 = vadd.f32 %v3769, %v3770
      %v3772 = vsel %vm516, %v3728, 0.0
      %v3773 = vrot.slane %v3772, 4
      %v3774 = vadd.f32 %v3772, %v3773
      %v3775 = vrot.slane %v3774, 2
      %v3776 = vadd.f32 %v3774, %v3775
      %v3777 = vrot.slane %v3776, 1
      %v3778 = vadd.f32 %v3776, %v3777
      %v3779 = vsel %vm516, %v3729, 0.0
      %v3780 = vrot.slane %v3779, 4
      %v3781 = vadd.f32 %v3779, %v3780
      %v3782 = vrot.slane %v3781, 2
      %v3783 = vadd.f32 %v3781, %v3782
      %v3784 = vrot.slane %v3783, 1
      %v3785 = vadd.f32 %v3783, %v3784
      %v3786 = vsel %vm516, %v3730, 0.0
      %v3787 = vrot.slane %v3786, 4
      %v3788 = vadd.f32 %v3786, %v3787
      %v3789 = vrot.slane %v3788, 2
      %v3790 = vadd.f32 %v3788, %v3789
      %v3791 = vrot.slane %v3790, 1
      %v3792 = vadd.f32 %v3790, %v3791
      %v3793 = vsel %vm516, %v3731, 0.0
      %v3794 = vrot.slane %v3793, 4
      %v3795 = vadd.f32 %v3793, %v3794
      %v3796 = vrot.slane %v3795, 2
      %v3797 = vadd.f32 %v3795, %v3796
      %v3798 = vrot.slane %v3797, 1
      %v3799 = vadd.f32 %v3797, %v3798
      %v3800 = vsel %vm516, %v3732, 0.0
      %v3801 = vrot.slane %v3800, 4
      %v3802 = vadd.f32 %v3800, %v3801
      %v3803 = vrot.slane %v3802, 2
      %v3804 = vadd.f32 %v3802, %v3803
      %v3805 = vrot.slane %v3804, 1
      %v3806 = vadd.f32 %v3804, %v3805
      %v3807 = vsel %vm516, %v3733, 0.0
      %v3808 = vrot.slane %v3807, 4
      %v3809 = vadd.f32 %v3807, %v3808
      %v3810 = vrot.slane %v3809, 2
      %v3811 = vadd.f32 %v3809, %v3810
      %v3812 = vrot.slane %v3811, 1
      %v3813 = vadd.f32 %v3811, %v3812
      %v3814 = vsel %vm516, %v3734, 0.0
      %v3815 = vrot.slane %v3814, 4
      %v3816 = vadd.f32 %v3814, %v3815
      %v3817 = vrot.slane %v3816, 2
      %v3818 = vadd.f32 %v3816, %v3817
      %v3819 = vrot.slane %v3818, 1
      %v3820 = vadd.f32 %v3818, %v3819
      %v3821 = vsel %vm516, %v3735, 0.0
      %v3822 = vrot.slane %v3821, 4
      %v3823 = vadd.f32 %v3821, %v3822
      %v3824 = vrot.slane %v3823, 2
      %v3825 = vadd.f32 %v3823, %v3824
      %v3826 = vrot.slane %v3825, 1
      %v3827 = vadd.f32 %v3825, %v3826
      %v3828 = vsel %vm516, %v3736, 0.0
      %v3829 = vrot.slane %v3828, 4
      %v3830 = vadd.f32 %v3828, %v3829
      %v3831 = vrot.slane %v3830, 2
      %v3832 = vadd.f32 %v3830, %v3831
      %v3833 = vrot.slane %v3832, 1
      %v3834 = vadd.f32 %v3832, %v3833
      %v3835 = vsel %vm516, %v3737, 0.0
      %v3836 = vrot.slane %v3835, 4
      %v3837 = vadd.f32 %v3835, %v3836
      %v3838 = vrot.slane %v3837, 2
      %v3839 = vadd.f32 %v3837, %v3838
      %v3840 = vrot.slane %v3839, 1
      %v3841 = vadd.f32 %v3839, %v3840
      %v3842 = vsel %vm516, %v3738, 0.0
      %v3843 = vrot.slane %v3842, 4
      %v3844 = vadd.f32 %v3842, %v3843
      %v3845 = vrot.slane %v3844, 2
      %v3846 = vadd.f32 %v3844, %v3845
      %v3847 = vrot.slane %v3846, 1
      %v3848 = vadd.f32 %v3846, %v3847
      %v3849 = vsel %vm516, %v3739, 0.0
      %v3850 = vrot.slane %v3849, 4
      %v3851 = vadd.f32 %v3849, %v3850
      %v3852 = vrot.slane %v3851, 2
      %v3853 = vadd.f32 %v3851, %v3852
      %v3854 = vrot.slane %v3853, 1
      %v3855 = vadd.f32 %v3853, %v3854
      %v3856 = vsel %vm516, %v3740, 0.0
      %v3857 = vrot.slane %v3856, 4
      %v3858 = vadd.f32 %v3856, %v3857
      %v3859 = vrot.slane %v3858, 2
      %v3860 = vadd.f32 %v3858, %v3859
      %v3861 = vrot.slane %v3860, 1
      %v3862 = vadd.f32 %v3860, %v3861
      %v3863 = vsel %vm516, %v3741, 0.0
      %v3864 = vrot.slane %v3863, 4
      %v3865 = vadd.f32 %v3863, %v3864
      %v3866 = vrot.slane %v3865, 2
      %v3867 = vadd.f32 %v3865, %v3866
      %v3868 = vrot.slane %v3867, 1
      %v3869 = vadd.f32 %v3867, %v3868
      %v3870 = vsel %vm516, %v3742, 0.0
      %v3871 = vrot.slane %v3870, 4
      %v3872 = vadd.f32 %v3870, %v3871
      %v3873 = vrot.slane %v3872, 2
      %v3874 = vadd.f32 %v3872, %v3873
      %v3875 = vrot.slane %v3874, 1
      %v3876 = vadd.f32 %v3874, %v3875
      %v3877 = vsel %vm516, %v3743, 0.0
      %v3878 = vrot.slane %v3877, 4
      %v3879 = vadd.f32 %v3877, %v3878
      %v3880 = vrot.slane %v3879, 2
      %v3881 = vadd.f32 %v3879, %v3880
      %v3882 = vrot.slane %v3881, 1
      %v3883 = vadd.f32 %v3881, %v3882
      %v3884 = vsel %vm516, %v3744, 0.0
      %v3885 = vrot.slane %v3884, 4
      %v3886 = vadd.f32 %v3884, %v3885
      %v3887 = vrot.slane %v3886, 2
      %v3888 = vadd.f32 %v3886, %v3887
      %v3889 = vrot.slane %v3888, 1
      %v3890 = vadd.f32 %v3888, %v3889
      %v3891 = vsel %vm516, %v3745, 0.0
      %v3892 = vrot.slane %v3891, 4
      %v3893 = vadd.f32 %v3891, %v3892
      %v3894 = vrot.slane %v3893, 2
      %v3895 = vadd.f32 %v3893, %v3894
      %v3896 = vrot.slane %v3895, 1
      %v3897 = vadd.f32 %v3895, %v3896
      %v3898 = vsel %vm516, %v3746, 0.0
      %v3899 = vrot.slane %v3898, 4
      %v3900 = vadd.f32 %v3898, %v3899
      %v3901 = vrot.slane %v3900, 2
      %v3902 = vadd.f32 %v3900, %v3901
      %v3903 = vrot.slane %v3902, 1
      %v3904 = vadd.f32 %v3902, %v3903
      %v3905 = vsel %vm516, %v3747, 0.0
      %v3906 = vrot.slane %v3905, 4
      %v3907 = vadd.f32 %v3905, %v3906
      %v3908 = vrot.slane %v3907, 2
      %v3909 = vadd.f32 %v3907, %v3908
      %v3910 = vrot.slane %v3909, 1
      %v3911 = vadd.f32 %v3909, %v3910
      %v3912 = vsel %vm516, %v3748, 0.0
      %v3913 = vrot.slane %v3912, 4
      %v3914 = vadd.f32 %v3912, %v3913
      %v3915 = vrot.slane %v3914, 2
      %v3916 = vadd.f32 %v3914, %v3915
      %v3917 = vrot.slane %v3916, 1
      %v3918 = vadd.f32 %v3916, %v3917
      %v3919 = vsel %vm516, %v3749, 0.0
      %v3920 = vrot.slane %v3919, 4
      %v3921 = vadd.f32 %v3919, %v3920
      %v3922 = vrot.slane %v3921, 2
      %v3923 = vadd.f32 %v3921, %v3922
      %v3924 = vrot.slane %v3923, 1
      %v3925 = vadd.f32 %v3923, %v3924
      %v3926 = vsel %vm516, %v3750, 0.0
      %v3927 = vrot.slane %v3926, 4
      %v3928 = vadd.f32 %v3926, %v3927
      %v3929 = vrot.slane %v3928, 2
      %v3930 = vadd.f32 %v3928, %v3929
      %v3931 = vrot.slane %v3930, 1
      %v3932 = vadd.f32 %v3930, %v3931
      %v3933 = vsel %vm516, %v3751, 0.0
      %v3934 = vrot.slane %v3933, 4
      %v3935 = vadd.f32 %v3933, %v3934
      %v3936 = vrot.slane %v3935, 2
      %v3937 = vadd.f32 %v3935, %v3936
      %v3938 = vrot.slane %v3937, 1
      %v3939 = vadd.f32 %v3937, %v3938
      %v3940 = vsel %vm516, %v3752, 0.0
      %v3941 = vrot.slane %v3940, 4
      %v3942 = vadd.f32 %v3940, %v3941
      %v3943 = vrot.slane %v3942, 2
      %v3944 = vadd.f32 %v3942, %v3943
      %v3945 = vrot.slane %v3944, 1
      %v3946 = vadd.f32 %v3944, %v3945
      %v3947 = vsel %vm516, %v3753, 0.0
      %v3948 = vrot.slane %v3947, 4
      %v3949 = vadd.f32 %v3947, %v3948
      %v3950 = vrot.slane %v3949, 2
      %v3951 = vadd.f32 %v3949, %v3950
      %v3952 = vrot.slane %v3951, 1
      %v3953 = vadd.f32 %v3951, %v3952
      %v3954 = vsel %vm516, %v3754, 0.0
      %v3955 = vrot.slane %v3954, 4
      %v3956 = vadd.f32 %v3954, %v3955
      %v3957 = vrot.slane %v3956, 2
      %v3958 = vadd.f32 %v3956, %v3957
      %v3959 = vrot.slane %v3958, 1
      %v3960 = vadd.f32 %v3958, %v3959
      %v3961 = vsel %vm516, %v3755, 0.0
      %v3962 = vrot.slane %v3961, 4
      %v3963 = vadd.f32 %v3961, %v3962
      %v3964 = vrot.slane %v3963, 2
      %v3965 = vadd.f32 %v3963, %v3964
      %v3966 = vrot.slane %v3965, 1
      %v3967 = vadd.f32 %v3965, %v3966
      %v3968 = vsel %vm516, %v3756, 0.0
      %v3969 = vrot.slane %v3968, 4
      %v3970 = vadd.f32 %v3968, %v3969
      %v3971 = vrot.slane %v3970, 2
      %v3972 = vadd.f32 %v3970, %v3971
      %v3973 = vrot.slane %v3972, 1
      %v3974 = vadd.f32 %v3972, %v3973
      %v3975 = vsel %vm516, %v3757, 0.0
      %v3976 = vrot.slane %v3975, 4
      %v3977 = vadd.f32 %v3975, %v3976
      %v3978 = vrot.slane %v3977, 2
      %v3979 = vadd.f32 %v3977, %v3978
      %v3980 = vrot.slane %v3979, 1
      %v3981 = vadd.f32 %v3979, %v3980
      %v3982 = vld [vmem:[%s7] sm:$0xff]
      %v3983 = vld [vmem:[%s7 + $0x8] sm:$0xff]
      %v3984 = vld [vmem:[%s7 + $0x10] sm:$0xff]
      %v3985 = vld [vmem:[%s7 + $0x18] sm:$0xff]
      %v3986 = vld [vmem:[%s8] sm:$0x1]
      %v3988 = vlaneseq
      %v3989 = vshrl.u32 %v3988, 7
      %v3990 = vsub.s32 0, %v3989
      %v3991 = vrot.slane %v3986, %v3990
      %vm4025 = vcmask 1041409
      %v4026 = vsel %vm4025, %v3771, %v3764
      %vm4027 = vcmask 1042434
      %v4028 = vsel %vm4027, %v3778, %v4026
      %vm4029 = vcmask 1043459
      %v4030 = vsel %vm4029, %v3785, %v4028
      %vm4031 = vcmask 1044484
      %v4032 = vsel %vm4031, %v3792, %v4030
      %vm4033 = vcmask 1045509
      %v4034 = vsel %vm4033, %v3799, %v4032
      %vm4035 = vcmask 1046534
      %v4036 = vsel %vm4035, %v3806, %v4034
      %vm4037 = vcmask 1047559
      %v4038 = vsel %vm4037, %v3813, %v4036
      %v4039 = vsel %vm4025, %v3827, %v3820
      %v4040 = vsel %vm4027, %v3834, %v4039
      %v4041 = vsel %vm4029, %v3841, %v4040
      %v4042 = vsel %vm4031, %v3848, %v4041
      %v4043 = vsel %vm4033, %v3855, %v4042
      %v4044 = vsel %vm4035, %v3862, %v4043
      %v4045 = vsel %vm4037, %v3869, %v4044
      %v4046 = vsel %vm4025, %v3883, %v3876
      %v4047 = vsel %vm4027, %v3890, %v4046
      %v4048 = vsel %vm4029, %v3897, %v4047
      %v4049 = vsel %vm4031, %v3904, %v4048
      %v4050 = vsel %vm4033, %v3911, %v4049
      %v4051 = vsel %vm4035, %v3918, %v4050
      %v4052 = vsel %vm4037, %v3925, %v4051
      %v4053 = vsel %vm4025, %v3939, %v3932
      %v4054 = vsel %vm4027, %v3946, %v4053
      %v4055 = vsel %vm4029, %v3953, %v4054
      %v4056 = vsel %vm4031, %v3960, %v4055
      %v4057 = vsel %vm4033, %v3967, %v4056
      %v4058 = vsel %vm4035, %v3974, %v4057
      %v4059 = vsel %vm4037, %v3981, %v4058
      %v4060 = vsel %vm516, %v4038, 0
      %v4062 = vsel %vm516, %v4045, 0
      %v4064 = vsel %vm516, %v4052, 0
      %v4066 = vsel %vm516, %v4059, 0
      %4068 = vmatprep.subr.mxu0 0.0
      %4069 = vmatpush1.msra.mxu0 %v3982
      %4070 = vmatprep.subr.mxu0 0.0
      %4071 = vmatpush1.msra.mxu0 %v3983
      %4072 = vmatprep.subr.mxu0 0.0
      %4073 = vmatpush1.msra.mxu0 %v3984
      %4074 = vmatprep.subr.mxu0 0.0
      %4075 = vmatpush1.msra.mxu0 %v3985
      %4076 = vmatprep.subr.mxu0 0.0
      %4077 = vmatpush1.msra.mxu0 0.0
      %4078 = vmatprep.subr.mxu0 0.0
      %4079 = vmatpush1.msra.mxu0 0.0
      %4080 = vmatprep.subr.mxu0 0.0
      %4081 = vmatpush1.msra.mxu0 0.0
      %4082 = vmatprep.subr.mxu0 0.0
      %4083 = vmatpush1.msra.mxu0 0.0
      %4084 = vmatprep.subr.mxu0 0.0
      %4085 = vmatpush1.msra.mxu0 0.0
      %4086 = vmatprep.subr.mxu0 0.0
      %4087 = vmatpush1.msra.mxu0 0.0
      %4088 = vmatprep.subr.mxu0 0.0
      %4089 = vmatpush1.msra.mxu0 0.0
      %4090 = vmatprep.subr.mxu0 0.0
      %4091 = vmatpush1.msra.mxu0 0.0
      %4092 = vmatprep.subr.mxu0 0.0
      %4093 = vmatpush1.msra.mxu0 0.0
      %4094 = vmatprep.subr.mxu0 0.0
      %4095 = vmatpush1.msra.mxu0 0.0
      %4096 = vmatprep.subr.mxu0 0.0
      %4097 = vmatpush1.msra.mxu0 0.0
      %4098 = vmatprep.subr.mxu0 0.0
      %4099 = vmatpush1.msra.mxu0 0.0
      %4100 = vmatprep.subr.mxu0 0.0
      %4101 = vmatpush1.msra.mxu0 0.0
      %4102 = vmatprep.subr.mxu0 0.0
      %4103 = vmatpush1.msra.mxu0 0.0
      %4104 = vmatprep.subr.mxu0 0.0
      %4105 = vmatpush1.msra.mxu0 0.0
      %4106 = vmatprep.subr.mxu0 0.0
      %4107 = vmatpush1.msra.mxu0 0.0
      %4108 = vmatprep.subr.mxu0 0.0
      %4109 = vmatpush1.msra.mxu0 0.0
      %4110 = vmatprep.subr.mxu0 0.0
      %4111 = vmatpush1.msra.mxu0 0.0
      %4112 = vmatprep.subr.mxu0 0.0
      %4113 = vmatpush1.msra.mxu0 0.0
      %4114 = vmatprep.subr.mxu0 0.0
      %4115 = vmatpush1.msra.mxu0 0.0
      %4116 = vmatprep.subr.mxu0 0.0
      %4117 = vmatpush1.msra.mxu0 0.0
      %4118 = vmatprep.subr.mxu0 0.0
      %4119 = vmatpush1.msra.mxu0 0.0
      %4120 = vmatprep.subr.mxu0 0.0
      %4121 = vmatpush1.msra.mxu0 0.0
      %4122 = vmatprep.subr.mxu0 0.0
      %4123 = vmatpush1.msra.mxu0 0.0
      %4124 = vmatprep.subr.mxu0 0.0
      %4125 = vmatpush1.msra.mxu0 0.0
      %4126 = vmatprep.subr.mxu0 0.0
      %4127 = vmatpush1.msra.mxu0 0.0
      %4128 = vmatprep.subr.mxu0 0.0
      %4129 = vmatpush1.msra.mxu0 0.0
      %4130 = vmatprep.subr.mxu0 0.0
      %4131 = vmatpush1.msra.mxu0 0.0
      %4132 = vmatprep.mubr.f32.mxu0 0.0
      %4133 = vmatmul.mubr.f32.gmra.mrb[0].mxu0 %v4060
      %v4134 = vpop.f32.mrb[0].mxu0
      %v4135 = vadd.f32 %v3991, %v4134
      %v4136 = vpop.f32.mrb[0].mxu0
      %4137 = vmatprep.mubr.f32.mxu0 0.0
      %4138 = vmatmul.mubr.f32.gmra.mrb[0].mxu0 %v4062
      %v4139 = vpop.f32.mrb[0].mxu0
      %v4140 = vadd.f32 %v3991, %v4139
      %v4141 = vpop.f32.mrb[0].mxu0
      %4142 = vmatprep.mubr.f32.mxu0 0.0
      %4143 = vmatmul.mubr.f32.gmra.mrb[0].mxu0 %v4064
      %v4144 = vpop.f32.mrb[0].mxu0
      %v4145 = vadd.f32 %v3991, %v4144
      %v4146 = vpop.f32.mrb[0].mxu0
      %4147 = vmatprep.mubr.f32.mxu0 0.0
      %4148 = vmatmul.mubr.f32.gmra.mrb[0].mxu0 %v4066
      %v4149 = vpop.f32.mrb[0].mxu0
      %v4150 = vadd.f32 %v3991, %v4149
      %v4151 = vpop.f32.mrb[0].mxu0
      %4152 = vdwg.mxu0
      %4153 = vst.msk [vmem:[%s378] sm:$0xff] %vm516, %v4135
      %4154 = vst.msk [vmem:[%s378 + $0x8] sm:$0xff] %vm516, %v4140
      %4155 = vst.msk [vmem:[%s378 + $0x10] sm:$0xff] %vm516, %v4145
      %4156 = vst.msk [vmem:[%s378 + $0x18] sm:$0xff] %vm516, %v4150
      %s4157 = smul.u32 4, %s20
      %p4158 = scmp.lt.s32.totalorder %s4157, 7
      %s4159 = scalar_select %p4158, %s4157, 7
      %s4160 = smul.addr %s4159, 8
      %s4161 = scalar_lea.vmem %s9, %s4160
      // Predicated region
      $region57: #{tpu_custom_call.1} parent=55 // pred_check
        %p4162 = pneg %p242
      $region58: #{tpu_custom_call.1} parent=55 // pred_check_branch
        %4164 = sbr.rel (%p4162) target = $region60
      $region59: #{tpu_custom_call.1} parent=55 // pred_region
        %s4165 = smul.u32 4, %s20
      $region60: #{tpu_custom_call.1} parent=55 // pred_fallthru
        _
    $region56: #{tpu_custom_call.1} parent=5 // pred_fallthru
      _
    %p4166 = scmp.le.s32.totalorder 2, %s15
    // Predicated region
    $region61: #{tpu_custom_call.1} parent=5 // pred_check
      %p4167 = pneg %p4166
    $region62: #{tpu_custom_call.1} parent=5 // pred_check_branch
      %4169 = sbr.rel (%p4167) target = $region64
    $region63: #{tpu_custom_call.1} parent=5 // pred_region
      %s4170 = ssub.s32 %s15, 2
      // Predicated region
      $region65: #{tpu_custom_call.1} parent=63 // pred_check
        %p4171 = pneg %p248
      $region66: #{tpu_custom_call.1} parent=63 // pred_check_branch
        %4173 = sbr.rel (%p4171) target = $region68
      $region67: #{tpu_custom_call.1} parent=63 // pred_region
        %s4174 = smul.u32 4, %s21
        %p4175 = scmp.lt.s32.totalorder %s4174, 7
        %s4176 = scalar_select %p4175, %s4174, 7
        %s4177 = smul.addr %s4176, 8
        %s4178 = scalar_lea.vmem %s9, %s4177
      $region68: #{tpu_custom_call.1} parent=63 // pred_fallthru
        _
    $region64: #{tpu_custom_call.1} parent=5 // pred_fallthru
      _
  $region6: #{tpu_custom_call.1} parent=0 // loop_footer
    %s19 = sadd.s32 1, %s15
  $region7: #{tpu_custom_call.1} parent=0 // loop_footer_branch
    %14 = sbr.rel target = $region3
  $region8: #{tpu_custom_call.1} parent=0 // loop_exit
    _

</llo_original>
